<compile_context>
chip_gen: v6e
topology: v6e:2x2x1
jax: 0.10.0
libtpu: 0.0.40
codegen_flags: <defaults>
</compile_context>

<pallas_src>
import functools

import jax
import jax.numpy as jnp
from jax.experimental import pallas as pl
from jax.experimental.pallas import tpu as pltpu


# ----------------------------------------------------------------------------
# Tiling helpers
# ----------------------------------------------------------------------------
def _pick_tile(dim, target):
    """Use `target` when it evenly divides `dim`, otherwise the full dim."""
    if dim > target and dim % target == 0:
        return target
    return dim


# ----------------------------------------------------------------------------
# Pallas kernels
# ----------------------------------------------------------------------------
def _matmul_kernel(x_ref, w_ref, b_ref, o_ref, acc_ref, *, activation):
    """Tiled matmul (bf16 MXU inputs, f32 acc) + bias (+gelu) epilogue."""
    @pl.when(pl.program_id(2) == 0)
    def _():
        acc_ref[...] = jnp.zeros_like(acc_ref)

    acc_ref[...] += jnp.dot(x_ref[...], w_ref[...],
                            preferred_element_type=jnp.float32)

    @pl.when(pl.program_id(2) == pl.num_programs(2) - 1)
    def _():
        y = acc_ref[...] + b_ref[...].astype(jnp.float32)
        if activation == "gelu":
            # TODO(synk): HF/PyTorch BERT default "gelu" is the exact erf form;
            # tanh approximation used here for robust TPU lowering.
            y = jax.nn.gelu(y)
        o_ref[...] = y.astype(o_ref.dtype)


def linear(x, w, b, activation=None, tm=256, tn=256, tk=512):
    """x: [M, K] bf16, w: [K, N] bf16, b: [N] f32 -> [M, N] bf16 (tiled, pipelined)."""
    M, K = x.shape
    N = w.shape[1]
    tm = _pick_tile(M, tm)
    tn = _pick_tile(N, tn)
    tk = _pick_tile(K, tk)
    return pl.pallas_call(
        functools.partial(_matmul_kernel, activation=activation),
        out_shape=jax.ShapeDtypeStruct((M, N), x.dtype),
        grid=(M // tm, N // tn, K // tk),
        in_specs=[
            pl.BlockSpec((tm, tk), lambda i, j, k: (i, k)),
            pl.BlockSpec((tk, tn), lambda i, j, k: (k, j)),
            pl.BlockSpec((1, tn), lambda i, j, k: (0, j)),
        ],
        out_specs=pl.BlockSpec((tm, tn), lambda i, j, k: (i, j)),
        scratch_shapes=[pltpu.VMEM((tm, tn), jnp.float32)],
        compiler_params=pltpu.CompilerParams(
            dimension_semantics=("parallel", "parallel", "arbitrary")),
    )(x, w, b.reshape(1, N).astype(jnp.float32))


def _matmul_res_ln_kernel(x_ref, w_ref, b_ref, res_ref, g_ref, beta_ref,
                          o_ref, acc_ref, *, eps):
    """Tiled matmul + bias + residual add + LayerNorm fused epilogue."""
    @pl.when(pl.program_id(1) == 0)
    def _():
        acc_ref[...] = jnp.zeros_like(acc_ref)

    acc_ref[...] += jnp.dot(x_ref[...], w_ref[...],
                            preferred_element_type=jnp.float32)

    @pl.when(pl.program_id(1) == pl.num_programs(1) - 1)
    def _():
        y = (acc_ref[...] + b_ref[...].astype(jnp.float32)
             + res_ref[...].astype(jnp.float32))
        mu = jnp.mean(y, axis=-1, keepdims=True)
        var = jnp.mean(jnp.square(y - mu), axis=-1, keepdims=True)
        yn = (y - mu) * jax.lax.rsqrt(var + eps)
        o_ref[...] = (yn * g_ref[...].astype(jnp.float32)
                      + beta_ref[...].astype(jnp.float32)).astype(o_ref.dtype)


def linear_res_ln(x, w, b, residual, g, beta, eps=1e-12, tm=256, tk=512):
    """y = LayerNorm(x @ w + b + residual); N is kept untiled (needed for LN)."""
    M, K = x.shape
    N = w.shape[1]
    tm = _pick_tile(M, tm)
    tk = _pick_tile(K, tk)
    return pl.pallas_call(
        functools.partial(_matmul_res_ln_kernel, eps=eps),
        out_shape=jax.ShapeDtypeStruct((M, N), x.dtype),
        grid=(M // tm, K // tk),
        in_specs=[
            pl.BlockSpec((tm, tk), lambda i, k: (i, k)),
            pl.BlockSpec((tk, N), lambda i, k: (k, 0)),
            pl.BlockSpec((1, N), lambda i, k: (0, 0)),
            pl.BlockSpec((tm, N), lambda i, k: (i, 0)),
            pl.BlockSpec((1, N), lambda i, k: (0, 0)),
            pl.BlockSpec((1, N), lambda i, k: (0, 0)),
        ],
        out_specs=pl.BlockSpec((tm, N), lambda i, k: (i, 0)),
        scratch_shapes=[pltpu.VMEM((tm, N), jnp.float32)],
        compiler_params=pltpu.CompilerParams(
            dimension_semantics=("parallel", "arbitrary")),
    )(x, w, b.reshape(1, N).astype(jnp.float32), residual,
      g.reshape(1, N).astype(jnp.float32), beta.reshape(1, N).astype(jnp.float32))


def _layernorm_kernel(x_ref, g_ref, b_ref, o_ref, *, eps):
    x = x_ref[...].astype(jnp.float32)
    mu = jnp.mean(x, axis=-1, keepdims=True)
    var = jnp.mean(jnp.square(x - mu), axis=-1, keepdims=True)
    y = (x - mu) * jax.lax.rsqrt(var + eps)
    o_ref[...] = (y * g_ref[...].astype(jnp.float32)
                  + b_ref[...].astype(jnp.float32)).astype(o_ref.dtype)


def layernorm(x, g, b, eps=1e-12, tm=512):
    """Row-tiled LayerNorm over the last dim of [M, N]."""
    M, N = x.shape
    tm = _pick_tile(M, tm)
    return pl.pallas_call(
        functools.partial(_layernorm_kernel, eps=eps),
        out_shape=jax.ShapeDtypeStruct((M, N), x.dtype),
        grid=(M // tm,),
        in_specs=[
            pl.BlockSpec((tm, N), lambda i: (i, 0)),
            pl.BlockSpec((1, N), lambda i: (0, 0)),
            pl.BlockSpec((1, N), lambda i: (0, 0)),
        ],
        out_specs=pl.BlockSpec((tm, N), lambda i: (i, 0)),
        compiler_params=pltpu.CompilerParams(dimension_semantics=("parallel",)),
    )(x, g.reshape(1, N).astype(jnp.float32), b.reshape(1, N).astype(jnp.float32))


def _fused_attn_kernel(qkv_ref, bias_ref, o_ref, *, num_heads, scale):
    """All heads of one batch per grid step; head split/merge done in-kernel.

    qkv_ref: [1, S, 3H] packed (q|k|v), bias_ref: [1, 1, S] additive key mask,
    o_ref:   [1, S, H] merged (lane-dense) context output.
    """
    qkv = qkv_ref[0]                              # [S, 3H] bf16
    bias = bias_ref[0]                            # [1, S]  f32
    H = qkv.shape[1] // 3
    Dh = H // num_heads
    for h in range(num_heads):                    # static unroll over heads
        q = qkv[:, h * Dh:(h + 1) * Dh] * scale            # scale folded into q
        k = qkv[:, H + h * Dh:H + (h + 1) * Dh]
        v = qkv[:, 2 * H + h * Dh:2 * H + (h + 1) * Dh]
        # q @ k^T via dot_general (no materialized transpose), f32 accumulation.
        s = jax.lax.dot_general(q, k, (((1,), (1,)), ((), ())),
                                preferred_element_type=jnp.float32) + bias
        s = s - jnp.max(s, axis=-1, keepdims=True)
        p = jnp.exp(s)
        p = p * pl.reciprocal(jnp.sum(p, axis=-1, keepdims=True), approx=True)
        ctx = jnp.dot(p.astype(v.dtype), v, preferred_element_type=jnp.float32)
        o_ref[0, :, h * Dh:(h + 1) * Dh] = ctx.astype(o_ref.dtype)


def fused_mha(qkv, bias, num_heads):
    """qkv: [B, S, 3H] packed; bias: [B, 1, S] additive mask -> [B, S, H]."""
    B, S, E3 = qkv.shape
    H = E3 // 3
    Dh = H // num_heads
    scale = 1.0 / (Dh ** 0.5)
    return pl.pallas_call(
        functools.partial(_fused_attn_kernel, num_heads=num_heads, scale=scale),
        out_shape=jax.ShapeDtypeStruct((B, S, H), qkv.dtype),
        grid=(B,),
        in_specs=[
            pl.BlockSpec((1, S, E3), lambda i: (i, 0, 0)),
            pl.BlockSpec((1, 1, S), lambda i: (i, 0, 0)),
        ],
        out_specs=pl.BlockSpec((1, S, H), lambda i: (i, 0, 0)),
        compiler_params=pltpu.CompilerParams(dimension_semantics=("parallel",)),
    )(qkv, bias)


# ----------------------------------------------------------------------------
# Parameter initialization (deterministic, synthetic)
# ----------------------------------------------------------------------------
def _n(key, shape, std=0.02):
    return jax.random.normal(key, shape, jnp.float32) * std


def init_bert_params(key, vocab, max_pos, hidden, intermediate):
    ks = jax.random.split(key, 9)
    wq = _n(ks[3], (hidden, hidden))
    wk = _n(ks[4], (hidden, hidden))
    wv = _n(ks[5], (hidden, hidden))
    return dict(
        word_emb=_n(ks[0], (vocab, hidden)),
        pos_emb=_n(ks[1], (max_pos, hidden)),
        type_emb=_n(ks[2], (2, hidden)),
        emb_ln_g=jnp.ones((hidden,), jnp.float32),
        emb_ln_b=jnp.zeros((hidden,), jnp.float32),
        # Fused QKV weight [H, 3H] (q|k|v columns), stored bf16 for the MXU.
        wqkv=jnp.concatenate([wq, wk, wv], axis=1).astype(jnp.bfloat16),
        bqkv=jnp.zeros((3 * hidden,), jnp.float32),
        wo=_n(ks[6], (hidden, hidden)).astype(jnp.bfloat16),
        bo=jnp.zeros((hidden,), jnp.float32),
        attn_ln_g=jnp.ones((hidden,), jnp.float32),
        attn_ln_b=jnp.zeros((hidden,), jnp.float32),
        w1=_n(ks[7], (hidden, intermediate)).astype(jnp.bfloat16),
        b1=jnp.zeros((intermediate,), jnp.float32),
        w2=_n(ks[8], (intermediate, hidden)).astype(jnp.bfloat16),
        b2=jnp.zeros((hidden,), jnp.float32),
        ffn_ln_g=jnp.ones((hidden,), jnp.float32),
        ffn_ln_b=jnp.zeros((hidden,), jnp.float32),
    )


def init_fusion_params(key, embed_dim):
    ks = jax.random.split(key, 2)
    in_proj_w = _n(ks[0], (3 * embed_dim, embed_dim))   # PyTorch layout [3E, E]
    out_proj_w = _n(ks[1], (embed_dim, embed_dim))      # PyTorch layout [E, E]
    # Pre-transpose once at init (no per-forward .T relayouts).
    return dict(
        wqkv=jnp.asarray(in_proj_w.T, jnp.bfloat16),    # [E, 3E] (q|k|v columns)
        bqkv=jnp.zeros((3 * embed_dim,), jnp.float32),
        wo=jnp.asarray(out_proj_w.T, jnp.bfloat16),     # [E, E]
        bo=jnp.zeros((embed_dim,), jnp.float32),
    )


# ----------------------------------------------------------------------------
# Model forward (glue in plain JAX, hot paths in Pallas kernels)
# ----------------------------------------------------------------------------
def bert_encode(params, input_ids, attention_mask, num_heads):
    B, S = input_ids.shape
    H = params["word_emb"].shape[1]

    # Embedding gather (glue) + row-tiled in-kernel LayerNorm.
    x = (params["word_emb"][input_ids]
         + params["pos_emb"][:S][None, :, :]
         + params["type_emb"][0][None, None, :])
    xf = layernorm(x.reshape(B * S, H).astype(jnp.bfloat16),
                   params["emb_ln_g"], params["emb_ln_b"])

    # Fused QKV projection + fully fused multi-head attention.
    qkv = linear(xf, params["wqkv"], params["bqkv"])                  # [B*S, 3H]
    bias = (1.0 - attention_mask.astype(jnp.float32))[:, None, :] * -1e9  # [B,1,S]
    ctx = fused_mha(qkv.reshape(B, S, 3 * H), bias, num_heads)        # [B, S, H]

    # Output projection + residual + LayerNorm fused in one kernel.
    x1 = linear_res_ln(ctx.reshape(B * S, H), params["wo"], params["bo"],
                       residual=xf, g=params["attn_ln_g"], beta=params["attn_ln_b"])

    # Feed-forward (gelu fused in epilogue) + residual + LayerNorm fused.
    h = linear(x1, params["w1"], params["b1"], activation="gelu")
    x2 = linear_res_ln(h, params["w2"], params["b2"],
                       residual=x1, g=params["ffn_ln_g"], beta=params["ffn_ln_b"])
    return x2.reshape(B, S, H)


def fusion_attention(params, x, attention_mask, num_heads):
    """PyTorch nn.MultiheadAttention(2H, num_heads=2, batch_first=True) self-attention."""
    B, S, E = x.shape
    xf = x.reshape(B * S, E)
    qkv = linear(xf, params["wqkv"], params["bqkv"])                  # [B*S, 3E]
    bias = (1.0 - attention_mask.astype(jnp.float32))[:, None, :] * -1e9  # key padding mask
    ctx = fused_mha(qkv.reshape(B, S, 3 * E), bias, num_heads)        # [B, S, E]
    out = linear(ctx.reshape(B * S, E), params["wo"], params["bo"])
    return out.reshape(B, S, E)


def bertdot_dual_fullfuse_forward(paramsQ, paramsD, fusion_params,
                                  input_ids, attention_mask, num_heads):
    out1 = bert_encode(paramsQ, input_ids, attention_mask, num_heads)   # [B,S,H]
    out2 = bert_encode(paramsD, input_ids, attention_mask, num_heads)   # [B,S,H]
    fused = jnp.concatenate([out1, out2], axis=-1)                      # [B,S,2H]
    # TODO(synk): original forward calls `self.fusion()` with no arguments
    # (incomplete source); interpreted here as self-attention fusion over the
    # concatenated hidden states with attention_mask as key-padding mask.
    out = fusion_attention(fusion_params, fused, attention_mask, num_heads=2)
    return out.astype(jnp.float32)


# ----------------------------------------------------------------------------
# Main
# ----------------------------------------------------------------------------
if __name__ == "__main__":
    B, S = 2, 8
    VOCAB, MAX_POS = 50, 16
    HIDDEN, NUM_HEADS, INTERMEDIATE = 32, 2, 64

    root = jax.random.PRNGKey(0)
    kQ, kD, kF, kIds = jax.random.split(root, 4)

    paramsQ = init_bert_params(kQ, VOCAB, MAX_POS, HIDDEN, INTERMEDIATE)
    paramsD = init_bert_params(kD, VOCAB, MAX_POS, HIDDEN, INTERMEDIATE)
    fusion_params = init_fusion_params(kF, 2 * HIDDEN)

    input_ids = jax.random.randint(kIds, (B, S), 0, VOCAB, dtype=jnp.int32)
    attention_mask = jnp.array(
        [[1, 1, 1, 1, 1, 1, 1, 1],
         [1, 1, 1, 1, 1, 0, 0, 0]], dtype=jnp.int32)

    fwd = jax.jit(bertdot_dual_fullfuse_forward, static_argnums=(5,))
    out = fwd(paramsQ, paramsD, fusion_params, input_ids, attention_mask, NUM_HEADS)
    out = jax.block_until_ready(out)
    assert out.shape == (B, S, 2 * HIDDEN), out.shape
    assert bool(jnp.all(jnp.isfinite(out)))
    print("KERNEL_OK")
</pallas_src>

<mosaic_0001>
module attributes {stable_mosaic.version = 11 : i64} {
  func.func @_matmul_kernel(%arg0: i32, %arg1: i32, %arg2: i32, %arg3: memref<16x32xbf16, #tpu.memory_space<vmem>>, %arg4: memref<32x96xbf16, #tpu.memory_space<vmem>>, %arg5: memref<1x96xf32, #tpu.memory_space<vmem>>, %arg6: memref<16x96xbf16, #tpu.memory_space<vmem>>, %arg7: memref<16x96xf32, #tpu.memory_space<vmem>>) attributes {dimension_semantics = [#tpu.dimension_semantics<parallel>, #tpu.dimension_semantics<parallel>, #tpu.dimension_semantics<arbitrary>], iteration_bounds = array<i64: 1, 1, 1>, scalar_prefetch = 0 : i64, scratch_operands = 1 : i64, tpu.core_type = #tpu.core_type<tc>, window_params = [{transform_indices = @transform_0, window_bounds = array<i64: 16, 32>}, {transform_indices = @transform_1, window_bounds = array<i64: 32, 96>}, {transform_indices = @transform_2, window_bounds = array<i64: 1, 96>}, {transform_indices = @transform_3, window_bounds = array<i64: 16, 96>}]} {
    %c0_i32 = arith.constant 0 : i32
    %0 = arith.cmpi eq, %arg2, %c0_i32 : i32
    %1 = arith.extui %0 : i1 to i32
    %c0_i32_0 = arith.constant 0 : i32
    %2 = arith.cmpi ne, %1, %c0_i32_0 : i32
    scf.if %2 {
      %cst_10 = arith.constant 0.000000e+00 : f32
      %12 = vector.broadcast %cst_10 : f32 to vector<16x96xf32>
      %c0_11 = arith.constant 0 : index
      %c0_12 = arith.constant 0 : index
      %13 = vector.load %arg7[%c0_11, %c0_12] : memref<16x96xf32, #tpu.memory_space<vmem>>, vector<16x96xf32>
      tpu.vector_store %arg7[%c0_11, %c0_12], %12 {strides = array<i32>} : memref<16x96xf32, #tpu.memory_space<vmem>>, vector<16x96xf32>,
    } else {
    }
    %c0 = arith.constant 0 : index
    %c0_1 = arith.constant 0 : index
    %3 = vector.load %arg7[%c0, %c0_1] : memref<16x96xf32, #tpu.memory_space<vmem>>, vector<16x96xf32>
    %c0_2 = arith.constant 0 : index
    %c0_3 = arith.constant 0 : index
    %4 = vector.load %arg3[%c0_2, %c0_3] : memref<16x32xbf16, #tpu.memory_space<vmem>>, vector<16x32xbf16>
    %c0_4 = arith.constant 0 : index
    %c0_5 = arith.constant 0 : index
    %5 = vector.load %arg4[%c0_4, %c0_5] : memref<32x96xbf16, #tpu.memory_space<vmem>>, vector<32x96xbf16>
    %cst = arith.constant dense<0.000000e+00> : vector<16x96xf32>
    %6 = tpu.matmul %4, %5, %cst {dimension_numbers = #tpu.dot_dimension_numbers<[1], [0], [0], [1], [0, 0, 1, 1], [], []>} : vector<16x32xbf16>, vector<32x96xbf16>, vector<16x96xf32> -> vector<16x96xf32>
    %7 = arith.addf %3, %6 : vector<16x96xf32>
    %c0_6 = arith.constant 0 : index
    %c0_7 = arith.constant 0 : index
    %8 = vector.load %arg7[%c0_6, %c0_7] : memref<16x96xf32, #tpu.memory_space<vmem>>, vector<16x96xf32>
    tpu.vector_store %arg7[%c0_6, %c0_7], %7 {strides = array<i32>} : memref<16x96xf32, #tpu.memory_space<vmem>>, vector<16x96xf32>,
    %c0_i32_8 = arith.constant 0 : i32
    %9 = arith.cmpi eq, %arg2, %c0_i32_8 : i32
    %10 = arith.extui %9 : i1 to i32
    %c0_i32_9 = arith.constant 0 : i32
    %11 = arith.cmpi ne, %10, %c0_i32_9 : i32
    scf.if %11 {
      %c0_10 = arith.constant 0 : index
      %c0_11 = arith.constant 0 : index
      %12 = vector.load %arg7[%c0_10, %c0_11] : memref<16x96xf32, #tpu.memory_space<vmem>>, vector<16x96xf32>
      %c0_12 = arith.constant 0 : index
      %c0_13 = arith.constant 0 : index
      %13 = vector.load %arg5[%c0_12, %c0_13] : memref<1x96xf32, #tpu.memory_space<vmem>>, vector<1x96xf32>
      %14 = vector.broadcast %13 : vector<1x96xf32> to vector<16x96xf32>
      %15 = arith.addf %12, %14 : vector<16x96xf32>
      %16 = arith.truncf %15 : vector<16x96xf32> to vector<16x96xbf16>
      %c0_14 = arith.constant 0 : index
      %c0_15 = arith.constant 0 : index
      %17 = vector.load %arg6[%c0_14, %c0_15] : memref<16x96xbf16, #tpu.memory_space<vmem>>, vector<16x96xbf16>
      tpu.vector_store %arg6[%c0_14, %c0_15], %16 {strides = array<i32>} : memref<16x96xbf16, #tpu.memory_space<vmem>>, vector<16x96xbf16>,
    } else {
    }
    return
  }
  func.func @transform_0(%arg0: i32, %arg1: i32, %arg2: i32) -> (i32, i32) {
    %c0_i32 = arith.constant 0 : i32
    return %arg0, %arg2 : i32, i32
  }
  func.func @transform_1(%arg0: i32, %arg1: i32, %arg2: i32) -> (i32, i32) {
    %c0_i32 = arith.constant 0 : i32
    return %arg2, %arg1 : i32, i32
  }
  func.func @transform_2(%arg0: i32, %arg1: i32, %arg2: i32) -> (i32, i32) {
    %c0_i32 = arith.constant 0 : i32
    %c0_i32_0 = arith.constant 0 : i32
    return %c0_i32, %arg1 : i32, i32
  }
  func.func @transform_3(%arg0: i32, %arg1: i32, %arg2: i32) -> (i32, i32) {
    %c0_i32 = arith.constant 0 : i32
    return %arg0, %arg1 : i32, i32
  }
}

module attributes {stable_mosaic.version = 11 : i64} {
  func.func @_matmul_res_ln_kernel(%arg0: i32, %arg1: i32, %arg2: memref<16x32xbf16, #tpu.memory_space<vmem>>, %arg3: memref<32x32xbf16, #tpu.memory_space<vmem>>, %arg4: memref<1x32xf32, #tpu.memory_space<vmem>>, %arg5: memref<16x32xbf16, #tpu.memory_space<vmem>>, %arg6: memref<1x32xf32, #tpu.memory_space<vmem>>, %arg7: memref<1x32xf32, #tpu.memory_space<vmem>>, %arg8: memref<16x32xbf16, #tpu.memory_space<vmem>>, %arg9: memref<16x32xf32, #tpu.memory_space<vmem>>) attributes {dimension_semantics = [#tpu.dimension_semantics<parallel>, #tpu.dimension_semantics<arbitrary>], iteration_bounds = array<i64: 1, 1>, scalar_prefetch = 0 : i64, scratch_operands = 1 : i64, tpu.core_type = #tpu.core_type<tc>, window_params = [{transform_indices = @transform_0, window_bounds = array<i64: 16, 32>}, {transform_indices = @transform_1, window_bounds = array<i64: 32, 32>}, {pipeline_mode = #tpu.pipeline_mode<synchronous>, transform_indices = @transform_2, window_bounds = array<i64: 1, 32>}, {transform_indices = @transform_3, window_bounds = array<i64: 16, 32>}, {pipeline_mode = #tpu.pipeline_mode<synchronous>, transform_indices = @transform_4, window_bounds = array<i64: 1, 32>}, {pipeline_mode = #tpu.pipeline_mode<synchronous>, transform_indices = @transform_5, window_bounds = array<i64: 1, 32>}, {transform_indices = @transform_6, window_bounds = array<i64: 16, 32>}]} {
    %c0_i32 = arith.constant 0 : i32
    %0 = arith.cmpi eq, %arg1, %c0_i32 : i32
    %1 = arith.extui %0 : i1 to i32
    %c0_i32_0 = arith.constant 0 : i32
    %2 = arith.cmpi ne, %1, %c0_i32_0 : i32
    scf.if %2 {
      %cst_10 = arith.constant 0.000000e+00 : f32
      %12 = vector.broadcast %cst_10 : f32 to vector<16x32xf32>
      %c0_11 = arith.constant 0 : index
      %c0_12 = arith.constant 0 : index
      %13 = vector.load %arg9[%c0_11, %c0_12] : memref<16x32xf32, #tpu.memory_space<vmem>>, vector<16x32xf32>
      tpu.vector_store %arg9[%c0_11, %c0_12], %12 {strides = array<i32>} : memref<16x32xf32, #tpu.memory_space<vmem>>, vector<16x32xf32>,
    } else {
    }
    %c0 = arith.constant 0 : index
    %c0_1 = arith.constant 0 : index
    %3 = vector.load %arg9[%c0, %c0_1] : memref<16x32xf32, #tpu.memory_space<vmem>>, vector<16x32xf32>
    %c0_2 = arith.constant 0 : index
    %c0_3 = arith.constant 0 : index
    %4 = vector.load %arg2[%c0_2, %c0_3] : memref<16x32xbf16, #tpu.memory_space<vmem>>, vector<16x32xbf16>
    %c0_4 = arith.constant 0 : index
    %c0_5 = arith.constant 0 : index
    %5 = vector.load %arg3[%c0_4, %c0_5] : memref<32x32xbf16, #tpu.memory_space<vmem>>, vector<32x32xbf16>
    %cst = arith.constant dense<0.000000e+00> : vector<16x32xf32>
    %6 = tpu.matmul %4, %5, %cst {dimension_numbers = #tpu.dot_dimension_numbers<[1], [0], [0], [1], [0, 0, 1, 1], [], []>} : vector<16x32xbf16>, vector<32x32xbf16>, vector<16x32xf32> -> vector<16x32xf32>
    %7 = arith.addf %3, %6 : vector<16x32xf32>
    %c0_6 = arith.constant 0 : index
    %c0_7 = arith.constant 0 : index
    %8 = vector.load %arg9[%c0_6, %c0_7] : memref<16x32xf32, #tpu.memory_space<vmem>>, vector<16x32xf32>
    tpu.vector_store %arg9[%c0_6, %c0_7], %7 {strides = array<i32>} : memref<16x32xf32, #tpu.memory_space<vmem>>, vector<16x32xf32>,
    %c0_i32_8 = arith.constant 0 : i32
    %9 = arith.cmpi eq, %arg1, %c0_i32_8 : i32
    %10 = arith.extui %9 : i1 to i32
    %c0_i32_9 = arith.constant 0 : i32
    %11 = arith.cmpi ne, %10, %c0_i32_9 : i32
    scf.if %11 {
      %c0_10 = arith.constant 0 : index
      %c0_11 = arith.constant 0 : index
      %12 = vector.load %arg9[%c0_10, %c0_11] : memref<16x32xf32, #tpu.memory_space<vmem>>, vector<16x32xf32>
      %c0_12 = arith.constant 0 : index
      %c0_13 = arith.constant 0 : index
      %13 = vector.load %arg4[%c0_12, %c0_13] : memref<1x32xf32, #tpu.memory_space<vmem>>, vector<1x32xf32>
      %14 = vector.broadcast %13 : vector<1x32xf32> to vector<16x32xf32>
      %15 = arith.addf %12, %14 : vector<16x32xf32>
      %c0_14 = arith.constant 0 : index
      %c0_15 = arith.constant 0 : index
      %16 = vector.load %arg5[%c0_14, %c0_15] : memref<16x32xbf16, #tpu.memory_space<vmem>>, vector<16x32xbf16>
      %17 = arith.extf %16 : vector<16x32xbf16> to vector<16x32xf32>
      %18 = arith.addf %15, %17 : vector<16x32xf32>
      %cst_16 = arith.constant dense<0.000000e+00> : vector<16xf32>
      %19 = vector.multi_reduction <add>, %18, %cst_16 [1] : vector<16x32xf32> to vector<16xf32>
      %20 = vector.shape_cast %19 : vector<16xf32> to vector<16x1xf32>
      %cst_17 = arith.constant 3.200000e+01 : f32
      %21 = vector.broadcast %cst_17 : f32 to vector<16x1xf32>
      %22 = arith.divf %20, %21 : vector<16x1xf32>
      %23 = vector.broadcast %22 : vector<16x1xf32> to vector<16x32xf32>
      %24 = arith.subf %18, %23 : vector<16x32xf32>
      %25 = arith.mulf %24, %24 : vector<16x32xf32>
      %cst_18 = arith.constant dense<0.000000e+00> : vector<16xf32>
      %26 = vector.multi_reduction <add>, %25, %cst_18 [1] : vector<16x32xf32> to vector<16xf32>
      %27 = vector.shape_cast %26 : vector<16xf32> to vector<16x1xf32>
      %cst_19 = arith.constant 3.200000e+01 : f32
      %28 = vector.broadcast %cst_19 : f32 to vector<16x1xf32>
      %29 = arith.divf %27, %28 : vector<16x1xf32>
      %30 = vector.broadcast %22 : vector<16x1xf32> to vector<16x32xf32>
      %31 = arith.subf %18, %30 : vector<16x32xf32>
      %cst_20 = arith.constant 9.99999996E-13 : f32
      %32 = vector.broadcast %cst_20 : f32 to vector<16x1xf32>
      %33 = arith.addf %29, %32 : vector<16x1xf32>
      %34 = math.rsqrt %33 : vector<16x1xf32>
      %35 = vector.broadcast %34 : vector<16x1xf32> to vector<16x32xf32>
      %36 = arith.mulf %31, %35 : vector<16x32xf32>
      %c0_21 = arith.constant 0 : index
      %c0_22 = arith.constant 0 : index
      %37 = vector.load %arg6[%c0_21, %c0_22] : memref<1x32xf32, #tpu.memory_space<vmem>>, vector<1x32xf32>
      %38 = vector.broadcast %37 : vector<1x32xf32> to vector<16x32xf32>
      %39 = arith.mulf %36, %38 : vector<16x32xf32>
      %c0_23 = arith.constant 0 : index
      %c0_24 = arith.constant 0 : index
      %40 = vector.load %arg7[%c0_23, %c0_24] : memref<1x32xf32, #tpu.memory_space<vmem>>, vector<1x32xf32>
      %41 = vector.broadcast %40 : vector<1x32xf32> to vector<16x32xf32>
      %42 = arith.addf %39, %41 : vector<16x32xf32>
      %43 = arith.truncf %42 : vector<16x32xf32> to vector<16x32xbf16>
      %c0_25 = arith.constant 0 : index
      %c0_26 = arith.constant 0 : index
      %44 = vector.load %arg8[%c0_25, %c0_26] : memref<16x32xbf16, #tpu.memory_space<vmem>>, vector<16x32xbf16>
      tpu.vector_store %arg8[%c0_25, %c0_26], %43 {strides = array<i32>} : memref<16x32xbf16, #tpu.memory_space<vmem>>, vector<16x32xbf16>,
    } else {
    }
    return
  }
  func.func @transform_0(%arg0: i32, %arg1: i32) -> (i32, i32) {
    %c0_i32 = arith.constant 0 : i32
    return %arg0, %arg1 : i32, i32
  }
  func.func @transform_1(%arg0: i32, %arg1: i32) -> (i32, i32) {
    %c0_i32 = arith.constant 0 : i32
    %c0_i32_0 = arith.constant 0 : i32
    return %arg1, %c0_i32 : i32, i32
  }
  func.func @transform_2(%arg0: i32, %arg1: i32) -> (i32, i32) {
    %c0_i32 = arith.constant 0 : i32
    %c0_i32_0 = arith.constant 0 : i32
    %c0_i32_1 = arith.constant 0 : i32
    return %c0_i32, %c0_i32_0 : i32, i32
  }
  func.func @transform_3(%arg0: i32, %arg1: i32) -> (i32, i32) {
    %c0_i32 = arith.constant 0 : i32
    %c0_i32_0 = arith.constant 0 : i32
    return %arg0, %c0_i32 : i32, i32
  }
  func.func @transform_4(%arg0: i32, %arg1: i32) -> (i32, i32) {
    %c0_i32 = arith.constant 0 : i32
    %c0_i32_0 = arith.constant 0 : i32
    %c0_i32_1 = arith.constant 0 : i32
    return %c0_i32, %c0_i32_0 : i32, i32
  }
  func.func @transform_5(%arg0: i32, %arg1: i32) -> (i32, i32) {
    %c0_i32 = arith.constant 0 : i32
    %c0_i32_0 = arith.constant 0 : i32
    %c0_i32_1 = arith.constant 0 : i32
    return %c0_i32, %c0_i32_0 : i32, i32
  }
  func.func @transform_6(%arg0: i32, %arg1: i32) -> (i32, i32) {
    %c0_i32 = arith.constant 0 : i32
    %c0_i32_0 = arith.constant 0 : i32
    return %arg0, %c0_i32 : i32, i32
  }
}

module attributes {stable_mosaic.version = 11 : i64} {
  func.func @_layernorm_kernel(%arg0: i32, %arg1: memref<16x32xbf16, #tpu.memory_space<vmem>>, %arg2: memref<1x32xf32, #tpu.memory_space<vmem>>, %arg3: memref<1x32xf32, #tpu.memory_space<vmem>>, %arg4: memref<16x32xbf16, #tpu.memory_space<vmem>>) attributes {dimension_semantics = [#tpu.dimension_semantics<parallel>], iteration_bounds = array<i64: 1>, scalar_prefetch = 0 : i64, scratch_operands = 0 : i64, tpu.core_type = #tpu.core_type<tc>, window_params = [{transform_indices = @transform_0, window_bounds = array<i64: 16, 32>}, {pipeline_mode = #tpu.pipeline_mode<synchronous>, transform_indices = @transform_1, window_bounds = array<i64: 1, 32>}, {pipeline_mode = #tpu.pipeline_mode<synchronous>, transform_indices = @transform_2, window_bounds = array<i64: 1, 32>}, {transform_indices = @transform_3, window_bounds = array<i64: 16, 32>}]} {
    %c0 = arith.constant 0 : index
    %c0_0 = arith.constant 0 : index
    %0 = vector.load %arg1[%c0, %c0_0] : memref<16x32xbf16, #tpu.memory_space<vmem>>, vector<16x32xbf16>
    %1 = arith.extf %0 : vector<16x32xbf16> to vector<16x32xf32>
    %cst = arith.constant dense<0.000000e+00> : vector<16xf32>
    %2 = vector.multi_reduction <add>, %1, %cst [1] : vector<16x32xf32> to vector<16xf32>
    %3 = vector.shape_cast %2 : vector<16xf32> to vector<16x1xf32>
    %cst_1 = arith.constant 3.200000e+01 : f32
    %4 = vector.broadcast %cst_1 : f32 to vector<16x1xf32>
    %5 = arith.divf %3, %4 : vector<16x1xf32>
    %6 = vector.broadcast %5 : vector<16x1xf32> to vector<16x32xf32>
    %7 = arith.subf %1, %6 : vector<16x32xf32>
    %8 = arith.mulf %7, %7 : vector<16x32xf32>
    %cst_2 = arith.constant dense<0.000000e+00> : vector<16xf32>
    %9 = vector.multi_reduction <add>, %8, %cst_2 [1] : vector<16x32xf32> to vector<16xf32>
    %10 = vector.shape_cast %9 : vector<16xf32> to vector<16x1xf32>
    %cst_3 = arith.constant 3.200000e+01 : f32
    %11 = vector.broadcast %cst_3 : f32 to vector<16x1xf32>
    %12 = arith.divf %10, %11 : vector<16x1xf32>
    %13 = vector.broadcast %5 : vector<16x1xf32> to vector<16x32xf32>
    %14 = arith.subf %1, %13 : vector<16x32xf32>
    %cst_4 = arith.constant 9.99999996E-13 : f32
    %15 = vector.broadcast %cst_4 : f32 to vector<16x1xf32>
    %16 = arith.addf %12, %15 : vector<16x1xf32>
    %17 = math.rsqrt %16 : vector<16x1xf32>
    %18 = vector.broadcast %17 : vector<16x1xf32> to vector<16x32xf32>
    %19 = arith.mulf %14, %18 : vector<16x32xf32>
    %c0_5 = arith.constant 0 : index
    %c0_6 = arith.constant 0 : index
    %20 = vector.load %arg2[%c0_5, %c0_6] : memref<1x32xf32, #tpu.memory_space<vmem>>, vector<1x32xf32>
    %21 = vector.broadcast %20 : vector<1x32xf32> to vector<16x32xf32>
    %22 = arith.mulf %19, %21 : vector<16x32xf32>
    %c0_7 = arith.constant 0 : index
    %c0_8 = arith.constant 0 : index
    %23 = vector.load %arg3[%c0_7, %c0_8] : memref<1x32xf32, #tpu.memory_space<vmem>>, vector<1x32xf32>
    %24 = vector.broadcast %23 : vector<1x32xf32> to vector<16x32xf32>
    %25 = arith.addf %22, %24 : vector<16x32xf32>
    %26 = arith.truncf %25 : vector<16x32xf32> to vector<16x32xbf16>
    %c0_9 = arith.constant 0 : index
    %c0_10 = arith.constant 0 : index
    %27 = vector.load %arg4[%c0_9, %c0_10] : memref<16x32xbf16, #tpu.memory_space<vmem>>, vector<16x32xbf16>
    tpu.vector_store %arg4[%c0_9, %c0_10], %26 {strides = array<i32>} : memref<16x32xbf16, #tpu.memory_space<vmem>>, vector<16x32xbf16>,
    return
  }
  func.func @transform_0(%arg0: i32) -> (i32, i32) {
    %c0_i32 = arith.constant 0 : i32
    %c0_i32_0 = arith.constant 0 : i32
    return %arg0, %c0_i32 : i32, i32
  }
  func.func @transform_1(%arg0: i32) -> (i32, i32) {
    %c0_i32 = arith.constant 0 : i32
    %c0_i32_0 = arith.constant 0 : i32
    %c0_i32_1 = arith.constant 0 : i32
    return %c0_i32, %c0_i32_0 : i32, i32
  }
  func.func @transform_2(%arg0: i32) -> (i32, i32) {
    %c0_i32 = arith.constant 0 : i32
    %c0_i32_0 = arith.constant 0 : i32
    %c0_i32_1 = arith.constant 0 : i32
    return %c0_i32, %c0_i32_0 : i32, i32
  }
  func.func @transform_3(%arg0: i32) -> (i32, i32) {
    %c0_i32 = arith.constant 0 : i32
    %c0_i32_0 = arith.constant 0 : i32
    return %arg0, %c0_i32 : i32, i32
  }
}

module attributes {stable_mosaic.version = 11 : i64} {
  func.func @_fused_attn_kernel(%arg0: i32, %arg1: memref<1x8x96xbf16, #tpu.memory_space<vmem>>, %arg2: memref<1x1x8xf32, #tpu.memory_space<vmem>>, %arg3: memref<1x8x32xbf16, #tpu.memory_space<vmem>>) attributes {dimension_semantics = [#tpu.dimension_semantics<parallel>], iteration_bounds = array<i64: 2>, scalar_prefetch = 0 : i64, scratch_operands = 0 : i64, tpu.core_type = #tpu.core_type<tc>, window_params = [{transform_indices = @transform_0, window_bounds = array<i64: 1, 8, 96>}, {transform_indices = @transform_1, window_bounds = array<i64: 1, 1, 8>}, {transform_indices = @transform_2, window_bounds = array<i64: 1, 8, 32>}]} {
    %c0 = arith.constant 0 : index
    %c0_0 = arith.constant 0 : index
    %c0_1 = arith.constant 0 : index
    %0 = vector.load %arg1[%c0, %c0_0, %c0_1] : memref<1x8x96xbf16, #tpu.memory_space<vmem>>, vector<1x8x96xbf16>
    %1 = vector.shape_cast %0 : vector<1x8x96xbf16> to vector<8x96xbf16>
    %c0_2 = arith.constant 0 : index
    %c0_3 = arith.constant 0 : index
    %c0_4 = arith.constant 0 : index
    %2 = vector.load %arg2[%c0_2, %c0_3, %c0_4] : memref<1x1x8xf32, #tpu.memory_space<vmem>>, vector<1x1x8xf32>
    %3 = vector.shape_cast %2 : vector<1x1x8xf32> to vector<1x8xf32>
    %4 = vector.extract_strided_slice %1 {offsets = [0, 0], sizes = [8, 16], strides = [1, 1]} : vector<8x96xbf16> to vector<8x16xbf16>
    %cst = arith.constant 2.500000e-01 : bf16
    %5 = vector.broadcast %cst : bf16 to vector<8x16xbf16>
    %6 = arith.mulf %4, %5 : vector<8x16xbf16>
    %7 = vector.extract_strided_slice %1 {offsets = [0, 32], sizes = [8, 16], strides = [1, 1]} : vector<8x96xbf16> to vector<8x16xbf16>
    %8 = vector.extract_strided_slice %1 {offsets = [0, 64], sizes = [8, 16], strides = [1, 1]} : vector<8x96xbf16> to vector<8x16xbf16>
    %cst_5 = arith.constant dense<0.000000e+00> : vector<8x8xf32>
    %9 = tpu.matmul %6, %7, %cst_5 {dimension_numbers = #tpu.dot_dimension_numbers<[1], [1], [0], [0], [0, 0, 1, 0], [], []>} : vector<8x16xbf16>, vector<8x16xbf16>, vector<8x8xf32> -> vector<8x8xf32>
    %10 = vector.broadcast %3 : vector<1x8xf32> to vector<8x8xf32>
    %11 = arith.addf %9, %10 : vector<8x8xf32>
    %cst_6 = arith.constant dense<0xFF800000> : vector<8xf32>
    %12 = vector.multi_reduction <maximumf>, %11, %cst_6 [1] : vector<8x8xf32> to vector<8xf32>
    %13 = vector.shape_cast %12 : vector<8xf32> to vector<8x1xf32>
    %14 = vector.broadcast %13 : vector<8x1xf32> to vector<8x8xf32>
    %15 = arith.subf %11, %14 : vector<8x8xf32>
    %16 = math.exp %15 : vector<8x8xf32>
    %cst_7 = arith.constant dense<0.000000e+00> : vector<8xf32>
    %17 = vector.multi_reduction <add>, %16, %cst_7 [1] : vector<8x8xf32> to vector<8xf32>
    %18 = vector.shape_cast %17 : vector<8xf32> to vector<8x1xf32>
    %19 = tpu.reciprocal %18 {approx = true} : vector<8x1xf32> -> vector<8x1xf32>
    %20 = vector.broadcast %19 : vector<8x1xf32> to vector<8x8xf32>
    %21 = arith.mulf %16, %20 : vector<8x8xf32>
    %22 = arith.truncf %21 : vector<8x8xf32> to vector<8x8xbf16>
    %cst_8 = arith.constant dense<0.000000e+00> : vector<8x16xf32>
    %23 = tpu.matmul %22, %8, %cst_8 {dimension_numbers = #tpu.dot_dimension_numbers<[1], [0], [0], [1], [0, 0, 1, 1], [], []>} : vector<8x8xbf16>, vector<8x16xbf16>, vector<8x16xf32> -> vector<8x16xf32>
    %24 = arith.truncf %23 : vector<8x16xf32> to vector<8x16xbf16>
    %c0_9 = arith.constant 0 : index
    %c0_10 = arith.constant 0 : index
    %c0_11 = arith.constant 0 : index
    %25 = vector.load %arg3[%c0_9, %c0_10, %c0_11] : memref<1x8x32xbf16, #tpu.memory_space<vmem>>, vector<1x8x16xbf16>
    %26 = vector.shape_cast %25 : vector<1x8x16xbf16> to vector<8x16xbf16>
    %27 = vector.shape_cast %24 : vector<8x16xbf16> to vector<1x8x16xbf16>
    tpu.vector_store %arg3[%c0_9, %c0_10, %c0_11], %27 {strides = array<i32>} : memref<1x8x32xbf16, #tpu.memory_space<vmem>>, vector<1x8x16xbf16>,
    %28 = vector.extract_strided_slice %1 {offsets = [0, 16], sizes = [8, 16], strides = [1, 1]} : vector<8x96xbf16> to vector<8x16xbf16>
    %cst_12 = arith.constant 2.500000e-01 : bf16
    %29 = vector.broadcast %cst_12 : bf16 to vector<8x16xbf16>
    %30 = arith.mulf %28, %29 : vector<8x16xbf16>
    %31 = vector.extract_strided_slice %1 {offsets = [0, 48], sizes = [8, 16], strides = [1, 1]} : vector<8x96xbf16> to vector<8x16xbf16>
    %32 = vector.extract_strided_slice %1 {offsets = [0, 80], sizes = [8, 16], strides = [1, 1]} : vector<8x96xbf16> to vector<8x16xbf16>
    %cst_13 = arith.constant dense<0.000000e+00> : vector<8x8xf32>
    %33 = tpu.matmul %30, %31, %cst_13 {dimension_numbers = #tpu.dot_dimension_numbers<[1], [1], [0], [0], [0, 0, 1, 0], [], []>} : vector<8x16xbf16>, vector<8x16xbf16>, vector<8x8xf32> -> vector<8x8xf32>
    %34 = vector.broadcast %3 : vector<1x8xf32> to vector<8x8xf32>
    %35 = arith.addf %33, %34 : vector<8x8xf32>
    %cst_14 = arith.constant dense<0xFF800000> : vector<8xf32>
    %36 = vector.multi_reduction <maximumf>, %35, %cst_14 [1] : vector<8x8xf32> to vector<8xf32>
    %37 = vector.shape_cast %36 : vector<8xf32> to vector<8x1xf32>
    %38 = vector.broadcast %37 : vector<8x1xf32> to vector<8x8xf32>
    %39 = arith.subf %35, %38 : vector<8x8xf32>
    %40 = math.exp %39 : vector<8x8xf32>
    %cst_15 = arith.constant dense<0.000000e+00> : vector<8xf32>
    %41 = vector.multi_reduction <add>, %40, %cst_15 [1] : vector<8x8xf32> to vector<8xf32>
    %42 = vector.shape_cast %41 : vector<8xf32> to vector<8x1xf32>
    %43 = tpu.reciprocal %42 {approx = true} : vector<8x1xf32> -> vector<8x1xf32>
    %44 = vector.broadcast %43 : vector<8x1xf32> to vector<8x8xf32>
    %45 = arith.mulf %40, %44 : vector<8x8xf32>
    %46 = arith.truncf %45 : vector<8x8xf32> to vector<8x8xbf16>
    %cst_16 = arith.constant dense<0.000000e+00> : vector<8x16xf32>
    %47 = tpu.matmul %46, %32, %cst_16 {dimension_numbers = #tpu.dot_dimension_numbers<[1], [0], [0], [1], [0, 0, 1, 1], [], []>} : vector<8x8xbf16>, vector<8x16xbf16>, vector<8x16xf32> -> vector<8x16xf32>
    %48 = arith.truncf %47 : vector<8x16xf32> to vector<8x16xbf16>
    %c0_17 = arith.constant 0 : index
    %c0_18 = arith.constant 0 : index
    %c16 = arith.constant 16 : index
    %49 = vector.load %arg3[%c0_17, %c0_18, %c16] : memref<1x8x32xbf16, #tpu.memory_space<vmem>>, vector<1x8x16xbf16>
    %50 = vector.shape_cast %49 : vector<1x8x16xbf16> to vector<8x16xbf16>
    %51 = vector.shape_cast %48 : vector<8x16xbf16> to vector<1x8x16xbf16>
    tpu.vector_store %arg3[%c0_17, %c0_18, %c16], %51 {strides = array<i32>} : memref<1x8x32xbf16, #tpu.memory_space<vmem>>, vector<1x8x16xbf16>,
    return
  }
  func.func @transform_0(%arg0: i32) -> (i32, i32, i32) {
    %c0_i32 = arith.constant 0 : i32
    %c0_i32_0 = arith.constant 0 : i32
    %c0_i32_1 = arith.constant 0 : i32
    return %arg0, %c0_i32, %c0_i32_0 : i32, i32, i32
  }
  func.func @transform_1(%arg0: i32) -> (i32, i32, i32) {
    %c0_i32 = arith.constant 0 : i32
    %c0_i32_0 = arith.constant 0 : i32
    %c0_i32_1 = arith.constant 0 : i32
    return %arg0, %c0_i32, %c0_i32_0 : i32, i32, i32
  }
  func.func @transform_2(%arg0: i32) -> (i32, i32, i32) {
    %c0_i32 = arith.constant 0 : i32
    %c0_i32_0 = arith.constant 0 : i32
    %c0_i32_1 = arith.constant 0 : i32
    return %arg0, %c0_i32, %c0_i32_0 : i32, i32, i32
  }
}

module attributes {stable_mosaic.version = 11 : i64} {
  func.func @_matmul_res_ln_kernel(%arg0: i32, %arg1: i32, %arg2: memref<16x64xbf16, #tpu.memory_space<vmem>>, %arg3: memref<64x32xbf16, #tpu.memory_space<vmem>>, %arg4: memref<1x32xf32, #tpu.memory_space<vmem>>, %arg5: memref<16x32xbf16, #tpu.memory_space<vmem>>, %arg6: memref<1x32xf32, #tpu.memory_space<vmem>>, %arg7: memref<1x32xf32, #tpu.memory_space<vmem>>, %arg8: memref<16x32xbf16, #tpu.memory_space<vmem>>, %arg9: memref<16x32xf32, #tpu.memory_space<vmem>>) attributes {dimension_semantics = [#tpu.dimension_semantics<parallel>, #tpu.dimension_semantics<arbitrary>], iteration_bounds = array<i64: 1, 1>, scalar_prefetch = 0 : i64, scratch_operands = 1 : i64, tpu.core_type = #tpu.core_type<tc>, window_params = [{transform_indices = @transform_0, window_bounds = array<i64: 16, 64>}, {transform_indices = @transform_1, window_bounds = array<i64: 64, 32>}, {pipeline_mode = #tpu.pipeline_mode<synchronous>, transform_indices = @transform_2, window_bounds = array<i64: 1, 32>}, {transform_indices = @transform_3, window_bounds = array<i64: 16, 32>}, {pipeline_mode = #tpu.pipeline_mode<synchronous>, transform_indices = @transform_4, window_bounds = array<i64: 1, 32>}, {pipeline_mode = #tpu.pipeline_mode<synchronous>, transform_indices = @transform_5, window_bounds = array<i64: 1, 32>}, {transform_indices = @transform_6, window_bounds = array<i64: 16, 32>}]} {
    %c0_i32 = arith.constant 0 : i32
    %0 = arith.cmpi eq, %arg1, %c0_i32 : i32
    %1 = arith.extui %0 : i1 to i32
    %c0_i32_0 = arith.constant 0 : i32
    %2 = arith.cmpi ne, %1, %c0_i32_0 : i32
    scf.if %2 {
      %cst_10 = arith.constant 0.000000e+00 : f32
      %12 = vector.broadcast %cst_10 : f32 to vector<16x32xf32>
      %c0_11 = arith.constant 0 : index
      %c0_12 = arith.constant 0 : index
      %13 = vector.load %arg9[%c0_11, %c0_12] : memref<16x32xf32, #tpu.memory_space<vmem>>, vector<16x32xf32>
      tpu.vector_store %arg9[%c0_11, %c0_12], %12 {strides = array<i32>} : memref<16x32xf32, #tpu.memory_space<vmem>>, vector<16x32xf32>,
    } else {
    }
    %c0 = arith.constant 0 : index
    %c0_1 = arith.constant 0 : index
    %3 = vector.load %arg9[%c0, %c0_1] : memref<16x32xf32, #tpu.memory_space<vmem>>, vector<16x32xf32>
    %c0_2 = arith.constant 0 : index
    %c0_3 = arith.constant 0 : index
    %4 = vector.load %arg2[%c0_2, %c0_3] : memref<16x64xbf16, #tpu.memory_space<vmem>>, vector<16x64xbf16>
    %c0_4 = arith.constant 0 : index
    %c0_5 = arith.constant 0 : index
    %5 = vector.load %arg3[%c0_4, %c0_5] : memref<64x32xbf16, #tpu.memory_space<vmem>>, vector<64x32xbf16>
    %cst = arith.constant dense<0.000000e+00> : vector<16x32xf32>
    %6 = tpu.matmul %4, %5, %cst {dimension_numbers = #tpu.dot_dimension_numbers<[1], [0], [0], [1], [0, 0, 1, 1], [], []>} : vector<16x64xbf16>, vector<64x32xbf16>, vector<16x32xf32> -> vector<16x32xf32>
    %7 = arith.addf %3, %6 : vector<16x32xf32>
    %c0_6 = arith.constant 0 : index
    %c0_7 = arith.constant 0 : index
    %8 = vector.load %arg9[%c0_6, %c0_7] : memref<16x32xf32, #tpu.memory_space<vmem>>, vector<16x32xf32>
    tpu.vector_store %arg9[%c0_6, %c0_7], %7 {strides = array<i32>} : memref<16x32xf32, #tpu.memory_space<vmem>>, vector<16x32xf32>,
    %c0_i32_8 = arith.constant 0 : i32
    %9 = arith.cmpi eq, %arg1, %c0_i32_8 : i32
    %10 = arith.extui %9 : i1 to i32
    %c0_i32_9 = arith.constant 0 : i32
    %11 = arith.cmpi ne, %10, %c0_i32_9 : i32
    scf.if %11 {
      %c0_10 = arith.constant 0 : index
      %c0_11 = arith.constant 0 : index
      %12 = vector.load %arg9[%c0_10, %c0_11] : memref<16x32xf32, #tpu.memory_space<vmem>>, vector<16x32xf32>
      %c0_12 = arith.constant 0 : index
      %c0_13 = arith.constant 0 : index
      %13 = vector.load %arg4[%c0_12, %c0_13] : memref<1x32xf32, #tpu.memory_space<vmem>>, vector<1x32xf32>
      %14 = vector.broadcast %13 : vector<1x32xf32> to vector<16x32xf32>
      %15 = arith.addf %12, %14 : vector<16x32xf32>
      %c0_14 = arith.constant 0 : index
      %c0_15 = arith.constant 0 : index
      %16 = vector.load %arg5[%c0_14, %c0_15] : memref<16x32xbf16, #tpu.memory_space<vmem>>, vector<16x32xbf16>
      %17 = arith.extf %16 : vector<16x32xbf16> to vector<16x32xf32>
      %18 = arith.addf %15, %17 : vector<16x32xf32>
      %cst_16 = arith.constant dense<0.000000e+00> : vector<16xf32>
      %19 = vector.multi_reduction <add>, %18, %cst_16 [1] : vector<16x32xf32> to vector<16xf32>
      %20 = vector.shape_cast %19 : vector<16xf32> to vector<16x1xf32>
      %cst_17 = arith.constant 3.200000e+01 : f32
      %21 = vector.broadcast %cst_17 : f32 to vector<16x1xf32>
      %22 = arith.divf %20, %21 : vector<16x1xf32>
      %23 = vector.broadcast %22 : vector<16x1xf32> to vector<16x32xf32>
      %24 = arith.subf %18, %23 : vector<16x32xf32>
      %25 = arith.mulf %24, %24 : vector<16x32xf32>
      %cst_18 = arith.constant dense<0.000000e+00> : vector<16xf32>
      %26 = vector.multi_reduction <add>, %25, %cst_18 [1] : vector<16x32xf32> to vector<16xf32>
      %27 = vector.shape_cast %26 : vector<16xf32> to vector<16x1xf32>
      %cst_19 = arith.constant 3.200000e+01 : f32
      %28 = vector.broadcast %cst_19 : f32 to vector<16x1xf32>
      %29 = arith.divf %27, %28 : vector<16x1xf32>
      %30 = vector.broadcast %22 : vector<16x1xf32> to vector<16x32xf32>
      %31 = arith.subf %18, %30 : vector<16x32xf32>
      %cst_20 = arith.constant 9.99999996E-13 : f32
      %32 = vector.broadcast %cst_20 : f32 to vector<16x1xf32>
      %33 = arith.addf %29, %32 : vector<16x1xf32>
      %34 = math.rsqrt %33 : vector<16x1xf32>
      %35 = vector.broadcast %34 : vector<16x1xf32> to vector<16x32xf32>
      %36 = arith.mulf %31, %35 : vector<16x32xf32>
      %c0_21 = arith.constant 0 : index
      %c0_22 = arith.constant 0 : index
      %37 = vector.load %arg6[%c0_21, %c0_22] : memref<1x32xf32, #tpu.memory_space<vmem>>, vector<1x32xf32>
      %38 = vector.broadcast %37 : vector<1x32xf32> to vector<16x32xf32>
      %39 = arith.mulf %36, %38 : vector<16x32xf32>
      %c0_23 = arith.constant 0 : index
      %c0_24 = arith.constant 0 : index
      %40 = vector.load %arg7[%c0_23, %c0_24] : memref<1x32xf32, #tpu.memory_space<vmem>>, vector<1x32xf32>
      %41 = vector.broadcast %40 : vector<1x32xf32> to vector<16x32xf32>
      %42 = arith.addf %39, %41 : vector<16x32xf32>
      %43 = arith.truncf %42 : vector<16x32xf32> to vector<16x32xbf16>
      %c0_25 = arith.constant 0 : index
      %c0_26 = arith.constant 0 : index
      %44 = vector.load %arg8[%c0_25, %c0_26] : memref<16x32xbf16, #tpu.memory_space<vmem>>, vector<16x32xbf16>
      tpu.vector_store %arg8[%c0_25, %c0_26], %43 {strides = array<i32>} : memref<16x32xbf16, #tpu.memory_space<vmem>>, vector<16x32xbf16>,
    } else {
    }
    return
  }
  func.func @transform_0(%arg0: i32, %arg1: i32) -> (i32, i32) {
    %c0_i32 = arith.constant 0 : i32
    return %arg0, %arg1 : i32, i32
  }
  func.func @transform_1(%arg0: i32, %arg1: i32) -> (i32, i32) {
    %c0_i32 = arith.constant 0 : i32
    %c0_i32_0 = arith.constant 0 : i32
    return %arg1, %c0_i32 : i32, i32
  }
  func.func @transform_2(%arg0: i32, %arg1: i32) -> (i32, i32) {
    %c0_i32 = arith.constant 0 : i32
    %c0_i32_0 = arith.constant 0 : i32
    %c0_i32_1 = arith.constant 0 : i32
    return %c0_i32, %c0_i32_0 : i32, i32
  }
  func.func @transform_3(%arg0: i32, %arg1: i32) -> (i32, i32) {
    %c0_i32 = arith.constant 0 : i32
    %c0_i32_0 = arith.constant 0 : i32
    return %arg0, %c0_i32 : i32, i32
  }
  func.func @transform_4(%arg0: i32, %arg1: i32) -> (i32, i32) {
    %c0_i32 = arith.constant 0 : i32
    %c0_i32_0 = arith.constant 0 : i32
    %c0_i32_1 = arith.constant 0 : i32
    return %c0_i32, %c0_i32_0 : i32, i32
  }
  func.func @transform_5(%arg0: i32, %arg1: i32) -> (i32, i32) {
    %c0_i32 = arith.constant 0 : i32
    %c0_i32_0 = arith.constant 0 : i32
    %c0_i32_1 = arith.constant 0 : i32
    return %c0_i32, %c0_i32_0 : i32, i32
  }
  func.func @transform_6(%arg0: i32, %arg1: i32) -> (i32, i32) {
    %c0_i32 = arith.constant 0 : i32
    %c0_i32_0 = arith.constant 0 : i32
    return %arg0, %c0_i32 : i32, i32
  }
}

module attributes {stable_mosaic.version = 11 : i64} {
  func.func @_matmul_kernel(%arg0: i32, %arg1: i32, %arg2: i32, %arg3: memref<16x64xbf16, #tpu.memory_space<vmem>>, %arg4: memref<64x192xbf16, #tpu.memory_space<vmem>>, %arg5: memref<1x192xf32, #tpu.memory_space<vmem>>, %arg6: memref<16x192xbf16, #tpu.memory_space<vmem>>, %arg7: memref<16x192xf32, #tpu.memory_space<vmem>>) attributes {dimension_semantics = [#tpu.dimension_semantics<parallel>, #tpu.dimension_semantics<parallel>, #tpu.dimension_semantics<arbitrary>], iteration_bounds = array<i64: 1, 1, 1>, scalar_prefetch = 0 : i64, scratch_operands = 1 : i64, tpu.core_type = #tpu.core_type<tc>, window_params = [{transform_indices = @transform_0, window_bounds = array<i64: 16, 64>}, {transform_indices = @transform_1, window_bounds = array<i64: 64, 192>}, {transform_indices = @transform_2, window_bounds = array<i64: 1, 192>}, {transform_indices = @transform_3, window_bounds = array<i64: 16, 192>}]} {
    %c0_i32 = arith.constant 0 : i32
    %0 = arith.cmpi eq, %arg2, %c0_i32 : i32
    %1 = arith.extui %0 : i1 to i32
    %c0_i32_0 = arith.constant 0 : i32
    %2 = arith.cmpi ne, %1, %c0_i32_0 : i32
    scf.if %2 {
      %cst_10 = arith.constant 0.000000e+00 : f32
      %12 = vector.broadcast %cst_10 : f32 to vector<16x192xf32>
      %c0_11 = arith.constant 0 : index
      %c0_12 = arith.constant 0 : index
      %13 = vector.load %arg7[%c0_11, %c0_12] : memref<16x192xf32, #tpu.memory_space<vmem>>, vector<16x192xf32>
      tpu.vector_store %arg7[%c0_11, %c0_12], %12 {strides = array<i32>} : memref<16x192xf32, #tpu.memory_space<vmem>>, vector<16x192xf32>,
    } else {
    }
    %c0 = arith.constant 0 : index
    %c0_1 = arith.constant 0 : index
    %3 = vector.load %arg7[%c0, %c0_1] : memref<16x192xf32, #tpu.memory_space<vmem>>, vector<16x192xf32>
    %c0_2 = arith.constant 0 : index
    %c0_3 = arith.constant 0 : index
    %4 = vector.load %arg3[%c0_2, %c0_3] : memref<16x64xbf16, #tpu.memory_space<vmem>>, vector<16x64xbf16>
    %c0_4 = arith.constant 0 : index
    %c0_5 = arith.constant 0 : index
    %5 = vector.load %arg4[%c0_4, %c0_5] : memref<64x192xbf16, #tpu.memory_space<vmem>>, vector<64x192xbf16>
    %cst = arith.constant dense<0.000000e+00> : vector<16x192xf32>
    %6 = tpu.matmul %4, %5, %cst {dimension_numbers = #tpu.dot_dimension_numbers<[1], [0], [0], [1], [0, 0, 1, 1], [], []>} : vector<16x64xbf16>, vector<64x192xbf16>, vector<16x192xf32> -> vector<16x192xf32>
    %7 = arith.addf %3, %6 : vector<16x192xf32>
    %c0_6 = arith.constant 0 : index
    %c0_7 = arith.constant 0 : index
    %8 = vector.load %arg7[%c0_6, %c0_7] : memref<16x192xf32, #tpu.memory_space<vmem>>, vector<16x192xf32>
    tpu.vector_store %arg7[%c0_6, %c0_7], %7 {strides = array<i32>} : memref<16x192xf32, #tpu.memory_space<vmem>>, vector<16x192xf32>,
    %c0_i32_8 = arith.constant 0 : i32
    %9 = arith.cmpi eq, %arg2, %c0_i32_8 : i32
    %10 = arith.extui %9 : i1 to i32
    %c0_i32_9 = arith.constant 0 : i32
    %11 = arith.cmpi ne, %10, %c0_i32_9 : i32
    scf.if %11 {
      %c0_10 = arith.constant 0 : index
      %c0_11 = arith.constant 0 : index
      %12 = vector.load %arg7[%c0_10, %c0_11] : memref<16x192xf32, #tpu.memory_space<vmem>>, vector<16x192xf32>
      %c0_12 = arith.constant 0 : index
      %c0_13 = arith.constant 0 : index
      %13 = vector.load %arg5[%c0_12, %c0_13] : memref<1x192xf32, #tpu.memory_space<vmem>>, vector<1x192xf32>
      %14 = vector.broadcast %13 : vector<1x192xf32> to vector<16x192xf32>
      %15 = arith.addf %12, %14 : vector<16x192xf32>
      %16 = arith.truncf %15 : vector<16x192xf32> to vector<16x192xbf16>
      %c0_14 = arith.constant 0 : index
      %c0_15 = arith.constant 0 : index
      %17 = vector.load %arg6[%c0_14, %c0_15] : memref<16x192xbf16, #tpu.memory_space<vmem>>, vector<16x192xbf16>
      tpu.vector_store %arg6[%c0_14, %c0_15], %16 {strides = array<i32>} : memref<16x192xbf16, #tpu.memory_space<vmem>>, vector<16x192xbf16>,
    } else {
    }
    return
  }
  func.func @transform_0(%arg0: i32, %arg1: i32, %arg2: i32) -> (i32, i32) {
    %c0_i32 = arith.constant 0 : i32
    return %arg0, %arg2 : i32, i32
  }
  func.func @transform_1(%arg0: i32, %arg1: i32, %arg2: i32) -> (i32, i32) {
    %c0_i32 = arith.constant 0 : i32
    return %arg2, %arg1 : i32, i32
  }
  func.func @transform_2(%arg0: i32, %arg1: i32, %arg2: i32) -> (i32, i32) {
    %c0_i32 = arith.constant 0 : i32
    %c0_i32_0 = arith.constant 0 : i32
    return %c0_i32, %arg1 : i32, i32
  }
  func.func @transform_3(%arg0: i32, %arg1: i32, %arg2: i32) -> (i32, i32) {
    %c0_i32 = arith.constant 0 : i32
    return %arg0, %arg1 : i32, i32
  }
}

module attributes {stable_mosaic.version = 11 : i64} {
  func.func @_fused_attn_kernel(%arg0: i32, %arg1: memref<1x8x192xbf16, #tpu.memory_space<vmem>>, %arg2: memref<1x1x8xf32, #tpu.memory_space<vmem>>, %arg3: memref<1x8x64xbf16, #tpu.memory_space<vmem>>) attributes {dimension_semantics = [#tpu.dimension_semantics<parallel>], iteration_bounds = array<i64: 2>, scalar_prefetch = 0 : i64, scratch_operands = 0 : i64, tpu.core_type = #tpu.core_type<tc>, window_params = [{transform_indices = @transform_0, window_bounds = array<i64: 1, 8, 192>}, {transform_indices = @transform_1, window_bounds = array<i64: 1, 1, 8>}, {transform_indices = @transform_2, window_bounds = array<i64: 1, 8, 64>}]} {
    %c0 = arith.constant 0 : index
    %c0_0 = arith.constant 0 : index
    %c0_1 = arith.constant 0 : index
    %0 = vector.load %arg1[%c0, %c0_0, %c0_1] : memref<1x8x192xbf16, #tpu.memory_space<vmem>>, vector<1x8x192xbf16>
    %1 = vector.shape_cast %0 : vector<1x8x192xbf16> to vector<8x192xbf16>
    %c0_2 = arith.constant 0 : index
    %c0_3 = arith.constant 0 : index
    %c0_4 = arith.constant 0 : index
    %2 = vector.load %arg2[%c0_2, %c0_3, %c0_4] : memref<1x1x8xf32, #tpu.memory_space<vmem>>, vector<1x1x8xf32>
    %3 = vector.shape_cast %2 : vector<1x1x8xf32> to vector<1x8xf32>
    %4 = vector.extract_strided_slice %1 {offsets = [0, 0], sizes = [8, 32], strides = [1, 1]} : vector<8x192xbf16> to vector<8x32xbf16>
    %cst = arith.constant 1.767580e-01 : bf16
    %5 = vector.broadcast %cst : bf16 to vector<8x32xbf16>
    %6 = arith.mulf %4, %5 : vector<8x32xbf16>
    %7 = vector.extract_strided_slice %1 {offsets = [0, 64], sizes = [8, 32], strides = [1, 1]} : vector<8x192xbf16> to vector<8x32xbf16>
    %8 = vector.extract_strided_slice %1 {offsets = [0, 128], sizes = [8, 32], strides = [1, 1]} : vector<8x192xbf16> to vector<8x32xbf16>
    %cst_5 = arith.constant dense<0.000000e+00> : vector<8x8xf32>
    %9 = tpu.matmul %6, %7, %cst_5 {dimension_numbers = #tpu.dot_dimension_numbers<[1], [1], [0], [0], [0, 0, 1, 0], [], []>} : vector<8x32xbf16>, vector<8x32xbf16>, vector<8x8xf32> -> vector<8x8xf32>
    %10 = vector.broadcast %3 : vector<1x8xf32> to vector<8x8xf32>
    %11 = arith.addf %9, %10 : vector<8x8xf32>
    %cst_6 = arith.constant dense<0xFF800000> : vector<8xf32>
    %12 = vector.multi_reduction <maximumf>, %11, %cst_6 [1] : vector<8x8xf32> to vector<8xf32>
    %13 = vector.shape_cast %12 : vector<8xf32> to vector<8x1xf32>
    %14 = vector.broadcast %13 : vector<8x1xf32> to vector<8x8xf32>
    %15 = arith.subf %11, %14 : vector<8x8xf32>
    %16 = math.exp %15 : vector<8x8xf32>
    %cst_7 = arith.constant dense<0.000000e+00> : vector<8xf32>
    %17 = vector.multi_reduction <add>, %16, %cst_7 [1] : vector<8x8xf32> to vector<8xf32>
    %18 = vector.shape_cast %17 : vector<8xf32> to vector<8x1xf32>
    %19 = tpu.reciprocal %18 {approx = true} : vector<8x1xf32> -> vector<8x1xf32>
    %20 = vector.broadcast %19 : vector<8x1xf32> to vector<8x8xf32>
    %21 = arith.mulf %16, %20 : vector<8x8xf32>
    %22 = arith.truncf %21 : vector<8x8xf32> to vector<8x8xbf16>
    %cst_8 = arith.constant dense<0.000000e+00> : vector<8x32xf32>
    %23 = tpu.matmul %22, %8, %cst_8 {dimension_numbers = #tpu.dot_dimension_numbers<[1], [0], [0], [1], [0, 0, 1, 1], [], []>} : vector<8x8xbf16>, vector<8x32xbf16>, vector<8x32xf32> -> vector<8x32xf32>
    %24 = arith.truncf %23 : vector<8x32xf32> to vector<8x32xbf16>
    %c0_9 = arith.constant 0 : index
    %c0_10 = arith.constant 0 : index
    %c0_11 = arith.constant 0 : index
    %25 = vector.load %arg3[%c0_9, %c0_10, %c0_11] : memref<1x8x64xbf16, #tpu.memory_space<vmem>>, vector<1x8x32xbf16>
    %26 = vector.shape_cast %25 : vector<1x8x32xbf16> to vector<8x32xbf16>
    %27 = vector.shape_cast %24 : vector<8x32xbf16> to vector<1x8x32xbf16>
    tpu.vector_store %arg3[%c0_9, %c0_10, %c0_11], %27 {strides = array<i32>} : memref<1x8x64xbf16, #tpu.memory_space<vmem>>, vector<1x8x32xbf16>,
    %28 = vector.extract_strided_slice %1 {offsets = [0, 32], sizes = [8, 32], strides = [1, 1]} : vector<8x192xbf16> to vector<8x32xbf16>
    %cst_12 = arith.constant 1.767580e-01 : bf16
    %29 = vector.broadcast %cst_12 : bf16 to vector<8x32xbf16>
    %30 = arith.mulf %28, %29 : vector<8x32xbf16>
    %31 = vector.extract_strided_slice %1 {offsets = [0, 96], sizes = [8, 32], strides = [1, 1]} : vector<8x192xbf16> to vector<8x32xbf16>
    %32 = vector.extract_strided_slice %1 {offsets = [0, 160], sizes = [8, 32], strides = [1, 1]} : vector<8x192xbf16> to vector<8x32xbf16>
    %cst_13 = arith.constant dense<0.000000e+00> : vector<8x8xf32>
    %33 = tpu.matmul %30, %31, %cst_13 {dimension_numbers = #tpu.dot_dimension_numbers<[1], [1], [0], [0], [0, 0, 1, 0], [], []>} : vector<8x32xbf16>, vector<8x32xbf16>, vector<8x8xf32> -> vector<8x8xf32>
    %34 = vector.broadcast %3 : vector<1x8xf32> to vector<8x8xf32>
    %35 = arith.addf %33, %34 : vector<8x8xf32>
    %cst_14 = arith.constant dense<0xFF800000> : vector<8xf32>
    %36 = vector.multi_reduction <maximumf>, %35, %cst_14 [1] : vector<8x8xf32> to vector<8xf32>
    %37 = vector.shape_cast %36 : vector<8xf32> to vector<8x1xf32>
    %38 = vector.broadcast %37 : vector<8x1xf32> to vector<8x8xf32>
    %39 = arith.subf %35, %38 : vector<8x8xf32>
    %40 = math.exp %39 : vector<8x8xf32>
    %cst_15 = arith.constant dense<0.000000e+00> : vector<8xf32>
    %41 = vector.multi_reduction <add>, %40, %cst_15 [1] : vector<8x8xf32> to vector<8xf32>
    %42 = vector.shape_cast %41 : vector<8xf32> to vector<8x1xf32>
    %43 = tpu.reciprocal %42 {approx = true} : vector<8x1xf32> -> vector<8x1xf32>
    %44 = vector.broadcast %43 : vector<8x1xf32> to vector<8x8xf32>
    %45 = arith.mulf %40, %44 : vector<8x8xf32>
    %46 = arith.truncf %45 : vector<8x8xf32> to vector<8x8xbf16>
    %cst_16 = arith.constant dense<0.000000e+00> : vector<8x32xf32>
    %47 = tpu.matmul %46, %32, %cst_16 {dimension_numbers = #tpu.dot_dimension_numbers<[1], [0], [0], [1], [0, 0, 1, 1], [], []>} : vector<8x8xbf16>, vector<8x32xbf16>, vector<8x32xf32> -> vector<8x32xf32>
    %48 = arith.truncf %47 : vector<8x32xf32> to vector<8x32xbf16>
    %c0_17 = arith.constant 0 : index
    %c0_18 = arith.constant 0 : index
    %c32 = arith.constant 32 : index
    %49 = vector.load %arg3[%c0_17, %c0_18, %c32] : memref<1x8x64xbf16, #tpu.memory_space<vmem>>, vector<1x8x32xbf16>
    %50 = vector.shape_cast %49 : vector<1x8x32xbf16> to vector<8x32xbf16>
    %51 = vector.shape_cast %48 : vector<8x32xbf16> to vector<1x8x32xbf16>
    tpu.vector_store %arg3[%c0_17, %c0_18, %c32], %51 {strides = array<i32>} : memref<1x8x64xbf16, #tpu.memory_space<vmem>>, vector<1x8x32xbf16>,
    return
  }
  func.func @transform_0(%arg0: i32) -> (i32, i32, i32) {
    %c0_i32 = arith.constant 0 : i32
    %c0_i32_0 = arith.constant 0 : i32
    %c0_i32_1 = arith.constant 0 : i32
    return %arg0, %c0_i32, %c0_i32_0 : i32, i32, i32
  }
  func.func @transform_1(%arg0: i32) -> (i32, i32, i32) {
    %c0_i32 = arith.constant 0 : i32
    %c0_i32_0 = arith.constant 0 : i32
    %c0_i32_1 = arith.constant 0 : i32
    return %arg0, %c0_i32, %c0_i32_0 : i32, i32, i32
  }
  func.func @transform_2(%arg0: i32) -> (i32, i32, i32) {
    %c0_i32 = arith.constant 0 : i32
    %c0_i32_0 = arith.constant 0 : i32
    %c0_i32_1 = arith.constant 0 : i32
    return %arg0, %c0_i32, %c0_i32_0 : i32, i32, i32
  }
}

module attributes {stable_mosaic.version = 11 : i64} {
  func.func @_matmul_kernel(%arg0: i32, %arg1: i32, %arg2: i32, %arg3: memref<16x32xbf16, #tpu.memory_space<vmem>>, %arg4: memref<32x64xbf16, #tpu.memory_space<vmem>>, %arg5: memref<1x64xf32, #tpu.memory_space<vmem>>, %arg6: memref<16x64xbf16, #tpu.memory_space<vmem>>, %arg7: memref<16x64xf32, #tpu.memory_space<vmem>>) attributes {dimension_semantics = [#tpu.dimension_semantics<parallel>, #tpu.dimension_semantics<parallel>, #tpu.dimension_semantics<arbitrary>], iteration_bounds = array<i64: 1, 1, 1>, scalar_prefetch = 0 : i64, scratch_operands = 1 : i64, tpu.core_type = #tpu.core_type<tc>, window_params = [{transform_indices = @transform_0, window_bounds = array<i64: 16, 32>}, {transform_indices = @transform_1, window_bounds = array<i64: 32, 64>}, {transform_indices = @transform_2, window_bounds = array<i64: 1, 64>}, {transform_indices = @transform_3, window_bounds = array<i64: 16, 64>}]} {
    %c0_i32 = arith.constant 0 : i32
    %0 = arith.cmpi eq, %arg2, %c0_i32 : i32
    %1 = arith.extui %0 : i1 to i32
    %c0_i32_0 = arith.constant 0 : i32
    %2 = arith.cmpi ne, %1, %c0_i32_0 : i32
    scf.if %2 {
      %cst_10 = arith.constant 0.000000e+00 : f32
      %12 = vector.broadcast %cst_10 : f32 to vector<16x64xf32>
      %c0_11 = arith.constant 0 : index
      %c0_12 = arith.constant 0 : index
      %13 = vector.load %arg7[%c0_11, %c0_12] : memref<16x64xf32, #tpu.memory_space<vmem>>, vector<16x64xf32>
      tpu.vector_store %arg7[%c0_11, %c0_12], %12 {strides = array<i32>} : memref<16x64xf32, #tpu.memory_space<vmem>>, vector<16x64xf32>,
    } else {
    }
    %c0 = arith.constant 0 : index
    %c0_1 = arith.constant 0 : index
    %3 = vector.load %arg7[%c0, %c0_1] : memref<16x64xf32, #tpu.memory_space<vmem>>, vector<16x64xf32>
    %c0_2 = arith.constant 0 : index
    %c0_3 = arith.constant 0 : index
    %4 = vector.load %arg3[%c0_2, %c0_3] : memref<16x32xbf16, #tpu.memory_space<vmem>>, vector<16x32xbf16>
    %c0_4 = arith.constant 0 : index
    %c0_5 = arith.constant 0 : index
    %5 = vector.load %arg4[%c0_4, %c0_5] : memref<32x64xbf16, #tpu.memory_space<vmem>>, vector<32x64xbf16>
    %cst = arith.constant dense<0.000000e+00> : vector<16x64xf32>
    %6 = tpu.matmul %4, %5, %cst {dimension_numbers = #tpu.dot_dimension_numbers<[1], [0], [0], [1], [0, 0, 1, 1], [], []>} : vector<16x32xbf16>, vector<32x64xbf16>, vector<16x64xf32> -> vector<16x64xf32>
    %7 = arith.addf %3, %6 : vector<16x64xf32>
    %c0_6 = arith.constant 0 : index
    %c0_7 = arith.constant 0 : index
    %8 = vector.load %arg7[%c0_6, %c0_7] : memref<16x64xf32, #tpu.memory_space<vmem>>, vector<16x64xf32>
    tpu.vector_store %arg7[%c0_6, %c0_7], %7 {strides = array<i32>} : memref<16x64xf32, #tpu.memory_space<vmem>>, vector<16x64xf32>,
    %c0_i32_8 = arith.constant 0 : i32
    %9 = arith.cmpi eq, %arg2, %c0_i32_8 : i32
    %10 = arith.extui %9 : i1 to i32
    %c0_i32_9 = arith.constant 0 : i32
    %11 = arith.cmpi ne, %10, %c0_i32_9 : i32
    scf.if %11 {
      %c0_10 = arith.constant 0 : index
      %c0_11 = arith.constant 0 : index
      %12 = vector.load %arg7[%c0_10, %c0_11] : memref<16x64xf32, #tpu.memory_space<vmem>>, vector<16x64xf32>
      %c0_12 = arith.constant 0 : index
      %c0_13 = arith.constant 0 : index
      %13 = vector.load %arg5[%c0_12, %c0_13] : memref<1x64xf32, #tpu.memory_space<vmem>>, vector<1x64xf32>
      %14 = vector.broadcast %13 : vector<1x64xf32> to vector<16x64xf32>
      %15 = arith.addf %12, %14 : vector<16x64xf32>
      %16 = arith.mulf %15, %15 : vector<16x64xf32>
      %17 = arith.mulf %15, %16 : vector<16x64xf32>
      %cst_14 = arith.constant 4.471500e-02 : f32
      %18 = vector.broadcast %cst_14 : f32 to vector<16x64xf32>
      %19 = arith.mulf %18, %17 : vector<16x64xf32>
      %20 = arith.addf %15, %19 : vector<16x64xf32>
      %cst_15 = arith.constant 0.797884583 : f32
      %21 = vector.broadcast %cst_15 : f32 to vector<16x64xf32>
      %22 = arith.mulf %21, %20 : vector<16x64xf32>
      %23 = math.tanh %22 : vector<16x64xf32>
      %cst_16 = arith.constant 1.000000e+00 : f32
      %24 = vector.broadcast %cst_16 : f32 to vector<16x64xf32>
      %25 = arith.addf %24, %23 : vector<16x64xf32>
      %cst_17 = arith.constant 5.000000e-01 : f32
      %26 = vector.broadcast %cst_17 : f32 to vector<16x64xf32>
      %27 = arith.mulf %26, %25 : vector<16x64xf32>
      %28 = arith.mulf %15, %27 : vector<16x64xf32>
      %29 = arith.truncf %28 : vector<16x64xf32> to vector<16x64xbf16>
      %c0_18 = arith.constant 0 : index
      %c0_19 = arith.constant 0 : index
      %30 = vector.load %arg6[%c0_18, %c0_19] : memref<16x64xbf16, #tpu.memory_space<vmem>>, vector<16x64xbf16>
      tpu.vector_store %arg6[%c0_18, %c0_19], %29 {strides = array<i32>} : memref<16x64xbf16, #tpu.memory_space<vmem>>, vector<16x64xbf16>,
    } else {
    }
    return
  }
  func.func @transform_0(%arg0: i32, %arg1: i32, %arg2: i32) -> (i32, i32) {
    %c0_i32 = arith.constant 0 : i32
    return %arg0, %arg2 : i32, i32
  }
  func.func @transform_1(%arg0: i32, %arg1: i32, %arg2: i32) -> (i32, i32) {
    %c0_i32 = arith.constant 0 : i32
    return %arg2, %arg1 : i32, i32
  }
  func.func @transform_2(%arg0: i32, %arg1: i32, %arg2: i32) -> (i32, i32) {
    %c0_i32 = arith.constant 0 : i32
    %c0_i32_0 = arith.constant 0 : i32
    return %c0_i32, %arg1 : i32, i32
  }
  func.func @transform_3(%arg0: i32, %arg1: i32, %arg2: i32) -> (i32, i32) {
    %c0_i32 = arith.constant 0 : i32
    return %arg0, %arg1 : i32, i32
  }
}

module attributes {stable_mosaic.version = 11 : i64} {
  func.func @_matmul_kernel(%arg0: i32, %arg1: i32, %arg2: i32, %arg3: memref<16x64xbf16, #tpu.memory_space<vmem>>, %arg4: memref<64x64xbf16, #tpu.memory_space<vmem>>, %arg5: memref<1x64xf32, #tpu.memory_space<vmem>>, %arg6: memref<16x64xbf16, #tpu.memory_space<vmem>>, %arg7: memref<16x64xf32, #tpu.memory_space<vmem>>) attributes {dimension_semantics = [#tpu.dimension_semantics<parallel>, #tpu.dimension_semantics<parallel>, #tpu.dimension_semantics<arbitrary>], iteration_bounds = array<i64: 1, 1, 1>, scalar_prefetch = 0 : i64, scratch_operands = 1 : i64, tpu.core_type = #tpu.core_type<tc>, window_params = [{transform_indices = @transform_0, window_bounds = array<i64: 16, 64>}, {transform_indices = @transform_1, window_bounds = array<i64: 64, 64>}, {transform_indices = @transform_2, window_bounds = array<i64: 1, 64>}, {transform_indices = @transform_3, window_bounds = array<i64: 16, 64>}]} {
    %c0_i32 = arith.constant 0 : i32
    %0 = arith.cmpi eq, %arg2, %c0_i32 : i32
    %1 = arith.extui %0 : i1 to i32
    %c0_i32_0 = arith.constant 0 : i32
    %2 = arith.cmpi ne, %1, %c0_i32_0 : i32
    scf.if %2 {
      %cst_10 = arith.constant 0.000000e+00 : f32
      %12 = vector.broadcast %cst_10 : f32 to vector<16x64xf32>
      %c0_11 = arith.constant 0 : index
      %c0_12 = arith.constant 0 : index
      %13 = vector.load %arg7[%c0_11, %c0_12] : memref<16x64xf32, #tpu.memory_space<vmem>>, vector<16x64xf32>
      tpu.vector_store %arg7[%c0_11, %c0_12], %12 {strides = array<i32>} : memref<16x64xf32, #tpu.memory_space<vmem>>, vector<16x64xf32>,
    } else {
    }
    %c0 = arith.constant 0 : index
    %c0_1 = arith.constant 0 : index
    %3 = vector.load %arg7[%c0, %c0_1] : memref<16x64xf32, #tpu.memory_space<vmem>>, vector<16x64xf32>
    %c0_2 = arith.constant 0 : index
    %c0_3 = arith.constant 0 : index
    %4 = vector.load %arg3[%c0_2, %c0_3] : memref<16x64xbf16, #tpu.memory_space<vmem>>, vector<16x64xbf16>
    %c0_4 = arith.constant 0 : index
    %c0_5 = arith.constant 0 : index
    %5 = vector.load %arg4[%c0_4, %c0_5] : memref<64x64xbf16, #tpu.memory_space<vmem>>, vector<64x64xbf16>
    %cst = arith.constant dense<0.000000e+00> : vector<16x64xf32>
    %6 = tpu.matmul %4, %5, %cst {dimension_numbers = #tpu.dot_dimension_numbers<[1], [0], [0], [1], [0, 0, 1, 1], [], []>} : vector<16x64xbf16>, vector<64x64xbf16>, vector<16x64xf32> -> vector<16x64xf32>
    %7 = arith.addf %3, %6 : vector<16x64xf32>
    %c0_6 = arith.constant 0 : index
    %c0_7 = arith.constant 0 : index
    %8 = vector.load %arg7[%c0_6, %c0_7] : memref<16x64xf32, #tpu.memory_space<vmem>>, vector<16x64xf32>
    tpu.vector_store %arg7[%c0_6, %c0_7], %7 {strides = array<i32>} : memref<16x64xf32, #tpu.memory_space<vmem>>, vector<16x64xf32>,
    %c0_i32_8 = arith.constant 0 : i32
    %9 = arith.cmpi eq, %arg2, %c0_i32_8 : i32
    %10 = arith.extui %9 : i1 to i32
    %c0_i32_9 = arith.constant 0 : i32
    %11 = arith.cmpi ne, %10, %c0_i32_9 : i32
    scf.if %11 {
      %c0_10 = arith.constant 0 : index
      %c0_11 = arith.constant 0 : index
      %12 = vector.load %arg7[%c0_10, %c0_11] : memref<16x64xf32, #tpu.memory_space<vmem>>, vector<16x64xf32>
      %c0_12 = arith.constant 0 : index
      %c0_13 = arith.constant 0 : index
      %13 = vector.load %arg5[%c0_12, %c0_13] : memref<1x64xf32, #tpu.memory_space<vmem>>, vector<1x64xf32>
      %14 = vector.broadcast %13 : vector<1x64xf32> to vector<16x64xf32>
      %15 = arith.addf %12, %14 : vector<16x64xf32>
      %16 = arith.truncf %15 : vector<16x64xf32> to vector<16x64xbf16>
      %c0_14 = arith.constant 0 : index
      %c0_15 = arith.constant 0 : index
      %17 = vector.load %arg6[%c0_14, %c0_15] : memref<16x64xbf16, #tpu.memory_space<vmem>>, vector<16x64xbf16>
      tpu.vector_store %arg6[%c0_14, %c0_15], %16 {strides = array<i32>} : memref<16x64xbf16, #tpu.memory_space<vmem>>, vector<16x64xbf16>,
    } else {
    }
    return
  }
  func.func @transform_0(%arg0: i32, %arg1: i32, %arg2: i32) -> (i32, i32) {
    %c0_i32 = arith.constant 0 : i32
    return %arg0, %arg2 : i32, i32
  }
  func.func @transform_1(%arg0: i32, %arg1: i32, %arg2: i32) -> (i32, i32) {
    %c0_i32 = arith.constant 0 : i32
    return %arg2, %arg1 : i32, i32
  }
  func.func @transform_2(%arg0: i32, %arg1: i32, %arg2: i32) -> (i32, i32) {
    %c0_i32 = arith.constant 0 : i32
    %c0_i32_0 = arith.constant 0 : i32
    return %c0_i32, %arg1 : i32, i32
  }
  func.func @transform_3(%arg0: i32, %arg1: i32, %arg2: i32) -> (i32, i32) {
    %c0_i32 = arith.constant 0 : i32
    return %arg0, %arg1 : i32, i32
  }
}

</mosaic_0001>

<llo_original>
// kernel: bertdot_dual_fullfuse_forward.16
$region0: #{bertdot_dual_fullfuse_forward.16}
  #allocation0 [shape = 'u32[]', space=smem, size = 0x4, offset = 0x4, fixed_abs, tag = 'smem constant byte address 0x4 - core index']
  #allocation1 [shape = 'u32[144,128]{1,0:T(1,128)}', space=vmem, size = 0x12000, scoped, tag = 'internal scratch']
  #allocation2 [shape = 'f32[16,96]{1,0:T(8,128)}', space=vmem, size = 0x2000, scoped, tag = 'scratch operand']
  %s0 = inlined_call_operand.vmem [shape: bf16[16,32], index: 0, kind: input, shape index: {}]
  %s1 = inlined_call_operand.vmem [shape: bf16[32,96], index: 1, kind: input, shape index: {}]
  %s2 = inlined_call_operand.vmem [shape: f32[1,96], index: 2, kind: input, shape index: {}]
  %s3 = inlined_call_operand.vmem [shape: bf16[16,96], index: 3, kind: output, shape index: {}]
  %s4 = sld [smem:[#allocation0]]
  $region30: #{bertdot_dual_fullfuse_forward.16} parent=0
    _
  %s6 = ssub.s32 1, %s4
  %s7 = scalar_select 0, %s6, %s4
  // Predicated region
  $region2: #{bertdot_dual_fullfuse_forward.16} parent=0 // pred_check
    _
  $region3: #{bertdot_dual_fullfuse_forward.16} parent=0 // pred_check_branch
    %9 = sbr.rel (0) target = $region5
  $region4: #{bertdot_dual_fullfuse_forward.16} parent=0 // pred_region
    _
  $region5: #{bertdot_dual_fullfuse_forward.16} parent=0 // pred_fallthru
    _
  // Predicated region
  $region6: #{bertdot_dual_fullfuse_forward.16} parent=0 // pred_check
    _
  $region7: #{bertdot_dual_fullfuse_forward.16} parent=0 // pred_check_branch
    %11 = sbr.rel (0) target = $region9
  $region8: #{bertdot_dual_fullfuse_forward.16} parent=0 // pred_region
    _
  $region9: #{bertdot_dual_fullfuse_forward.16} parent=0 // pred_fallthru
    _
  // Predicated region
  $region10: #{bertdot_dual_fullfuse_forward.16} parent=0 // pred_check
    _
  $region11: #{bertdot_dual_fullfuse_forward.16} parent=0 // pred_check_branch
    %13 = sbr.rel (0) target = $region13
  $region12: #{bertdot_dual_fullfuse_forward.16} parent=0 // pred_region
    _
  $region13: #{bertdot_dual_fullfuse_forward.16} parent=0 // pred_fallthru
    _
  %p15 = scmp.eq.s32.totalorder 0, 0
  // Predicated region
  $region14: #{bertdot_dual_fullfuse_forward.16} parent=0 // pred_check
    %p16 = pneg %p15
  $region15: #{bertdot_dual_fullfuse_forward.16} parent=0 // pred_check_branch
    %18 = sbr.rel (%p16) target = $region17
  $region16: #{bertdot_dual_fullfuse_forward.16} parent=0 // pred_region
    %vm19 = vcmask 785408
    %20 = vst.msk [vmem:[#allocation2] sm:$0xff] %vm19, 0.0
    %21 = vst.msk [vmem:[#allocation2 + $0x8] sm:$0xff] %vm19, 0.0
  $region17: #{bertdot_dual_fullfuse_forward.16} parent=0 // pred_fallthru
    _
  %v22 = vld [vmem:[#allocation2] sm:$0xff]
  %v23 = vld [vmem:[#allocation2 + $0x8] sm:$0xff]
  %v24 = vld [vmem:[%s0] sm:$0xf]
  %v25 = vld [vmem:[%s0 + $0x4] sm:$0xf]
  %v26 = vld [vmem:[%s1] sm:$0xf]
  %v27 = vld [vmem:[%s1 + $0x4] sm:$0xf]
  %v28 = vld [vmem:[%s1 + $0x8] sm:$0xf]
  %v29 = vld [vmem:[%s1 + $0xc] sm:$0xf]
  %v32 = vunpack.c.l.b16 %v24
  %v33 = vunpack.c.l.b16 %v25
  %v34 = vpack.c.b16 %v33, %v32
  %v39 = vunpack.c.l.b16 %v26
  %v40 = vunpack.c.l.b16 %v27
  %v41 = vunpack.c.l.b16 %v28
  %v42 = vunpack.c.l.b16 %v29
  %v43 = vpack.c.b16 %v40, %v39
  %v44 = vpack.c.b16 %v42, %v41
  %vm47 = vcmask 261120
  %v49 = vsel %vm47, %v34, 0
  %51 = vmatprep.subr.bf16.mxu0 0
  %52 = vmatpush1.bf16.msra.mxu0 0
  %53 = vmatprep.subr.bf16.mxu0 0
  %54 = vmatpush1.bf16.msra.mxu0 0
  %55 = vmatprep.subr.bf16.mxu0 0
  %56 = vmatpush1.bf16.msra.mxu0 0
  %57 = vmatprep.subr.bf16.mxu0 0
  %58 = vmatpush1.bf16.msra.mxu0 0
  %59 = vmatprep.subr.bf16.mxu0 0
  %60 = vmatpush1.bf16.msra.mxu0 0
  %61 = vmatprep.subr.bf16.mxu0 0
  %62 = vmatpush1.bf16.msra.mxu0 0
  %63 = vmatprep.subr.bf16.mxu0 0
  %64 = vmatpush1.bf16.msra.mxu0 %v44
  %65 = vmatprep.subr.bf16.mxu0 0
  %66 = vmatpush1.bf16.msra.mxu0 %v43
  %67 = vmatprep.subr.bf16.mxu0 0
  %68 = vmatpush2.bf16.msra.mxu0 0
  %69 = vmatprep.subr.bf16.mxu0 0
  %70 = vmatpush2.bf16.msra.mxu0 0
  %71 = vmatprep.subr.bf16.mxu0 0
  %72 = vmatpush2.bf16.msra.mxu0 0
  %73 = vmatprep.subr.bf16.mxu0 0
  %74 = vmatpush2.bf16.msra.mxu0 0
  %75 = vmatprep.subr.bf16.mxu0 0
  %76 = vmatpush2.bf16.msra.mxu0 0
  %77 = vmatprep.subr.bf16.mxu0 0
  %78 = vmatpush2.bf16.msra.mxu0 0
  %79 = vmatprep.subr.bf16.mxu0 0
  %80 = vmatpush2.bf16.msra.mxu0 0
  %81 = vmatprep.subr.bf16.mxu0 0
  %82 = vmatpush2.bf16.msra.mxu0 0
  %83 = vmatprep.mubr.bf16.mxu0 0
  %84 = vmatmul.mubr.bf16.gmra.mxu0 %v49
  %v85 = vpop.f32.mrf.mxu0
  %v86 = vadd.f32 0.0, %v85
  %v87 = vpop.f32.mrf.mxu0
  %v88 = vpop.f32.mrf.mxu0
  %v89 = vadd.f32 0.0, %v88
  %v90 = vpop.f32.mrf.mxu0
  %91 = vdwg.mxu0
  %v92 = vadd.f32 %v22, %v86
  %v93 = vadd.f32 %v23, %v89
  %vm94 = vcmask 785408
  %95 = vst.msk [vmem:[#allocation2] sm:$0xff] %vm94, %v92
  %96 = vst.msk [vmem:[#allocation2 + $0x8] sm:$0xff] %vm94, %v93
  // Predicated region
  $region18: #{bertdot_dual_fullfuse_forward.16} parent=0 // pred_check
    %p97 = pneg %p15
  $region19: #{bertdot_dual_fullfuse_forward.16} parent=0 // pred_check_branch
    %99 = sbr.rel (%p97) target = $region21
  $region20: #{bertdot_dual_fullfuse_forward.16} parent=0 // pred_region
    %v100 = vld [vmem:[#allocation2] sm:$0xff]
    %v101 = vld [vmem:[#allocation2 + $0x8] sm:$0xff]
    %v102 = vld [vmem:[%s2] sm:$0x1]
    %v104 = vlaneseq
    %v105 = vshrl.u32 %v104, 7
    %v106 = vsub.s32 0, %v105
    %v107 = vrot.slane %v102, %v106
    %v109 = vadd.f32 %v100, %v107
    %v110 = vadd.f32 %v101, %v107
    %v111 = vpack.c.bf16 %v110, %v109
    %v113 = vunpack.c.l.b16 %v111
    %v114 = vunpack.c.h.b16 %v111
    %v115 = vpack.c.b16 %v113, %v113
    %v116 = vpack.c.b16 %v114, %v114
    %vm119 = vcmask 781312
    %120 = vst.msk [vmem:[%s3] sm:$0xf] %vm119, %v115
    %121 = vst.msk [vmem:[%s3 + $0x4] sm:$0xf] %vm119, %v116
  $region21: #{bertdot_dual_fullfuse_forward.16} parent=0 // pred_fallthru
    _
  // Predicated region
  $region22: #{bertdot_dual_fullfuse_forward.16} parent=0 // pred_check
    _
  $region23: #{bertdot_dual_fullfuse_forward.16} parent=0 // pred_check_branch
    %123 = sbr.rel (0) target = $region25
  $region24: #{bertdot_dual_fullfuse_forward.16} parent=0 // pred_region
    _
  $region25: #{bertdot_dual_fullfuse_forward.16} parent=0 // pred_fallthru
    _
  // Predicated region
  $region26: #{bertdot_dual_fullfuse_forward.16} parent=0 // pred_check
    _
  $region27: #{bertdot_dual_fullfuse_forward.16} parent=0 // pred_check_branch
    %125 = sbr.rel (0) target = $region29
  $region28: #{bertdot_dual_fullfuse_forward.16} parent=0 // pred_region
    _
  $region29: #{bertdot_dual_fullfuse_forward.16} parent=0 // pred_fallthru
    _

// kernel: bertdot_dual_fullfuse_forward.18
$region0: #{bertdot_dual_fullfuse_forward.18}
  #allocation0 [shape = 'u32[]', space=smem, size = 0x4, offset = 0x4, fixed_abs, tag = 'smem constant byte address 0x4 - core index']
  #allocation1 [shape = 'u32[144,128]{1,0:T(1,128)}', space=vmem, size = 0x12000, scoped, tag = 'internal scratch']
  #allocation2 [shape = 'f32[16,32]{1,0:T(8,128)}', space=vmem, size = 0x2000, scoped, tag = 'scratch operand']
  %s0 = inlined_call_operand.vmem [shape: bf16[16,32], index: 0, kind: input, shape index: {}]
  %s1 = inlined_call_operand.vmem [shape: bf16[32,32], index: 1, kind: input, shape index: {}]
  %s2 = inlined_call_operand.vmem [shape: f32[1,32], index: 2, kind: input, shape index: {}]
  %s3 = inlined_call_operand.vmem [shape: bf16[16,32], index: 3, kind: input, shape index: {}]
  %s4 = inlined_call_operand.vmem [shape: f32[1,32], index: 4, kind: input, shape index: {}]
  %s5 = inlined_call_operand.vmem [shape: f32[1,32], index: 5, kind: input, shape index: {}]
  %s6 = inlined_call_operand.vmem [shape: bf16[16,32], index: 6, kind: output, shape index: {}]
  %s7 = sld [smem:[#allocation0]]
  $region42: #{bertdot_dual_fullfuse_forward.18} parent=0
    _
  %s9 = ssub.s32 1, %s7
  %s10 = scalar_select 0, %s9, %s7
  // Predicated region
  $region2: #{bertdot_dual_fullfuse_forward.18} parent=0 // pred_check
    _
  $region3: #{bertdot_dual_fullfuse_forward.18} parent=0 // pred_check_branch
    %12 = sbr.rel (0) target = $region5
  $region4: #{bertdot_dual_fullfuse_forward.18} parent=0 // pred_region
    _
  $region5: #{bertdot_dual_fullfuse_forward.18} parent=0 // pred_fallthru
    _
  // Predicated region
  $region6: #{bertdot_dual_fullfuse_forward.18} parent=0 // pred_check
    _
  $region7: #{bertdot_dual_fullfuse_forward.18} parent=0 // pred_check_branch
    %14 = sbr.rel (0) target = $region9
  $region8: #{bertdot_dual_fullfuse_forward.18} parent=0 // pred_region
    _
  $region9: #{bertdot_dual_fullfuse_forward.18} parent=0 // pred_fallthru
    _
  // Predicated region
  $region10: #{bertdot_dual_fullfuse_forward.18} parent=0 // pred_check
    _
  $region11: #{bertdot_dual_fullfuse_forward.18} parent=0 // pred_check_branch
    %16 = sbr.rel (0) target = $region13
  $region12: #{bertdot_dual_fullfuse_forward.18} parent=0 // pred_region
    _
  $region13: #{bertdot_dual_fullfuse_forward.18} parent=0 // pred_fallthru
    _
  // Predicated region
  $region14: #{bertdot_dual_fullfuse_forward.18} parent=0 // pred_check
    _
  $region15: #{bertdot_dual_fullfuse_forward.18} parent=0 // pred_check_branch
    %18 = sbr.rel (0) target = $region17
  $region16: #{bertdot_dual_fullfuse_forward.18} parent=0 // pred_region
    _
  $region17: #{bertdot_dual_fullfuse_forward.18} parent=0 // pred_fallthru
    _
  // Predicated region
  $region18: #{bertdot_dual_fullfuse_forward.18} parent=0 // pred_check
    _
  $region19: #{bertdot_dual_fullfuse_forward.18} parent=0 // pred_check_branch
    %20 = sbr.rel (0) target = $region21
  $region20: #{bertdot_dual_fullfuse_forward.18} parent=0 // pred_region
    _
  $region21: #{bertdot_dual_fullfuse_forward.18} parent=0 // pred_fallthru
    _
  // Predicated region
  $region22: #{bertdot_dual_fullfuse_forward.18} parent=0 // pred_check
    _
  $region23: #{bertdot_dual_fullfuse_forward.18} parent=0 // pred_check_branch
    %22 = sbr.rel (0) target = $region25
  $region24: #{bertdot_dual_fullfuse_forward.18} parent=0 // pred_region
    _
  $region25: #{bertdot_dual_fullfuse_forward.18} parent=0 // pred_fallthru
    _
  %p24 = scmp.eq.s32.totalorder 0, 0
  // Predicated region
  $region26: #{bertdot_dual_fullfuse_forward.18} parent=0 // pred_check
    %p25 = pneg %p24
  $region27: #{bertdot_dual_fullfuse_forward.18} parent=0 // pred_check_branch
    %27 = sbr.rel (%p25) target = $region29
  $region28: #{bertdot_dual_fullfuse_forward.18} parent=0 // pred_region
    %vm28 = vcmask 261120
    %29 = vst.msk [vmem:[#allocation2] sm:$0xff] %vm28, 0.0
    %30 = vst.msk [vmem:[#allocation2 + $0x8] sm:$0xff] %vm28, 0.0
  $region29: #{bertdot_dual_fullfuse_forward.18} parent=0 // pred_fallthru
    _
  %v31 = vld [vmem:[#allocation2] sm:$0xff]
  %v32 = vld [vmem:[#allocation2 + $0x8] sm:$0xff]
  %v33 = vld [vmem:[%s0] sm:$0xf]
  %v34 = vld [vmem:[%s0 + $0x4] sm:$0xf]
  %v35 = vld [vmem:[%s1] sm:$0xf]
  %v36 = vld [vmem:[%s1 + $0x4] sm:$0xf]
  %v37 = vld [vmem:[%s1 + $0x8] sm:$0xf]
  %v38 = vld [vmem:[%s1 + $0xc] sm:$0xf]
  %v41 = vunpack.c.l.b16 %v33
  %v42 = vunpack.c.l.b16 %v34
  %v43 = vpack.c.b16 %v42, %v41
  %v48 = vunpack.c.l.b16 %v35
  %v49 = vunpack.c.l.b16 %v36
  %v50 = vunpack.c.l.b16 %v37
  %v51 = vunpack.c.l.b16 %v38
  %v52 = vpack.c.b16 %v49, %v48
  %v53 = vpack.c.b16 %v51, %v50
  %vm56 = vcmask 261120
  %v58 = vsel %vm56, %v43, 0
  %60 = vmatprep.subr.bf16.mxu0 0
  %61 = vmatpush1.bf16.msra.mxu0 0
  %62 = vmatprep.subr.bf16.mxu0 0
  %63 = vmatpush1.bf16.msra.mxu0 0
  %64 = vmatprep.subr.bf16.mxu0 0
  %65 = vmatpush1.bf16.msra.mxu0 0
  %66 = vmatprep.subr.bf16.mxu0 0
  %67 = vmatpush1.bf16.msra.mxu0 0
  %68 = vmatprep.subr.bf16.mxu0 0
  %69 = vmatpush1.bf16.msra.mxu0 0
  %70 = vmatprep.subr.bf16.mxu0 0
  %71 = vmatpush1.bf16.msra.mxu0 0
  %72 = vmatprep.subr.bf16.mxu0 0
  %73 = vmatpush1.bf16.msra.mxu0 %v53
  %74 = vmatprep.subr.bf16.mxu0 0
  %75 = vmatpush1.bf16.msra.mxu0 %v52
  %76 = vmatprep.subr.bf16.mxu0 0
  %77 = vmatpush2.bf16.msra.mxu0 0
  %78 = vmatprep.subr.bf16.mxu0 0
  %79 = vmatpush2.bf16.msra.mxu0 0
  %80 = vmatprep.subr.bf16.mxu0 0
  %81 = vmatpush2.bf16.msra.mxu0 0
  %82 = vmatprep.subr.bf16.mxu0 0
  %83 = vmatpush2.bf16.msra.mxu0 0
  %84 = vmatprep.subr.bf16.mxu0 0
  %85 = vmatpush2.bf16.msra.mxu0 0
  %86 = vmatprep.subr.bf16.mxu0 0
  %87 = vmatpush2.bf16.msra.mxu0 0
  %88 = vmatprep.subr.bf16.mxu0 0
  %89 = vmatpush2.bf16.msra.mxu0 0
  %90 = vmatprep.subr.bf16.mxu0 0
  %91 = vmatpush2.bf16.msra.mxu0 0
  %92 = vmatprep.mubr.bf16.mxu0 0
  %93 = vmatmul.mubr.bf16.gmra.mxu0 %v58
  %v94 = vpop.f32.mrf.mxu0
  %v95 = vadd.f32 0.0, %v94
  %v96 = vpop.f32.mrf.mxu0
  %v97 = vpop.f32.mrf.mxu0
  %v98 = vadd.f32 0.0, %v97
  %v99 = vpop.f32.mrf.mxu0
  %100 = vdwg.mxu0
  %v101 = vadd.f32 %v31, %v95
  %v102 = vadd.f32 %v32, %v98
  %103 = vst.msk [vmem:[#allocation2] sm:$0xff] %vm56, %v101
  %104 = vst.msk [vmem:[#allocation2 + $0x8] sm:$0xff] %vm56, %v102
  // Predicated region
  $region30: #{bertdot_dual_fullfuse_forward.18} parent=0 // pred_check
    %p105 = pneg %p24
  $region31: #{bertdot_dual_fullfuse_forward.18} parent=0 // pred_check_branch
    %107 = sbr.rel (%p105) target = $region33
  $region32: #{bertdot_dual_fullfuse_forward.18} parent=0 // pred_region
    %v108 = vld [vmem:[#allocation2] sm:$0xff]
    %v109 = vld [vmem:[#allocation2 + $0x8] sm:$0xff]
    %v110 = vld [vmem:[%s2] sm:$0x1]
    %v112 = vlaneseq
    %v113 = vshrl.u32 %v112, 7
    %v114 = vsub.s32 0, %v113
    %v115 = vrot.slane %v110, %v114
    %v117 = vadd.f32 %v108, %v115
    %v118 = vadd.f32 %v109, %v115
    %v119 = vld [vmem:[%s3] sm:$0xf]
    %v120 = vld [vmem:[%s3 + $0x4] sm:$0xf]
    %v121 = vunpack.c.l.bf16 %v119
    %v122 = vunpack.c.l.bf16 %v120
    %v123 = vadd.f32 %v117, %v121
    %v124 = vadd.f32 %v118, %v122
    %v125 = vsel %vm56, %v123, 0.0
    %126 = vadd.xlane.f32.xlu0 %v125
    %v127 = vpop.xlane.xlu0 %126
    %v128 = vsel %vm56, %v124, 0.0
    %129 = vadd.xlane.f32.xlu0 %v128
    %v130 = vpop.xlane.xlu0 %129
    %v131 = vrcp.pop 32.0
    %v132 = vmul.f32 %v127, %v131
    %v133 = vmul.f32 %v130, %v131
    %v134 = vsub.f32 %v123, %v132
    %v135 = vsub.f32 %v124, %v133
    %v136 = vmul.f32 %v134, %v134
    %v137 = vmul.f32 %v135, %v135
    %v138 = vsel %vm56, %v136, 0.0
    %139 = vadd.xlane.f32.xlu0 %v138
    %v140 = vpop.xlane.xlu0 %139
    %v141 = vsel %vm56, %v137, 0.0
    %142 = vadd.xlane.f32.xlu0 %v141
    %v143 = vpop.xlane.xlu0 %142
    %v144 = vmul.f32 %v140, %v131
    %v145 = vmul.f32 %v143, %v131
    %v146 = vadd.f32 %v144, 1e-12
    %v147 = vadd.f32 %v145, 1e-12
    %v148 = vrsqrt.pop %v146
    %v149 = vrsqrt.pop %v147
    %v150 = vmul.f32 %v134, %v148
    %v151 = vmul.f32 %v135, %v149
    %v152 = vld [vmem:[%s4] sm:$0x1]
    %v154 = vlaneseq
    %v155 = vshrl.u32 %v154, 7
    %v156 = vsub.s32 0, %v155
    %v157 = vrot.slane %v152, %v156
    %v159 = vmul.f32 %v150, %v157
    %v160 = vmul.f32 %v151, %v157
    %v161 = vld [vmem:[%s5] sm:$0x1]
    %v163 = vlaneseq
    %v164 = vshrl.u32 %v163, 7
    %v165 = vsub.s32 0, %v164
    %v166 = vrot.slane %v161, %v165
    %v168 = vadd.f32 %v159, %v166
    %v169 = vadd.f32 %v160, %v166
    %v170 = vpack.c.bf16 %v169, %v168
    %v172 = vunpack.c.l.b16 %v170
    %v173 = vunpack.c.h.b16 %v170
    %v174 = vpack.c.b16 %v172, %v172
    %v175 = vpack.c.b16 %v173, %v173
    %vm178 = vcmask 257024
    %179 = vst.msk [vmem:[%s6] sm:$0xf] %vm178, %v174
    %180 = vst.msk [vmem:[%s6 + $0x4] sm:$0xf] %vm178, %v175
  $region33: #{bertdot_dual_fullfuse_forward.18} parent=0 // pred_fallthru
    _
  // Predicated region
  $region34: #{bertdot_dual_fullfuse_forward.18} parent=0 // pred_check
    _
  $region35: #{bertdot_dual_fullfuse_forward.18} parent=0 // pred_check_branch
    %182 = sbr.rel (0) target = $region37
  $region36: #{bertdot_dual_fullfuse_forward.18} parent=0 // pred_region
    _
  $region37: #{bertdot_dual_fullfuse_forward.18} parent=0 // pred_fallthru
    _
  // Predicated region
  $region38: #{bertdot_dual_fullfuse_forward.18} parent=0 // pred_check
    _
  $region39: #{bertdot_dual_fullfuse_forward.18} parent=0 // pred_check_branch
    %184 = sbr.rel (0) target = $region41
  $region40: #{bertdot_dual_fullfuse_forward.18} parent=0 // pred_region
    _
  $region41: #{bertdot_dual_fullfuse_forward.18} parent=0 // pred_fallthru
    _

// kernel: bertdot_dual_fullfuse_forward.15
$region0: #{bertdot_dual_fullfuse_forward.15}
  #allocation0 [shape = 'u32[]', space=smem, size = 0x4, offset = 0x4, fixed_abs, tag = 'smem constant byte address 0x4 - core index']
  #allocation1 [shape = 'u32[144,128]{1,0:T(1,128)}', space=vmem, size = 0x12000, scoped, tag = 'internal scratch']
  %s0 = inlined_call_operand.vmem [shape: bf16[16,32], index: 0, kind: input, shape index: {}]
  %s1 = inlined_call_operand.vmem [shape: f32[1,32], index: 1, kind: input, shape index: {}]
  %s2 = inlined_call_operand.vmem [shape: f32[1,32], index: 2, kind: input, shape index: {}]
  %s3 = inlined_call_operand.vmem [shape: bf16[16,32], index: 3, kind: output, shape index: {}]
  %s4 = sld [smem:[#allocation0]]
  $region22: #{bertdot_dual_fullfuse_forward.15} parent=0
    _
  %s6 = ssub.s32 1, %s4
  %s7 = scalar_select 0, %s6, %s4
  // Predicated region
  $region2: #{bertdot_dual_fullfuse_forward.15} parent=0 // pred_check
    _
  $region3: #{bertdot_dual_fullfuse_forward.15} parent=0 // pred_check_branch
    %9 = sbr.rel (0) target = $region5
  $region4: #{bertdot_dual_fullfuse_forward.15} parent=0 // pred_region
    _
  $region5: #{bertdot_dual_fullfuse_forward.15} parent=0 // pred_fallthru
    _
  // Predicated region
  $region6: #{bertdot_dual_fullfuse_forward.15} parent=0 // pred_check
    _
  $region7: #{bertdot_dual_fullfuse_forward.15} parent=0 // pred_check_branch
    %11 = sbr.rel (0) target = $region9
  $region8: #{bertdot_dual_fullfuse_forward.15} parent=0 // pred_region
    _
  $region9: #{bertdot_dual_fullfuse_forward.15} parent=0 // pred_fallthru
    _
  // Predicated region
  $region10: #{bertdot_dual_fullfuse_forward.15} parent=0 // pred_check
    _
  $region11: #{bertdot_dual_fullfuse_forward.15} parent=0 // pred_check_branch
    %13 = sbr.rel (0) target = $region13
  $region12: #{bertdot_dual_fullfuse_forward.15} parent=0 // pred_region
    _
  $region13: #{bertdot_dual_fullfuse_forward.15} parent=0 // pred_fallthru
    _
  %v14 = vld [vmem:[%s0] sm:$0xf]
  %v15 = vld [vmem:[%s0 + $0x4] sm:$0xf]
  %v16 = vunpack.c.l.bf16 %v14
  %v17 = vunpack.c.l.bf16 %v15
  %vm18 = vcmask 261120
  %v19 = vsel %vm18, %v16, 0.0
  %20 = vadd.xlane.f32.xlu0 %v19
  %v21 = vpop.xlane.xlu0 %20
  %v22 = vsel %vm18, %v17, 0.0
  %23 = vadd.xlane.f32.xlu0 %v22
  %v24 = vpop.xlane.xlu0 %23
  %v25 = vrcp.pop 32.0
  %v26 = vmul.f32 %v21, %v25
  %v27 = vmul.f32 %v24, %v25
  %v28 = vsub.f32 %v16, %v26
  %v29 = vsub.f32 %v17, %v27
  %v30 = vmul.f32 %v28, %v28
  %v31 = vmul.f32 %v29, %v29
  %v32 = vsel %vm18, %v30, 0.0
  %33 = vadd.xlane.f32.xlu0 %v32
  %v34 = vpop.xlane.xlu0 %33
  %v35 = vsel %vm18, %v31, 0.0
  %36 = vadd.xlane.f32.xlu0 %v35
  %v37 = vpop.xlane.xlu0 %36
  %v38 = vmul.f32 %v34, %v25
  %v39 = vmul.f32 %v37, %v25
  %v40 = vadd.f32 %v38, 1e-12
  %v41 = vadd.f32 %v39, 1e-12
  %v42 = vrsqrt.pop %v40
  %v43 = vrsqrt.pop %v41
  %v44 = vmul.f32 %v28, %v42
  %v45 = vmul.f32 %v29, %v43
  %v46 = vld [vmem:[%s1] sm:$0x1]
  %v48 = vlaneseq
  %v49 = vshrl.u32 %v48, 7
  %v50 = vsub.s32 0, %v49
  %v51 = vrot.slane %v46, %v50
  %v53 = vmul.f32 %v44, %v51
  %v54 = vmul.f32 %v45, %v51
  %v55 = vld [vmem:[%s2] sm:$0x1]
  %v57 = vlaneseq
  %v58 = vshrl.u32 %v57, 7
  %v59 = vsub.s32 0, %v58
  %v60 = vrot.slane %v55, %v59
  %v62 = vadd.f32 %v53, %v60
  %v63 = vadd.f32 %v54, %v60
  %v64 = vpack.c.bf16 %v63, %v62
  %v66 = vunpack.c.l.b16 %v64
  %v67 = vunpack.c.h.b16 %v64
  %v68 = vpack.c.b16 %v66, %v66
  %v69 = vpack.c.b16 %v67, %v67
  %vm72 = vcmask 257024
  %73 = vst.msk [vmem:[%s3] sm:$0xf] %vm72, %v68
  %74 = vst.msk [vmem:[%s3 + $0x4] sm:$0xf] %vm72, %v69
  // Predicated region
  $region14: #{bertdot_dual_fullfuse_forward.15} parent=0 // pred_check
    _
  $region15: #{bertdot_dual_fullfuse_forward.15} parent=0 // pred_check_branch
    %76 = sbr.rel (0) target = $region17
  $region16: #{bertdot_dual_fullfuse_forward.15} parent=0 // pred_region
    _
  $region17: #{bertdot_dual_fullfuse_forward.15} parent=0 // pred_fallthru
    _
  // Predicated region
  $region18: #{bertdot_dual_fullfuse_forward.15} parent=0 // pred_check
    _
  $region19: #{bertdot_dual_fullfuse_forward.15} parent=0 // pred_check_branch
    %78 = sbr.rel (0) target = $region21
  $region20: #{bertdot_dual_fullfuse_forward.15} parent=0 // pred_region
    _
  $region21: #{bertdot_dual_fullfuse_forward.15} parent=0 // pred_fallthru
    _

// kernel: bertdot_dual_fullfuse_forward.17
$region0: #{bertdot_dual_fullfuse_forward.17}
  #allocation0 [shape = 'u32[]', space=smem, size = 0x4, offset = 0x4, fixed_abs, tag = 'smem constant byte address 0x4 - core index']
  #allocation1 [shape = 'u32[144,128]{1,0:T(1,128)}', space=vmem, size = 0x12000, scoped, tag = 'internal scratch']
  %s0 = inlined_call_operand.vmem [shape: bf16[2,8,96], index: 0, kind: input, shape index: {}]
  %s1 = inlined_call_operand.vmem [shape: f32[2,1,8], index: 1, kind: input, shape index: {}]
  %s2 = inlined_call_operand.vmem [shape: bf16[2,8,32], index: 2, kind: output, shape index: {}]
  %s3 = sld [smem:[#allocation0]]
  $region41: #{bertdot_dual_fullfuse_forward.17} parent=0
    _
  %s5 = ssub.s32 1, %s3
  %s6 = scalar_select 0, %s5, %s3
  loop: start=0, step=1, limit=4
  $region2: #{bertdot_dual_fullfuse_forward.17} parent=0 // loop_pre_header
    _
  $region3: #{bertdot_dual_fullfuse_forward.17} parent=0 // loop_header
    %s8 = sphi 0, %s12
    %p9 = scmp.ge.s32.totalorder %s8, 4
    %s18 = sphi 0, %s20
    %s21 = sphi 0, %s18
    %s22 = sphi 0, %s21
    %s38 = sphi 0, %s22
    %s44 = sphi 0, %s46
    %s47 = sphi 0, %s44
    %s48 = sphi 0, %s47
    %s64 = sphi 0, %s48
    %s70 = sphi 0, %s72
    %s73 = sphi 0, %s70
    %s74 = sphi 0, %s73
    %s90 = sphi 0, %s74
  $region4: #{bertdot_dual_fullfuse_forward.17} parent=0 // loop_header_branch
    %11 = sbr.rel (%p9) target = $region8
  $region5: #{bertdot_dual_fullfuse_forward.17} parent=0 // loop_body
    %s13 = ssub.s32 %s8, 1
    %s14 = ssub.s32 %s8, 2
    %s15 = sadd.s32 %s8, 1
    %s16 = ssub.s32 %s8, %s15
    %p17 = scmp.eq.s32.totalorder %s16, 0
    %s19 = sadd.s32 %s18, 1
    %s20 = scalar_select %p17, %s18, %s19
    %p23 = pneg %p17
    %p24 = scmp.eq.s32.totalorder %s8, 1
    %p25 = por %p23, %p24
    %p26 = scmp.ne.s32.totalorder %s18, %s21
    %p27 = scmp.eq.s32.totalorder %s8, 0
    %p28 = por %p26, %p27
    %p29 = scmp.ne.s32.totalorder %s18, %s21
    %p30 = scmp.eq.s32.totalorder %s13, 1
    %p31 = por %p29, %p30
    %p32 = scmp.ne.s32.totalorder %s21, %s22
    %p33 = scmp.eq.s32.totalorder %s13, 0
    %p34 = por %p32, %p33
    %p35 = scmp.ne.s32.totalorder %s21, %s22
    %p36 = scmp.eq.s32.totalorder %s14, 1
    %p37 = por %p35, %p36
    %p39 = scmp.ne.s32.totalorder %s22, %s38
    %p40 = scmp.eq.s32.totalorder %s14, 0
    %p41 = por %p39, %p40
    %s42 = ssub.s32 %s8, %s15
    %p43 = scmp.eq.s32.totalorder %s42, 0
    %s45 = sadd.s32 %s44, 1
    %s46 = scalar_select %p43, %s44, %s45
    %p49 = pneg %p43
    %p50 = scmp.eq.s32.totalorder %s8, 1
    %p51 = por %p49, %p50
    %p52 = scmp.ne.s32.totalorder %s44, %s47
    %p53 = scmp.eq.s32.totalorder %s8, 0
    %p54 = por %p52, %p53
    %p55 = scmp.ne.s32.totalorder %s44, %s47
    %p56 = scmp.eq.s32.totalorder %s13, 1
    %p57 = por %p55, %p56
    %p58 = scmp.ne.s32.totalorder %s47, %s48
    %p59 = scmp.eq.s32.totalorder %s13, 0
    %p60 = por %p58, %p59
    %p61 = scmp.ne.s32.totalorder %s47, %s48
    %p62 = scmp.eq.s32.totalorder %s14, 1
    %p63 = por %p61, %p62
    %p65 = scmp.ne.s32.totalorder %s48, %s64
    %p66 = scmp.eq.s32.totalorder %s14, 0
    %p67 = por %p65, %p66
    %s68 = ssub.s32 %s8, %s15
    %p69 = scmp.eq.s32.totalorder %s68, 0
    %s71 = sadd.s32 %s70, 1
    %s72 = scalar_select %p69, %s70, %s71
    %p75 = pneg %p69
    %p76 = scmp.eq.s32.totalorder %s8, 1
    %p77 = por %p75, %p76
    %p78 = scmp.ne.s32.totalorder %s70, %s73
    %p79 = scmp.eq.s32.totalorder %s8, 0
    %p80 = por %p78, %p79
    %p81 = scmp.ne.s32.totalorder %s70, %s73
    %p82 = scmp.eq.s32.totalorder %s13, 1
    %p83 = por %p81, %p82
    %p84 = scmp.ne.s32.totalorder %s73, %s74
    %p85 = scmp.eq.s32.totalorder %s13, 0
    %p86 = por %p84, %p85
    %p87 = scmp.ne.s32.totalorder %s73, %s74
    %p88 = scmp.eq.s32.totalorder %s14, 1
    %p89 = por %p87, %p88
    %p91 = scmp.ne.s32.totalorder %s74, %s90
    %p92 = scmp.eq.s32.totalorder %s14, 0
    %p93 = por %p91, %p92
    %p94 = scmp.le.s32.totalorder 1, %s8
    %p95 = scmp.lt.s32.totalorder %s8, 3
    %p96 = pnand %p94, %p95
    %p97 = pneg %p96
    // Predicated region
    $region9: #{bertdot_dual_fullfuse_forward.17} parent=5 // pred_check
      _
    $region10: #{bertdot_dual_fullfuse_forward.17} parent=5 // pred_check_branch
      %99 = sbr.rel (%p96) target = $region12
    $region11: #{bertdot_dual_fullfuse_forward.17} parent=5 // pred_region
      %s100 = ssub.s32 %s8, 1
    $region12: #{bertdot_dual_fullfuse_forward.17} parent=5 // pred_fallthru
      _
    %p101 = scmp.lt.s32.totalorder %s8, 2
    // Predicated region
    $region13: #{bertdot_dual_fullfuse_forward.17} parent=5 // pred_check
      %p102 = pneg %p101
    $region14: #{bertdot_dual_fullfuse_forward.17} parent=5 // pred_check_branch
      %104 = sbr.rel (%p102) target = $region16
    $region15: #{bertdot_dual_fullfuse_forward.17} parent=5 // pred_region
      // Predicated region
      $region17: #{bertdot_dual_fullfuse_forward.17} parent=15 // pred_check
        %p105 = pneg %p28
      $region18: #{bertdot_dual_fullfuse_forward.17} parent=15 // pred_check_branch
        %107 = sbr.rel (%p105) target = $region20
      $region19: #{bertdot_dual_fullfuse_forward.17} parent=15 // pred_region
        %p108 = scmp.lt.s32.totalorder %s8, 1
        %s109 = scalar_select %p108, %s8, 1
        %s110 = smul.addr %s109, 4
        %s111 = scalar_lea.vmem %s0, %s110
      $region20: #{bertdot_dual_fullfuse_forward.17} parent=15 // pred_fallthru
        _
      // Predicated region
      $region21: #{bertdot_dual_fullfuse_forward.17} parent=15 // pred_check
        %p112 = pneg %p54
      $region22: #{bertdot_dual_fullfuse_forward.17} parent=15 // pred_check_branch
        %114 = sbr.rel (%p112) target = $region24
      $region23: #{bertdot_dual_fullfuse_forward.17} parent=15 // pred_region
        %p115 = scmp.lt.s32.totalorder %s8, 1
        %s116 = scalar_select %p115, %s8, 1
        %s117 = scalar_lea.vmem %s1, %s116
      $region24: #{bertdot_dual_fullfuse_forward.17} parent=15 // pred_fallthru
        _
    $region16: #{bertdot_dual_fullfuse_forward.17} parent=5 // pred_fallthru
      _
    %p118 = scmp.le.s32.totalorder 1, %s8
    %p119 = scmp.lt.s32.totalorder %s8, 3
    %p120 = pnand %p118, %p119
    %p121 = pneg %p120
    // Predicated region
    $region25: #{bertdot_dual_fullfuse_forward.17} parent=5 // pred_check
      _
    $region26: #{bertdot_dual_fullfuse_forward.17} parent=5 // pred_check_branch
      %123 = sbr.rel (%p120) target = $region28
    $region27: #{bertdot_dual_fullfuse_forward.17} parent=5 // pred_region
      %s124 = ssub.s32 %s8, 1
      %p125 = scmp.lt.s32.totalorder %s13, 1
      %s126 = scalar_select %p125, %s13, 1
      %s127 = smul.addr %s126, 4
      %s128 = scalar_lea.vmem %s0, %s127
      %p129 = pneg %p34
      %p130 = pneg %p31
      %p131 = scmp.lt.s32.totalorder %s13, 1
      %s132 = scalar_select %p131, %s13, 1
      %s133 = scalar_lea.vmem %s1, %s132
      %p134 = pneg %p60
      %p135 = pneg %p57
      %p136 = pneg %p86
      %p137 = pneg %p83
      %p138 = scmp.lt.s32.totalorder %s13, 1
      %s139 = scalar_select %p138, %s13, 1
      %s140 = smul.addr %s139, 4
      %s141 = scalar_lea.vmem %s2, %s140
      %p142 = scmp.lt.s32.totalorder %s13, 1
      %s143 = scalar_select %p142, %s13, 1
      %s144 = smul.addr %s143, 4
      %s145 = scalar_lea.vmem %s0, %s144
      %p146 = scmp.lt.s32.totalorder %s13, 1
      %s147 = scalar_select %p146, %s13, 1
      %s148 = scalar_lea.vmem %s1, %s147
      %p149 = scmp.lt.s32.totalorder %s13, 1
      %s150 = scalar_select %p149, %s13, 1
      %s151 = smul.addr %s150, 4
      %s152 = scalar_lea.vmem %s2, %s151
      %v155 = vld [vmem:[%s145] sm:$0xf]
      %v156 = vld [vmem:[%s148] sm:$0x1]
      %v157 = vmul.bf16 %v155, 1048592000
      %v159 = vlaneseq
      %v160 = vshrl.u32 %v159, 7
      %v161 = vsub.s32 0, %v160
      %v162 = vrot.slane %v156, %v161
      %v165 = vunpack.c.l.b16 %v155
      %v166 = vpack.c.b16 %v165, %v165
      %167 = vrot.lane.b32.xlu0 %v166, 96
      %v168 = vpop.permute.xlu0 %167
      %vm169 = vcmask 130048
      %v171 = vsel %vm169, %v157, 0
      %v174 = vsel %vm169, %v168, 0
      %176 = vmatprep.subr.bf16.mxu0 0
      %177 = vmatpush1.bf16.xpose.msra.mxu0 0
      %178 = vmatprep.subr.bf16.mxu0 0
      %179 = vmatpush1.bf16.xpose.msra.mxu0 0
      %180 = vmatprep.subr.bf16.mxu0 0
      %181 = vmatpush1.bf16.xpose.msra.mxu0 0
      %182 = vmatprep.subr.bf16.mxu0 0
      %183 = vmatpush1.bf16.xpose.msra.mxu0 0
      %184 = vmatprep.subr.bf16.mxu0 0
      %185 = vmatpush1.bf16.xpose.msra.mxu0 0
      %186 = vmatprep.subr.bf16.mxu0 0
      %187 = vmatpush1.bf16.xpose.msra.mxu0 0
      %188 = vmatprep.subr.bf16.mxu0 0
      %189 = vmatpush1.bf16.xpose.msra.mxu0 0
      %190 = vmatprep.subr.bf16.mxu0 0
      %191 = vmatpush1.bf16.xpose.msra.mxu0 %v174
      %192 = vmatprep.subr.bf16.mxu0 0
      %193 = vmatpush2.bf16.xpose.msra.mxu0 0
      %194 = vmatprep.subr.bf16.mxu0 0
      %195 = vmatpush2.bf16.xpose.msra.mxu0 0
      %196 = vmatprep.subr.bf16.mxu0 0
      %197 = vmatpush2.bf16.xpose.msra.mxu0 0
      %198 = vmatprep.subr.bf16.mxu0 0
      %199 = vmatpush2.bf16.xpose.msra.mxu0 0
      %200 = vmatprep.subr.bf16.mxu0 0
      %201 = vmatpush2.bf16.xpose.msra.mxu0 0
      %202 = vmatprep.subr.bf16.mxu0 0
      %203 = vmatpush2.bf16.xpose.msra.mxu0 0
      %204 = vmatprep.subr.bf16.mxu0 0
      %205 = vmatpush2.bf16.xpose.msra.mxu0 0
      %206 = vmatprep.subr.bf16.mxu0 0
      %207 = vmatpush2.bf16.xpose.msra.mxu0 0
      %208 = vmatprep.mubr.bf16.mxu0 0
      %209 = vmatmul.mubr.bf16.gmra.mxu0 %v171
      %v210 = vpop.f32.mrf.mxu0
      %v211 = vadd.f32 %v162, %v210
      %v212 = vpop.f32.mrf.mxu0
      %v213 = vpop.f32.mrf.mxu0
      %v214 = vpop.f32.mrf.mxu0
      %215 = vdwg.mxu0
      %vm216 = vcmask 64512
      %v217 = vsel %vm216, %v211, -inf
      %218 = vmax.xlane.f32.xlu0 %v217
      %v219 = vpop.xlane.xlu0 %218
      %v220 = vsub.f32 %v211, %v219
      %v221 = vmul.f32 %v220, 1.442695
      %v222 = vpow.pop %v221
      %v223 = vsel %vm216, %v222, 0.0
      %224 = vadd.xlane.f32.xlu0 %v223
      %v225 = vpop.xlane.xlu0 %224
      %v226 = vrcp.pop %v225
      %v227 = vmul.f32 %v222, %v226
      %v228 = vpack.c.bf16 %v227, %v227
      %229 = vrot.lane.b32.xlu0 %v166, 64
      %v230 = vpop.permute.xlu0 %229
      %v232 = vsel %vm216, %v228, 0
      %vm234 = vcmask 1043456
      %v236 = vsel %vm234, %v230, 0
      %238 = vmatprep.subr.bf16.mxu0 0
      %239 = vmatpush1.bf16.msra.mxu0 0
      %240 = vmatprep.subr.bf16.mxu0 0
      %241 = vmatpush1.bf16.msra.mxu0 0
      %242 = vmatprep.subr.bf16.mxu0 0
      %243 = vmatpush1.bf16.msra.mxu0 0
      %244 = vmatprep.subr.bf16.mxu0 0
      %245 = vmatpush1.bf16.msra.mxu0 0
      %246 = vmatprep.subr.bf16.mxu0 0
      %247 = vmatpush1.bf16.msra.mxu0 0
      %248 = vmatprep.subr.bf16.mxu0 0
      %249 = vmatpush1.bf16.msra.mxu0 0
      %250 = vmatprep.subr.bf16.mxu0 0
      %251 = vmatpush1.bf16.msra.mxu0 0
      %252 = vmatprep.subr.bf16.mxu0 0
      %253 = vmatpush1.bf16.msra.mxu0 %v236
      %254 = vmatprep.subr.bf16.mxu0 0
      %255 = vmatpush2.bf16.msra.mxu0 0
      %256 = vmatprep.subr.bf16.mxu0 0
      %257 = vmatpush2.bf16.msra.mxu0 0
      %258 = vmatprep.subr.bf16.mxu0 0
      %259 = vmatpush2.bf16.msra.mxu0 0
      %260 = vmatprep.subr.bf16.mxu0 0
      %261 = vmatpush2.bf16.msra.mxu0 0
      %262 = vmatprep.subr.bf16.mxu0 0
      %263 = vmatpush2.bf16.msra.mxu0 0
      %264 = vmatprep.subr.bf16.mxu0 0
      %265 = vmatpush2.bf16.msra.mxu0 0
      %266 = vmatprep.subr.bf16.mxu0 0
      %267 = vmatpush2.bf16.msra.mxu0 0
      %268 = vmatprep.subr.bf16.mxu0 0
      %269 = vmatpush2.bf16.msra.mxu0 0
      %270 = vmatprep.mubr.bf16.mxu0 0
      %271 = vmatmul.mubr.bf16.gmra.mxu0 %v232
      %v272 = vpop.f32.mrf.mxu0
      %v273 = vadd.f32 0.0, %v272
      %v274 = vpop.f32.mrf.mxu0
      %v275 = vpop.f32.mrf.mxu0
      %v276 = vpop.f32.mrf.mxu0
      %277 = vdwg.mxu0
      %v278 = vpack.c.bf16 %v273, %v273
      %vm279 = vcmask 125952
      %280 = vst.msk [vmem:[%s152] sm:$0xf] %vm279, %v278
      %v282 = vunpack.c.l.b16 %v157
      %v283 = vpack.c.b16 %v282, %v282
      %284 = vrot.lane.b32.xlu0 %v283, 112
      %v285 = vpop.permute.xlu0 %284
      %286 = vrot.lane.b32.xlu0 %v166, 80
      %v287 = vpop.permute.xlu0 %286
      %v289 = vsel %vm169, %v285, 0
      %v292 = vsel %vm169, %v287, 0
      %294 = vmatprep.subr.bf16.mxu0 0
      %295 = vmatpush1.bf16.xpose.msra.mxu0 0
      %296 = vmatprep.subr.bf16.mxu0 0
      %297 = vmatpush1.bf16.xpose.msra.mxu0 0
      %298 = vmatprep.subr.bf16.mxu0 0
      %299 = vmatpush1.bf16.xpose.msra.mxu0 0
      %300 = vmatprep.subr.bf16.mxu0 0
      %301 = vmatpush1.bf16.xpose.msra.mxu0 0
      %302 = vmatprep.subr.bf16.mxu0 0
      %303 = vmatpush1.bf16.xpose.msra.mxu0 0
      %304 = vmatprep.subr.bf16.mxu0 0
      %305 = vmatpush1.bf16.xpose.msra.mxu0 0
      %306 = vmatprep.subr.bf16.mxu0 0
      %307 = vmatpush1.bf16.xpose.msra.mxu0 0
      %308 = vmatprep.subr.bf16.mxu0 0
      %309 = vmatpush1.bf16.xpose.msra.mxu0 %v292
      %310 = vmatprep.subr.bf16.mxu0 0
      %311 = vmatpush2.bf16.xpose.msra.mxu0 0
      %312 = vmatprep.subr.bf16.mxu0 0
      %313 = vmatpush2.bf16.xpose.msra.mxu0 0
      %314 = vmatprep.subr.bf16.mxu0 0
      %315 = vmatpush2.bf16.xpose.msra.mxu0 0
      %316 = vmatprep.subr.bf16.mxu0 0
      %317 = vmatpush2.bf16.xpose.msra.mxu0 0
      %318 = vmatprep.subr.bf16.mxu0 0
      %319 = vmatpush2.bf16.xpose.msra.mxu0 0
      %320 = vmatprep.subr.bf16.mxu0 0
      %321 = vmatpush2.bf16.xpose.msra.mxu0 0
      %322 = vmatprep.subr.bf16.mxu0 0
      %323 = vmatpush2.bf16.xpose.msra.mxu0 0
      %324 = vmatprep.subr.bf16.mxu0 0
      %325 = vmatpush2.bf16.xpose.msra.mxu0 0
      %326 = vmatprep.mubr.bf16.mxu0 0
      %327 = vmatmul.mubr.bf16.gmra.mxu0 %v289
      %v328 = vpop.f32.mrf.mxu0
      %v329 = vadd.f32 %v162, %v328
      %v330 = vpop.f32.mrf.mxu0
      %v331 = vpop.f32.mrf.mxu0
      %v332 = vpop.f32.mrf.mxu0
      %333 = vdwg.mxu0
      %v334 = vsel %vm216, %v329, -inf
      %335 = vmax.xlane.f32.xlu0 %v334
      %v336 = vpop.xlane.xlu0 %335
      %v337 = vsub.f32 %v329, %v336
      %v338 = vmul.f32 %v337, 1.442695
      %v339 = vpow.pop %v338
      %v340 = vsel %vm216, %v339, 0.0
      %341 = vadd.xlane.f32.xlu0 %v340
      %v342 = vpop.xlane.xlu0 %341
      %v343 = vrcp.pop %v342
      %v344 = vmul.f32 %v339, %v343
      %v345 = vpack.c.bf16 %v344, %v344
      %346 = vrot.lane.b32.xlu0 %v166, 48
      %v347 = vpop.permute.xlu0 %346
      %v349 = vsel %vm216, %v345, 0
      %v352 = vsel %vm234, %v347, 0
      %354 = vmatprep.subr.bf16.mxu0 0
      %355 = vmatpush1.bf16.msra.mxu0 0
      %356 = vmatprep.subr.bf16.mxu0 0
      %357 = vmatpush1.bf16.msra.mxu0 0
      %358 = vmatprep.subr.bf16.mxu0 0
      %359 = vmatpush1.bf16.msra.mxu0 0
      %360 = vmatprep.subr.bf16.mxu0 0
      %361 = vmatpush1.bf16.msra.mxu0 0
      %362 = vmatprep.subr.bf16.mxu0 0
      %363 = vmatpush1.bf16.msra.mxu0 0
      %364 = vmatprep.subr.bf16.mxu0 0
      %365 = vmatpush1.bf16.msra.mxu0 0
      %366 = vmatprep.subr.bf16.mxu0 0
      %367 = vmatpush1.bf16.msra.mxu0 0
      %368 = vmatprep.subr.bf16.mxu0 0
      %369 = vmatpush1.bf16.msra.mxu0 %v352
      %370 = vmatprep.subr.bf16.mxu0 0
      %371 = vmatpush2.bf16.msra.mxu0 0
      %372 = vmatprep.subr.bf16.mxu0 0
      %373 = vmatpush2.bf16.msra.mxu0 0
      %374 = vmatprep.subr.bf16.mxu0 0
      %375 = vmatpush2.bf16.msra.mxu0 0
      %376 = vmatprep.subr.bf16.mxu0 0
      %377 = vmatpush2.bf16.msra.mxu0 0
      %378 = vmatprep.subr.bf16.mxu0 0
      %379 = vmatpush2.bf16.msra.mxu0 0
      %380 = vmatprep.subr.bf16.mxu0 0
      %381 = vmatpush2.bf16.msra.mxu0 0
      %382 = vmatprep.subr.bf16.mxu0 0
      %383 = vmatpush2.bf16.msra.mxu0 0
      %384 = vmatprep.subr.bf16.mxu0 0
      %385 = vmatpush2.bf16.msra.mxu0 0
      %386 = vmatprep.mubr.bf16.mxu0 0
      %387 = vmatmul.mubr.bf16.gmra.mxu0 %v349
      %v388 = vpop.f32.mrf.mxu0
      %v389 = vadd.f32 0.0, %v388
      %v390 = vpop.f32.mrf.mxu0
      %v391 = vpop.f32.mrf.mxu0
      %v392 = vpop.f32.mrf.mxu0
      %393 = vdwg.mxu0
      %v394 = vpack.c.bf16 %v389, %v389
      %v396 = vunpack.c.l.b16 %v394
      %v397 = vpack.c.b16 %v396, %v396
      %398 = vrot.lane.b32.xlu0 %v397, 16
      %v399 = vpop.permute.xlu0 %398
      %vm401 = vcmask 257152
      %402 = vst.msk [vmem:[%s152] sm:$0xf] %vm401, %v399
      %p403 = scmp.lt.s32.totalorder %s13, 1
      %s404 = scalar_select %p403, %s13, 1
      %s405 = smul.addr %s404, 4
      %s406 = scalar_lea.vmem %s2, %s405
      // Predicated region
      $region29: #{bertdot_dual_fullfuse_forward.17} parent=27 // pred_check
        %p407 = pneg %p83
      $region30: #{bertdot_dual_fullfuse_forward.17} parent=27 // pred_check_branch
        %409 = sbr.rel (%p407) target = $region32
      $region31: #{bertdot_dual_fullfuse_forward.17} parent=27 // pred_region
        _
      $region32: #{bertdot_dual_fullfuse_forward.17} parent=27 // pred_fallthru
        _
    $region28: #{bertdot_dual_fullfuse_forward.17} parent=5 // pred_fallthru
      _
    %p410 = scmp.le.s32.totalorder 2, %s8
    // Predicated region
    $region33: #{bertdot_dual_fullfuse_forward.17} parent=5 // pred_check
      %p411 = pneg %p410
    $region34: #{bertdot_dual_fullfuse_forward.17} parent=5 // pred_check_branch
      %413 = sbr.rel (%p411) target = $region36
    $region35: #{bertdot_dual_fullfuse_forward.17} parent=5 // pred_region
      %s414 = ssub.s32 %s8, 2
      // Predicated region
      $region37: #{bertdot_dual_fullfuse_forward.17} parent=35 // pred_check
        %p415 = pneg %p89
      $region38: #{bertdot_dual_fullfuse_forward.17} parent=35 // pred_check_branch
        %417 = sbr.rel (%p415) target = $region40
      $region39: #{bertdot_dual_fullfuse_forward.17} parent=35 // pred_region
        %p418 = scmp.lt.s32.totalorder %s14, 1
        %s419 = scalar_select %p418, %s14, 1
        %s420 = smul.addr %s419, 4
        %s421 = scalar_lea.vmem %s2, %s420
      $region40: #{bertdot_dual_fullfuse_forward.17} parent=35 // pred_fallthru
        _
    $region36: #{bertdot_dual_fullfuse_forward.17} parent=5 // pred_fallthru
      _
  $region6: #{bertdot_dual_fullfuse_forward.17} parent=0 // loop_footer
    %s12 = sadd.s32 1, %s8
  $region7: #{bertdot_dual_fullfuse_forward.17} parent=0 // loop_footer_branch
    %7 = sbr.rel target = $region3
  $region8: #{bertdot_dual_fullfuse_forward.17} parent=0 // loop_exit
    _

// kernel: bertdot_dual_fullfuse_forward.20
$region0: #{bertdot_dual_fullfuse_forward.20}
  #allocation0 [shape = 'u32[]', space=smem, size = 0x4, offset = 0x4, fixed_abs, tag = 'smem constant byte address 0x4 - core index']
  #allocation1 [shape = 'u32[144,128]{1,0:T(1,128)}', space=vmem, size = 0x12000, scoped, tag = 'internal scratch']
  #allocation2 [shape = 'f32[16,32]{1,0:T(8,128)}', space=vmem, size = 0x2000, scoped, tag = 'scratch operand']
  %s0 = inlined_call_operand.vmem [shape: bf16[16,64], index: 0, kind: input, shape index: {}]
  %s1 = inlined_call_operand.vmem [shape: bf16[64,32], index: 1, kind: input, shape index: {}]
  %s2 = inlined_call_operand.vmem [shape: f32[1,32], index: 2, kind: input, shape index: {}]
  %s3 = inlined_call_operand.vmem [shape: bf16[16,32], index: 3, kind: input, shape index: {}]
  %s4 = inlined_call_operand.vmem [shape: f32[1,32], index: 4, kind: input, shape index: {}]
  %s5 = inlined_call_operand.vmem [shape: f32[1,32], index: 5, kind: input, shape index: {}]
  %s6 = inlined_call_operand.vmem [shape: bf16[16,32], index: 6, kind: output, shape index: {}]
  %s7 = sld [smem:[#allocation0]]
  $region42: #{bertdot_dual_fullfuse_forward.20} parent=0
    _
  %s9 = ssub.s32 1, %s7
  %s10 = scalar_select 0, %s9, %s7
  // Predicated region
  $region2: #{bertdot_dual_fullfuse_forward.20} parent=0 // pred_check
    _
  $region3: #{bertdot_dual_fullfuse_forward.20} parent=0 // pred_check_branch
    %12 = sbr.rel (0) target = $region5
  $region4: #{bertdot_dual_fullfuse_forward.20} parent=0 // pred_region
    _
  $region5: #{bertdot_dual_fullfuse_forward.20} parent=0 // pred_fallthru
    _
  // Predicated region
  $region6: #{bertdot_dual_fullfuse_forward.20} parent=0 // pred_check
    _
  $region7: #{bertdot_dual_fullfuse_forward.20} parent=0 // pred_check_branch
    %14 = sbr.rel (0) target = $region9
  $region8: #{bertdot_dual_fullfuse_forward.20} parent=0 // pred_region
    _
  $region9: #{bertdot_dual_fullfuse_forward.20} parent=0 // pred_fallthru
    _
  // Predicated region
  $region10: #{bertdot_dual_fullfuse_forward.20} parent=0 // pred_check
    _
  $region11: #{bertdot_dual_fullfuse_forward.20} parent=0 // pred_check_branch
    %16 = sbr.rel (0) target = $region13
  $region12: #{bertdot_dual_fullfuse_forward.20} parent=0 // pred_region
    _
  $region13: #{bertdot_dual_fullfuse_forward.20} parent=0 // pred_fallthru
    _
  // Predicated region
  $region14: #{bertdot_dual_fullfuse_forward.20} parent=0 // pred_check
    _
  $region15: #{bertdot_dual_fullfuse_forward.20} parent=0 // pred_check_branch
    %18 = sbr.rel (0) target = $region17
  $region16: #{bertdot_dual_fullfuse_forward.20} parent=0 // pred_region
    _
  $region17: #{bertdot_dual_fullfuse_forward.20} parent=0 // pred_fallthru
    _
  // Predicated region
  $region18: #{bertdot_dual_fullfuse_forward.20} parent=0 // pred_check
    _
  $region19: #{bertdot_dual_fullfuse_forward.20} parent=0 // pred_check_branch
    %20 = sbr.rel (0) target = $region21
  $region20: #{bertdot_dual_fullfuse_forward.20} parent=0 // pred_region
    _
  $region21: #{bertdot_dual_fullfuse_forward.20} parent=0 // pred_fallthru
    _
  // Predicated region
  $region22: #{bertdot_dual_fullfuse_forward.20} parent=0 // pred_check
    _
  $region23: #{bertdot_dual_fullfuse_forward.20} parent=0 // pred_check_branch
    %22 = sbr.rel (0) target = $region25
  $region24: #{bertdot_dual_fullfuse_forward.20} parent=0 // pred_region
    _
  $region25: #{bertdot_dual_fullfuse_forward.20} parent=0 // pred_fallthru
    _
  %p24 = scmp.eq.s32.totalorder 0, 0
  // Predicated region
  $region26: #{bertdot_dual_fullfuse_forward.20} parent=0 // pred_check
    %p25 = pneg %p24
  $region27: #{bertdot_dual_fullfuse_forward.20} parent=0 // pred_check_branch
    %27 = sbr.rel (%p25) target = $region29
  $region28: #{bertdot_dual_fullfuse_forward.20} parent=0 // pred_region
    %vm28 = vcmask 261120
    %29 = vst.msk [vmem:[#allocation2] sm:$0xff] %vm28, 0.0
    %30 = vst.msk [vmem:[#allocation2 + $0x8] sm:$0xff] %vm28, 0.0
  $region29: #{bertdot_dual_fullfuse_forward.20} parent=0 // pred_fallthru
    _
  %v31 = vld [vmem:[#allocation2] sm:$0xff]
  %v32 = vld [vmem:[#allocation2 + $0x8] sm:$0xff]
  %v33 = vld [vmem:[%s0] sm:$0xf]
  %v34 = vld [vmem:[%s0 + $0x4] sm:$0xf]
  %v35 = vld [vmem:[%s1] sm:$0xf]
  %v36 = vld [vmem:[%s1 + $0x4] sm:$0xf]
  %v37 = vld [vmem:[%s1 + $0x8] sm:$0xf]
  %v38 = vld [vmem:[%s1 + $0xc] sm:$0xf]
  %v39 = vld [vmem:[%s1 + $0x10] sm:$0xf]
  %v40 = vld [vmem:[%s1 + $0x14] sm:$0xf]
  %v41 = vld [vmem:[%s1 + $0x18] sm:$0xf]
  %v42 = vld [vmem:[%s1 + $0x1c] sm:$0xf]
  %v45 = vunpack.c.l.b16 %v33
  %v46 = vunpack.c.l.b16 %v34
  %v47 = vpack.c.b16 %v46, %v45
  %v56 = vunpack.c.l.b16 %v35
  %v57 = vunpack.c.l.b16 %v36
  %v58 = vunpack.c.l.b16 %v37
  %v59 = vunpack.c.l.b16 %v38
  %v60 = vunpack.c.l.b16 %v39
  %v61 = vunpack.c.l.b16 %v40
  %v62 = vunpack.c.l.b16 %v41
  %v63 = vunpack.c.l.b16 %v42
  %v64 = vpack.c.b16 %v57, %v56
  %v65 = vpack.c.b16 %v59, %v58
  %v66 = vpack.c.b16 %v61, %v60
  %v67 = vpack.c.b16 %v63, %v62
  %vm72 = vcmask 523264
  %v74 = vsel %vm72, %v47, 0
  %76 = vmatprep.subr.bf16.mxu0 0
  %77 = vmatpush1.bf16.msra.mxu0 0
  %78 = vmatprep.subr.bf16.mxu0 0
  %79 = vmatpush1.bf16.msra.mxu0 0
  %80 = vmatprep.subr.bf16.mxu0 0
  %81 = vmatpush1.bf16.msra.mxu0 0
  %82 = vmatprep.subr.bf16.mxu0 0
  %83 = vmatpush1.bf16.msra.mxu0 0
  %84 = vmatprep.subr.bf16.mxu0 0
  %85 = vmatpush1.bf16.msra.mxu0 %v67
  %86 = vmatprep.subr.bf16.mxu0 0
  %87 = vmatpush1.bf16.msra.mxu0 %v66
  %88 = vmatprep.subr.bf16.mxu0 0
  %89 = vmatpush1.bf16.msra.mxu0 %v65
  %90 = vmatprep.subr.bf16.mxu0 0
  %91 = vmatpush1.bf16.msra.mxu0 %v64
  %92 = vmatprep.subr.bf16.mxu0 0
  %93 = vmatpush2.bf16.msra.mxu0 0
  %94 = vmatprep.subr.bf16.mxu0 0
  %95 = vmatpush2.bf16.msra.mxu0 0
  %96 = vmatprep.subr.bf16.mxu0 0
  %97 = vmatpush2.bf16.msra.mxu0 0
  %98 = vmatprep.subr.bf16.mxu0 0
  %99 = vmatpush2.bf16.msra.mxu0 0
  %100 = vmatprep.subr.bf16.mxu0 0
  %101 = vmatpush2.bf16.msra.mxu0 0
  %102 = vmatprep.subr.bf16.mxu0 0
  %103 = vmatpush2.bf16.msra.mxu0 0
  %104 = vmatprep.subr.bf16.mxu0 0
  %105 = vmatpush2.bf16.msra.mxu0 0
  %106 = vmatprep.subr.bf16.mxu0 0
  %107 = vmatpush2.bf16.msra.mxu0 0
  %108 = vmatprep.mubr.bf16.mxu0 0
  %109 = vmatmul.mubr.bf16.gmra.mxu0 %v74
  %v110 = vpop.f32.mrf.mxu0
  %v111 = vadd.f32 0.0, %v110
  %v112 = vpop.f32.mrf.mxu0
  %v113 = vpop.f32.mrf.mxu0
  %v114 = vadd.f32 0.0, %v113
  %v115 = vpop.f32.mrf.mxu0
  %116 = vdwg.mxu0
  %v117 = vadd.f32 %v31, %v111
  %v118 = vadd.f32 %v32, %v114
  %vm119 = vcmask 261120
  %120 = vst.msk [vmem:[#allocation2] sm:$0xff] %vm119, %v117
  %121 = vst.msk [vmem:[#allocation2 + $0x8] sm:$0xff] %vm119, %v118
  // Predicated region
  $region30: #{bertdot_dual_fullfuse_forward.20} parent=0 // pred_check
    %p122 = pneg %p24
  $region31: #{bertdot_dual_fullfuse_forward.20} parent=0 // pred_check_branch
    %124 = sbr.rel (%p122) target = $region33
  $region32: #{bertdot_dual_fullfuse_forward.20} parent=0 // pred_region
    %v125 = vld [vmem:[#allocation2] sm:$0xff]
    %v126 = vld [vmem:[#allocation2 + $0x8] sm:$0xff]
    %v127 = vld [vmem:[%s2] sm:$0x1]
    %v129 = vlaneseq
    %v130 = vshrl.u32 %v129, 7
    %v131 = vsub.s32 0, %v130
    %v132 = vrot.slane %v127, %v131
    %v134 = vadd.f32 %v125, %v132
    %v135 = vadd.f32 %v126, %v132
    %v136 = vld [vmem:[%s3] sm:$0xf]
    %v137 = vld [vmem:[%s3 + $0x4] sm:$0xf]
    %v138 = vunpack.c.l.bf16 %v136
    %v139 = vunpack.c.l.bf16 %v137
    %v140 = vadd.f32 %v134, %v138
    %v141 = vadd.f32 %v135, %v139
    %v142 = vsel %vm119, %v140, 0.0
    %143 = vadd.xlane.f32.xlu0 %v142
    %v144 = vpop.xlane.xlu0 %143
    %v145 = vsel %vm119, %v141, 0.0
    %146 = vadd.xlane.f32.xlu0 %v145
    %v147 = vpop.xlane.xlu0 %146
    %v148 = vrcp.pop 32.0
    %v149 = vmul.f32 %v144, %v148
    %v150 = vmul.f32 %v147, %v148
    %v151 = vsub.f32 %v140, %v149
    %v152 = vsub.f32 %v141, %v150
    %v153 = vmul.f32 %v151, %v151
    %v154 = vmul.f32 %v152, %v152
    %v155 = vsel %vm119, %v153, 0.0
    %156 = vadd.xlane.f32.xlu0 %v155
    %v157 = vpop.xlane.xlu0 %156
    %v158 = vsel %vm119, %v154, 0.0
    %159 = vadd.xlane.f32.xlu0 %v158
    %v160 = vpop.xlane.xlu0 %159
    %v161 = vmul.f32 %v157, %v148
    %v162 = vmul.f32 %v160, %v148
    %v163 = vadd.f32 %v161, 1e-12
    %v164 = vadd.f32 %v162, 1e-12
    %v165 = vrsqrt.pop %v163
    %v166 = vrsqrt.pop %v164
    %v167 = vmul.f32 %v151, %v165
    %v168 = vmul.f32 %v152, %v166
    %v169 = vld [vmem:[%s4] sm:$0x1]
    %v171 = vlaneseq
    %v172 = vshrl.u32 %v171, 7
    %v173 = vsub.s32 0, %v172
    %v174 = vrot.slane %v169, %v173
    %v176 = vmul.f32 %v167, %v174
    %v177 = vmul.f32 %v168, %v174
    %v178 = vld [vmem:[%s5] sm:$0x1]
    %v180 = vlaneseq
    %v181 = vshrl.u32 %v180, 7
    %v182 = vsub.s32 0, %v181
    %v183 = vrot.slane %v178, %v182
    %v185 = vadd.f32 %v176, %v183
    %v186 = vadd.f32 %v177, %v183
    %v187 = vpack.c.bf16 %v186, %v185
    %v189 = vunpack.c.l.b16 %v187
    %v190 = vunpack.c.h.b16 %v187
    %v191 = vpack.c.b16 %v189, %v189
    %v192 = vpack.c.b16 %v190, %v190
    %vm195 = vcmask 257024
    %196 = vst.msk [vmem:[%s6] sm:$0xf] %vm195, %v191
    %197 = vst.msk [vmem:[%s6 + $0x4] sm:$0xf] %vm195, %v192
  $region33: #{bertdot_dual_fullfuse_forward.20} parent=0 // pred_fallthru
    _
  // Predicated region
  $region34: #{bertdot_dual_fullfuse_forward.20} parent=0 // pred_check
    _
  $region35: #{bertdot_dual_fullfuse_forward.20} parent=0 // pred_check_branch
    %199 = sbr.rel (0) target = $region37
  $region36: #{bertdot_dual_fullfuse_forward.20} parent=0 // pred_region
    _
  $region37: #{bertdot_dual_fullfuse_forward.20} parent=0 // pred_fallthru
    _
  // Predicated region
  $region38: #{bertdot_dual_fullfuse_forward.20} parent=0 // pred_check
    _
  $region39: #{bertdot_dual_fullfuse_forward.20} parent=0 // pred_check_branch
    %201 = sbr.rel (0) target = $region41
  $region40: #{bertdot_dual_fullfuse_forward.20} parent=0 // pred_region
    _
  $region41: #{bertdot_dual_fullfuse_forward.20} parent=0 // pred_fallthru
    _

// kernel: bertdot_dual_fullfuse_forward.27
$region0: #{bertdot_dual_fullfuse_forward.27}
  #allocation0 [shape = 'u32[]', space=smem, size = 0x4, offset = 0x4, fixed_abs, tag = 'smem constant byte address 0x4 - core index']
  #allocation1 [shape = 'u32[144,128]{1,0:T(1,128)}', space=vmem, size = 0x12000, scoped, tag = 'internal scratch']
  #allocation2 [shape = 'f32[16,192]{1,0:T(8,128)}', space=vmem, size = 0x4000, scoped, tag = 'scratch operand']
  %s0 = inlined_call_operand.vmem [shape: bf16[16,64], index: 0, kind: input, shape index: {}]
  %s1 = inlined_call_operand.vmem [shape: bf16[64,192], index: 1, kind: input, shape index: {}]
  %s2 = inlined_call_operand.vmem [shape: f32[1,192], index: 2, kind: input, shape index: {}]
  %s3 = inlined_call_operand.vmem [shape: bf16[16,192], index: 3, kind: output, shape index: {}]
  %s4 = sld [smem:[#allocation0]]
  $region30: #{bertdot_dual_fullfuse_forward.27} parent=0
    _
  %s6 = ssub.s32 1, %s4
  %s7 = scalar_select 0, %s6, %s4
  // Predicated region
  $region2: #{bertdot_dual_fullfuse_forward.27} parent=0 // pred_check
    _
  $region3: #{bertdot_dual_fullfuse_forward.27} parent=0 // pred_check_branch
    %9 = sbr.rel (0) target = $region5
  $region4: #{bertdot_dual_fullfuse_forward.27} parent=0 // pred_region
    _
  $region5: #{bertdot_dual_fullfuse_forward.27} parent=0 // pred_fallthru
    _
  // Predicated region
  $region6: #{bertdot_dual_fullfuse_forward.27} parent=0 // pred_check
    _
  $region7: #{bertdot_dual_fullfuse_forward.27} parent=0 // pred_check_branch
    %11 = sbr.rel (0) target = $region9
  $region8: #{bertdot_dual_fullfuse_forward.27} parent=0 // pred_region
    _
  $region9: #{bertdot_dual_fullfuse_forward.27} parent=0 // pred_fallthru
    _
  // Predicated region
  $region10: #{bertdot_dual_fullfuse_forward.27} parent=0 // pred_check
    _
  $region11: #{bertdot_dual_fullfuse_forward.27} parent=0 // pred_check_branch
    %13 = sbr.rel (0) target = $region13
  $region12: #{bertdot_dual_fullfuse_forward.27} parent=0 // pred_region
    _
  $region13: #{bertdot_dual_fullfuse_forward.27} parent=0 // pred_fallthru
    _
  %p15 = scmp.eq.s32.totalorder 0, 0
  // Predicated region
  $region14: #{bertdot_dual_fullfuse_forward.27} parent=0 // pred_check
    %p16 = pneg %p15
  $region15: #{bertdot_dual_fullfuse_forward.27} parent=0 // pred_check_branch
    %18 = sbr.rel (%p16) target = $region17
  $region16: #{bertdot_dual_fullfuse_forward.27} parent=0 // pred_region
    %19 = vst [vmem:[#allocation2] sm:$0xff] 0.0
    %vm20 = vcmask 523264
    %21 = vst.msk [vmem:[#allocation2 + $0x8] sm:$0xff] %vm20, 0.0
    %22 = vst [vmem:[#allocation2 + $0x10] sm:$0xff] 0.0
    %23 = vst.msk [vmem:[#allocation2 + $0x18] sm:$0xff] %vm20, 0.0
  $region17: #{bertdot_dual_fullfuse_forward.27} parent=0 // pred_fallthru
    _
  %v24 = vld [vmem:[#allocation2] sm:$0xff]
  %v25 = vld [vmem:[#allocation2 + $0x8] sm:$0xff]
  %v26 = vld [vmem:[#allocation2 + $0x10] sm:$0xff]
  %v27 = vld [vmem:[#allocation2 + $0x18] sm:$0xff]
  %v28 = vld [vmem:[%s0] sm:$0xf]
  %v29 = vld [vmem:[%s0 + $0x4] sm:$0xf]
  %v30 = vld [vmem:[%s1] sm:$0xff]
  %v31 = vld [vmem:[%s1 + $0x8] sm:$0xff]
  %v32 = vld [vmem:[%s1 + $0x10] sm:$0xff]
  %v33 = vld [vmem:[%s1 + $0x18] sm:$0xff]
  %v34 = vld [vmem:[%s1 + $0x20] sm:$0xff]
  %v35 = vld [vmem:[%s1 + $0x28] sm:$0xff]
  %v36 = vld [vmem:[%s1 + $0x30] sm:$0xff]
  %v37 = vld [vmem:[%s1 + $0x38] sm:$0xff]
  %v40 = vunpack.c.l.b16 %v28
  %v41 = vunpack.c.l.b16 %v29
  %v42 = vpack.c.b16 %v41, %v40
  %v51 = vunpack.c.l.b16 %v30
  %v52 = vunpack.c.h.b16 %v30
  %v53 = vunpack.c.l.b16 %v31
  %v54 = vunpack.c.h.b16 %v31
  %v55 = vunpack.c.l.b16 %v32
  %v56 = vunpack.c.h.b16 %v32
  %v57 = vunpack.c.l.b16 %v33
  %v58 = vunpack.c.h.b16 %v33
  %v59 = vunpack.c.l.b16 %v34
  %v60 = vunpack.c.h.b16 %v34
  %v61 = vunpack.c.l.b16 %v35
  %v62 = vunpack.c.h.b16 %v35
  %v63 = vunpack.c.l.b16 %v36
  %v64 = vunpack.c.h.b16 %v36
  %v65 = vunpack.c.l.b16 %v37
  %v66 = vunpack.c.h.b16 %v37
  %v67 = vpack.c.b16 %v53, %v51
  %v68 = vpack.c.b16 %v54, %v52
  %v69 = vpack.c.b16 %v57, %v55
  %v70 = vpack.c.b16 %v58, %v56
  %v71 = vpack.c.b16 %v61, %v59
  %v72 = vpack.c.b16 %v62, %v60
  %v73 = vpack.c.b16 %v65, %v63
  %v74 = vpack.c.b16 %v66, %v64
  %vm83 = vcmask 523264
  %v85 = vsel %vm83, %v42, 0
  %87 = vmatprep.subr.bf16.mxu0 0
  %88 = vmatpush1.bf16.msra.mxu0 0
  %89 = vmatprep.subr.bf16.mxu0 0
  %90 = vmatpush1.bf16.msra.mxu0 0
  %91 = vmatprep.subr.bf16.mxu0 0
  %92 = vmatpush1.bf16.msra.mxu0 0
  %93 = vmatprep.subr.bf16.mxu0 0
  %94 = vmatpush1.bf16.msra.mxu0 0
  %95 = vmatprep.subr.bf16.mxu0 %v74
  %96 = vmatpush1.bf16.msra.mxu0 %v73
  %97 = vmatprep.subr.bf16.mxu0 %v72
  %98 = vmatpush1.bf16.msra.mxu0 %v71
  %99 = vmatprep.subr.bf16.mxu0 %v70
  %100 = vmatpush1.bf16.msra.mxu0 %v69
  %101 = vmatprep.subr.bf16.mxu0 %v68
  %102 = vmatpush1.bf16.msra.mxu0 %v67
  %103 = vmatprep.subr.bf16.mxu0 0
  %104 = vmatpush2.bf16.msra.mxu0 0
  %105 = vmatprep.subr.bf16.mxu0 0
  %106 = vmatpush2.bf16.msra.mxu0 0
  %107 = vmatprep.subr.bf16.mxu0 0
  %108 = vmatpush2.bf16.msra.mxu0 0
  %109 = vmatprep.subr.bf16.mxu0 0
  %110 = vmatpush2.bf16.msra.mxu0 0
  %111 = vmatprep.subr.bf16.mxu0 0
  %112 = vmatpush2.bf16.msra.mxu0 0
  %113 = vmatprep.subr.bf16.mxu0 0
  %114 = vmatpush2.bf16.msra.mxu0 0
  %115 = vmatprep.subr.bf16.mxu0 0
  %116 = vmatpush2.bf16.msra.mxu0 0
  %117 = vmatprep.subr.bf16.mxu0 0
  %118 = vmatpush2.bf16.msra.mxu0 0
  %119 = vmatprep.mubr.bf16.mxu0 0
  %120 = vmatmul.mubr.bf16.gmra.mxu0 %v85
  %v121 = vpop.f32.mrf.mxu0
  %v122 = vadd.f32 0.0, %v121
  %v123 = vpop.f32.mrf.mxu0
  %v124 = vadd.f32 0.0, %v123
  %v125 = vpop.f32.mrf.mxu0
  %v126 = vadd.f32 0.0, %v125
  %v127 = vpop.f32.mrf.mxu0
  %v128 = vadd.f32 0.0, %v127
  %129 = vdwg.mxu0
  %v130 = vadd.f32 %v24, %v122
  %v131 = vadd.f32 %v25, %v124
  %v132 = vadd.f32 %v26, %v126
  %v133 = vadd.f32 %v27, %v128
  %134 = vst [vmem:[#allocation2] sm:$0xff] %v130
  %135 = vst.msk [vmem:[#allocation2 + $0x8] sm:$0xff] %vm83, %v131
  %136 = vst [vmem:[#allocation2 + $0x10] sm:$0xff] %v132
  %137 = vst.msk [vmem:[#allocation2 + $0x18] sm:$0xff] %vm83, %v133
  // Predicated region
  $region18: #{bertdot_dual_fullfuse_forward.27} parent=0 // pred_check
    %p138 = pneg %p15
  $region19: #{bertdot_dual_fullfuse_forward.27} parent=0 // pred_check_branch
    %140 = sbr.rel (%p138) target = $region21
  $region20: #{bertdot_dual_fullfuse_forward.27} parent=0 // pred_region
    %v141 = vld [vmem:[#allocation2] sm:$0xff]
    %v142 = vld [vmem:[#allocation2 + $0x8] sm:$0xff]
    %v143 = vld [vmem:[#allocation2 + $0x10] sm:$0xff]
    %v144 = vld [vmem:[#allocation2 + $0x18] sm:$0xff]
    %v145 = vld [vmem:[%s2] sm:$0x3]
    %v147 = vlaneseq
    %v148 = vshrl.u32 %v147, 7
    %v149 = vsub.s32 0, %v148
    %v150 = vrot.slane %v145, %v149
    %v151 = vlaneseq
    %v152 = vshrl.u32 %v151, 7
    %v153 = vsub.s32 1, %v152
    %v154 = vrot.slane %v145, %v153
    %v157 = vadd.f32 %v141, %v150
    %v158 = vadd.f32 %v142, %v154
    %v159 = vadd.f32 %v143, %v150
    %v160 = vadd.f32 %v144, %v154
    %v161 = vpack.c.bf16 %v159, %v157
    %v162 = vpack.c.bf16 %v160, %v158
    %v165 = vunpack.c.l.b16 %v161
    %v166 = vunpack.c.l.b16 %v162
    %v167 = vunpack.c.h.b16 %v161
    %v168 = vunpack.c.h.b16 %v162
    %v169 = vpack.c.b16 %v166, %v165
    %v170 = vpack.c.b16 %v168, %v167
    %vm173 = vcmask 1043456
    %vm174 = vcmask 523268
    %vm175 = vmor %vm174, %vm173
    %176 = vst.msk [vmem:[%s3] sm:$0xff] %vm175, %v169
    %177 = vst.msk [vmem:[%s3 + $0x8] sm:$0xff] %vm175, %v170
  $region21: #{bertdot_dual_fullfuse_forward.27} parent=0 // pred_fallthru
    _
  // Predicated region
  $region22: #{bertdot_dual_fullfuse_forward.27} parent=0 // pred_check
    _
  $region23: #{bertdot_dual_fullfuse_forward.27} parent=0 // pred_check_branch
    %179 = sbr.rel (0) target = $region25
  $region24: #{bertdot_dual_fullfuse_forward.27} parent=0 // pred_region
    _
  $region25: #{bertdot_dual_fullfuse_forward.27} parent=0 // pred_fallthru
    _
  // Predicated region
  $region26: #{bertdot_dual_fullfuse_forward.27} parent=0 // pred_check
    _
  $region27: #{bertdot_dual_fullfuse_forward.27} parent=0 // pred_check_branch
    %181 = sbr.rel (0) target = $region29
  $region28: #{bertdot_dual_fullfuse_forward.27} parent=0 // pred_region
    _
  $region29: #{bertdot_dual_fullfuse_forward.27} parent=0 // pred_fallthru
    _

// kernel: bertdot_dual_fullfuse_forward.28
$region0: #{bertdot_dual_fullfuse_forward.28}
  #allocation0 [shape = 'u32[]', space=smem, size = 0x4, offset = 0x4, fixed_abs, tag = 'smem constant byte address 0x4 - core index']
  #allocation1 [shape = 'u32[144,128]{1,0:T(1,128)}', space=vmem, size = 0x12000, scoped, tag = 'internal scratch']
  %s0 = inlined_call_operand.vmem [shape: bf16[2,8,192], index: 0, kind: input, shape index: {}]
  %s1 = inlined_call_operand.vmem [shape: f32[2,1,8], index: 1, kind: input, shape index: {}]
  %s2 = inlined_call_operand.vmem [shape: bf16[2,8,64], index: 2, kind: output, shape index: {}]
  %s3 = sld [smem:[#allocation0]]
  $region41: #{bertdot_dual_fullfuse_forward.28} parent=0
    _
  %s5 = ssub.s32 1, %s3
  %s6 = scalar_select 0, %s5, %s3
  loop: start=0, step=1, limit=4
  $region2: #{bertdot_dual_fullfuse_forward.28} parent=0 // loop_pre_header
    _
  $region3: #{bertdot_dual_fullfuse_forward.28} parent=0 // loop_header
    %s8 = sphi 0, %s12
    %p9 = scmp.ge.s32.totalorder %s8, 4
    %s18 = sphi 0, %s20
    %s21 = sphi 0, %s18
    %s22 = sphi 0, %s21
    %s38 = sphi 0, %s22
    %s44 = sphi 0, %s46
    %s47 = sphi 0, %s44
    %s48 = sphi 0, %s47
    %s64 = sphi 0, %s48
    %s70 = sphi 0, %s72
    %s73 = sphi 0, %s70
    %s74 = sphi 0, %s73
    %s90 = sphi 0, %s74
  $region4: #{bertdot_dual_fullfuse_forward.28} parent=0 // loop_header_branch
    %11 = sbr.rel (%p9) target = $region8
  $region5: #{bertdot_dual_fullfuse_forward.28} parent=0 // loop_body
    %s13 = ssub.s32 %s8, 1
    %s14 = ssub.s32 %s8, 2
    %s15 = sadd.s32 %s8, 1
    %s16 = ssub.s32 %s8, %s15
    %p17 = scmp.eq.s32.totalorder %s16, 0
    %s19 = sadd.s32 %s18, 1
    %s20 = scalar_select %p17, %s18, %s19
    %p23 = pneg %p17
    %p24 = scmp.eq.s32.totalorder %s8, 1
    %p25 = por %p23, %p24
    %p26 = scmp.ne.s32.totalorder %s18, %s21
    %p27 = scmp.eq.s32.totalorder %s8, 0
    %p28 = por %p26, %p27
    %p29 = scmp.ne.s32.totalorder %s18, %s21
    %p30 = scmp.eq.s32.totalorder %s13, 1
    %p31 = por %p29, %p30
    %p32 = scmp.ne.s32.totalorder %s21, %s22
    %p33 = scmp.eq.s32.totalorder %s13, 0
    %p34 = por %p32, %p33
    %p35 = scmp.ne.s32.totalorder %s21, %s22
    %p36 = scmp.eq.s32.totalorder %s14, 1
    %p37 = por %p35, %p36
    %p39 = scmp.ne.s32.totalorder %s22, %s38
    %p40 = scmp.eq.s32.totalorder %s14, 0
    %p41 = por %p39, %p40
    %s42 = ssub.s32 %s8, %s15
    %p43 = scmp.eq.s32.totalorder %s42, 0
    %s45 = sadd.s32 %s44, 1
    %s46 = scalar_select %p43, %s44, %s45
    %p49 = pneg %p43
    %p50 = scmp.eq.s32.totalorder %s8, 1
    %p51 = por %p49, %p50
    %p52 = scmp.ne.s32.totalorder %s44, %s47
    %p53 = scmp.eq.s32.totalorder %s8, 0
    %p54 = por %p52, %p53
    %p55 = scmp.ne.s32.totalorder %s44, %s47
    %p56 = scmp.eq.s32.totalorder %s13, 1
    %p57 = por %p55, %p56
    %p58 = scmp.ne.s32.totalorder %s47, %s48
    %p59 = scmp.eq.s32.totalorder %s13, 0
    %p60 = por %p58, %p59
    %p61 = scmp.ne.s32.totalorder %s47, %s48
    %p62 = scmp.eq.s32.totalorder %s14, 1
    %p63 = por %p61, %p62
    %p65 = scmp.ne.s32.totalorder %s48, %s64
    %p66 = scmp.eq.s32.totalorder %s14, 0
    %p67 = por %p65, %p66
    %s68 = ssub.s32 %s8, %s15
    %p69 = scmp.eq.s32.totalorder %s68, 0
    %s71 = sadd.s32 %s70, 1
    %s72 = scalar_select %p69, %s70, %s71
    %p75 = pneg %p69
    %p76 = scmp.eq.s32.totalorder %s8, 1
    %p77 = por %p75, %p76
    %p78 = scmp.ne.s32.totalorder %s70, %s73
    %p79 = scmp.eq.s32.totalorder %s8, 0
    %p80 = por %p78, %p79
    %p81 = scmp.ne.s32.totalorder %s70, %s73
    %p82 = scmp.eq.s32.totalorder %s13, 1
    %p83 = por %p81, %p82
    %p84 = scmp.ne.s32.totalorder %s73, %s74
    %p85 = scmp.eq.s32.totalorder %s13, 0
    %p86 = por %p84, %p85
    %p87 = scmp.ne.s32.totalorder %s73, %s74
    %p88 = scmp.eq.s32.totalorder %s14, 1
    %p89 = por %p87, %p88
    %p91 = scmp.ne.s32.totalorder %s74, %s90
    %p92 = scmp.eq.s32.totalorder %s14, 0
    %p93 = por %p91, %p92
    %p94 = scmp.le.s32.totalorder 1, %s8
    %p95 = scmp.lt.s32.totalorder %s8, 3
    %p96 = pnand %p94, %p95
    %p97 = pneg %p96
    // Predicated region
    $region9: #{bertdot_dual_fullfuse_forward.28} parent=5 // pred_check
      _
    $region10: #{bertdot_dual_fullfuse_forward.28} parent=5 // pred_check_branch
      %99 = sbr.rel (%p96) target = $region12
    $region11: #{bertdot_dual_fullfuse_forward.28} parent=5 // pred_region
      %s100 = ssub.s32 %s8, 1
    $region12: #{bertdot_dual_fullfuse_forward.28} parent=5 // pred_fallthru
      _
    %p101 = scmp.lt.s32.totalorder %s8, 2
    // Predicated region
    $region13: #{bertdot_dual_fullfuse_forward.28} parent=5 // pred_check
      %p102 = pneg %p101
    $region14: #{bertdot_dual_fullfuse_forward.28} parent=5 // pred_check_branch
      %104 = sbr.rel (%p102) target = $region16
    $region15: #{bertdot_dual_fullfuse_forward.28} parent=5 // pred_region
      // Predicated region
      $region17: #{bertdot_dual_fullfuse_forward.28} parent=15 // pred_check
        %p105 = pneg %p28
      $region18: #{bertdot_dual_fullfuse_forward.28} parent=15 // pred_check_branch
        %107 = sbr.rel (%p105) target = $region20
      $region19: #{bertdot_dual_fullfuse_forward.28} parent=15 // pred_region
        %p108 = scmp.lt.s32.totalorder %s8, 1
        %s109 = scalar_select %p108, %s8, 1
        %s110 = smul.addr %s109, 2
        %s111 = smul.addr %s110, 4
        %s112 = scalar_lea.vmem %s0, %s111
      $region20: #{bertdot_dual_fullfuse_forward.28} parent=15 // pred_fallthru
        _
      // Predicated region
      $region21: #{bertdot_dual_fullfuse_forward.28} parent=15 // pred_check
        %p113 = pneg %p54
      $region22: #{bertdot_dual_fullfuse_forward.28} parent=15 // pred_check_branch
        %115 = sbr.rel (%p113) target = $region24
      $region23: #{bertdot_dual_fullfuse_forward.28} parent=15 // pred_region
        %p116 = scmp.lt.s32.totalorder %s8, 1
        %s117 = scalar_select %p116, %s8, 1
        %s118 = scalar_lea.vmem %s1, %s117
      $region24: #{bertdot_dual_fullfuse_forward.28} parent=15 // pred_fallthru
        _
    $region16: #{bertdot_dual_fullfuse_forward.28} parent=5 // pred_fallthru
      _
    %p119 = scmp.le.s32.totalorder 1, %s8
    %p120 = scmp.lt.s32.totalorder %s8, 3
    %p121 = pnand %p119, %p120
    %p122 = pneg %p121
    // Predicated region
    $region25: #{bertdot_dual_fullfuse_forward.28} parent=5 // pred_check
      _
    $region26: #{bertdot_dual_fullfuse_forward.28} parent=5 // pred_check_branch
      %124 = sbr.rel (%p121) target = $region28
    $region27: #{bertdot_dual_fullfuse_forward.28} parent=5 // pred_region
      %s125 = ssub.s32 %s8, 1
      %p126 = scmp.lt.s32.totalorder %s13, 1
      %s127 = scalar_select %p126, %s13, 1
      %s128 = smul.addr %s127, 2
      %s129 = smul.addr %s128, 4
      %s130 = scalar_lea.vmem %s0, %s129
      %p131 = pneg %p34
      %p132 = pneg %p31
      %p133 = scmp.lt.s32.totalorder %s13, 1
      %s134 = scalar_select %p133, %s13, 1
      %s135 = scalar_lea.vmem %s1, %s134
      %p136 = pneg %p60
      %p137 = pneg %p57
      %p138 = pneg %p86
      %p139 = pneg %p83
      %p140 = scmp.lt.s32.totalorder %s13, 1
      %s141 = scalar_select %p140, %s13, 1
      %s142 = smul.addr %s141, 4
      %s143 = scalar_lea.vmem %s2, %s142
      %p144 = scmp.lt.s32.totalorder %s13, 1
      %s145 = scalar_select %p144, %s13, 1
      %s146 = smul.addr %s145, 2
      %s147 = smul.addr %s146, 4
      %s148 = scalar_lea.vmem %s0, %s147
      %p149 = scmp.lt.s32.totalorder %s13, 1
      %s150 = scalar_select %p149, %s13, 1
      %s151 = scalar_lea.vmem %s1, %s150
      %p152 = scmp.lt.s32.totalorder %s13, 1
      %s153 = scalar_select %p152, %s13, 1
      %s154 = smul.addr %s153, 4
      %s155 = scalar_lea.vmem %s2, %s154
      %v158 = vld [vmem:[%s148] sm:$0xff]
      %v159 = vld [vmem:[%s151] sm:$0x1]
      %v160 = vmul.bf16 %v158, 1043676725
      %v162 = vlaneseq
      %v163 = vshrl.u32 %v162, 7
      %v164 = vsub.s32 0, %v163
      %v165 = vrot.slane %v159, %v164
      %v168 = vunpack.c.l.b16 %v158
      %v169 = vpack.c.b16 %v168, %v168
      %170 = vrot.lane.b32.xlu0 %v169, 64
      %v171 = vpop.permute.xlu0 %170
      %vm172 = vcmask 261120
      %v174 = vsel %vm172, %v160, 0
      %v177 = vsel %vm172, %v171, 0
      %179 = vmatprep.subr.bf16.mxu0 0
      %180 = vmatpush1.bf16.xpose.msra.mxu0 0
      %181 = vmatprep.subr.bf16.mxu0 0
      %182 = vmatpush1.bf16.xpose.msra.mxu0 0
      %183 = vmatprep.subr.bf16.mxu0 0
      %184 = vmatpush1.bf16.xpose.msra.mxu0 0
      %185 = vmatprep.subr.bf16.mxu0 0
      %186 = vmatpush1.bf16.xpose.msra.mxu0 0
      %187 = vmatprep.subr.bf16.mxu0 0
      %188 = vmatpush1.bf16.xpose.msra.mxu0 0
      %189 = vmatprep.subr.bf16.mxu0 0
      %190 = vmatpush1.bf16.xpose.msra.mxu0 0
      %191 = vmatprep.subr.bf16.mxu0 0
      %192 = vmatpush1.bf16.xpose.msra.mxu0 0
      %193 = vmatprep.subr.bf16.mxu0 0
      %194 = vmatpush1.bf16.xpose.msra.mxu0 %v177
      %195 = vmatprep.subr.bf16.mxu0 0
      %196 = vmatpush2.bf16.xpose.msra.mxu0 0
      %197 = vmatprep.subr.bf16.mxu0 0
      %198 = vmatpush2.bf16.xpose.msra.mxu0 0
      %199 = vmatprep.subr.bf16.mxu0 0
      %200 = vmatpush2.bf16.xpose.msra.mxu0 0
      %201 = vmatprep.subr.bf16.mxu0 0
      %202 = vmatpush2.bf16.xpose.msra.mxu0 0
      %203 = vmatprep.subr.bf16.mxu0 0
      %204 = vmatpush2.bf16.xpose.msra.mxu0 0
      %205 = vmatprep.subr.bf16.mxu0 0
      %206 = vmatpush2.bf16.xpose.msra.mxu0 0
      %207 = vmatprep.subr.bf16.mxu0 0
      %208 = vmatpush2.bf16.xpose.msra.mxu0 0
      %209 = vmatprep.subr.bf16.mxu0 0
      %210 = vmatpush2.bf16.xpose.msra.mxu0 0
      %211 = vmatprep.mubr.bf16.mxu0 0
      %212 = vmatmul.mubr.bf16.gmra.mxu0 %v174
      %v213 = vpop.f32.mrf.mxu0
      %v214 = vadd.f32 %v165, %v213
      %v215 = vpop.f32.mrf.mxu0
      %v216 = vpop.f32.mrf.mxu0
      %v217 = vpop.f32.mrf.mxu0
      %218 = vdwg.mxu0
      %vm219 = vcmask 64512
      %v220 = vsel %vm219, %v214, -inf
      %221 = vmax.xlane.f32.xlu0 %v220
      %v222 = vpop.xlane.xlu0 %221
      %v223 = vsub.f32 %v214, %v222
      %v224 = vmul.f32 %v223, 1.442695
      %v225 = vpow.pop %v224
      %v226 = vsel %vm219, %v225, 0.0
      %227 = vadd.xlane.f32.xlu0 %v226
      %v228 = vpop.xlane.xlu0 %227
      %v229 = vrcp.pop %v228
      %v230 = vmul.f32 %v225, %v229
      %v231 = vpack.c.bf16 %v230, %v230
      %v232 = vunpack.c.h.b16 %v158
      %v233 = vpack.c.b16 %v232, %v232
      %v235 = vsel %vm219, %v231, 0
      %vm237 = vcmask 1043456
      %v239 = vsel %vm237, %v233, 0
      %241 = vmatprep.subr.bf16.mxu0 0
      %242 = vmatpush1.bf16.msra.mxu0 0
      %243 = vmatprep.subr.bf16.mxu0 0
      %244 = vmatpush1.bf16.msra.mxu0 0
      %245 = vmatprep.subr.bf16.mxu0 0
      %246 = vmatpush1.bf16.msra.mxu0 0
      %247 = vmatprep.subr.bf16.mxu0 0
      %248 = vmatpush1.bf16.msra.mxu0 0
      %249 = vmatprep.subr.bf16.mxu0 0
      %250 = vmatpush1.bf16.msra.mxu0 0
      %251 = vmatprep.subr.bf16.mxu0 0
      %252 = vmatpush1.bf16.msra.mxu0 0
      %253 = vmatprep.subr.bf16.mxu0 0
      %254 = vmatpush1.bf16.msra.mxu0 0
      %255 = vmatprep.subr.bf16.mxu0 0
      %256 = vmatpush1.bf16.msra.mxu0 %v239
      %257 = vmatprep.subr.bf16.mxu0 0
      %258 = vmatpush2.bf16.msra.mxu0 0
      %259 = vmatprep.subr.bf16.mxu0 0
      %260 = vmatpush2.bf16.msra.mxu0 0
      %261 = vmatprep.subr.bf16.mxu0 0
      %262 = vmatpush2.bf16.msra.mxu0 0
      %263 = vmatprep.subr.bf16.mxu0 0
      %264 = vmatpush2.bf16.msra.mxu0 0
      %265 = vmatprep.subr.bf16.mxu0 0
      %266 = vmatpush2.bf16.msra.mxu0 0
      %267 = vmatprep.subr.bf16.mxu0 0
      %268 = vmatpush2.bf16.msra.mxu0 0
      %269 = vmatprep.subr.bf16.mxu0 0
      %270 = vmatpush2.bf16.msra.mxu0 0
      %271 = vmatprep.subr.bf16.mxu0 0
      %272 = vmatpush2.bf16.msra.mxu0 0
      %273 = vmatprep.mubr.bf16.mxu0 0
      %274 = vmatmul.mubr.bf16.gmra.mxu0 %v235
      %v275 = vpop.f32.mrf.mxu0
      %v276 = vadd.f32 0.0, %v275
      %v277 = vpop.f32.mrf.mxu0
      %v278 = vpop.f32.mrf.mxu0
      %v279 = vpop.f32.mrf.mxu0
      %280 = vdwg.mxu0
      %v281 = vpack.c.bf16 %v276, %v276
      %vm282 = vcmask 257024
      %283 = vst.msk [vmem:[%s155] sm:$0xf] %vm282, %v281
      %v285 = vunpack.c.l.b16 %v160
      %v286 = vpack.c.b16 %v285, %v285
      %287 = vrot.lane.b32.xlu0 %v286, 96
      %v288 = vpop.permute.xlu0 %287
      %289 = vrot.lane.b32.xlu0 %v169, 32
      %v290 = vpop.permute.xlu0 %289
      %v292 = vsel %vm172, %v288, 0
      %v295 = vsel %vm172, %v290, 0
      %297 = vmatprep.subr.bf16.mxu0 0
      %298 = vmatpush1.bf16.xpose.msra.mxu0 0
      %299 = vmatprep.subr.bf16.mxu0 0
      %300 = vmatpush1.bf16.xpose.msra.mxu0 0
      %301 = vmatprep.subr.bf16.mxu0 0
      %302 = vmatpush1.bf16.xpose.msra.mxu0 0
      %303 = vmatprep.subr.bf16.mxu0 0
      %304 = vmatpush1.bf16.xpose.msra.mxu0 0
      %305 = vmatprep.subr.bf16.mxu0 0
      %306 = vmatpush1.bf16.xpose.msra.mxu0 0
      %307 = vmatprep.subr.bf16.mxu0 0
      %308 = vmatpush1.bf16.xpose.msra.mxu0 0
      %309 = vmatprep.subr.bf16.mxu0 0
      %310 = vmatpush1.bf16.xpose.msra.mxu0 0
      %311 = vmatprep.subr.bf16.mxu0 0
      %312 = vmatpush1.bf16.xpose.msra.mxu0 %v295
      %313 = vmatprep.subr.bf16.mxu0 0
      %314 = vmatpush2.bf16.xpose.msra.mxu0 0
      %315 = vmatprep.subr.bf16.mxu0 0
      %316 = vmatpush2.bf16.xpose.msra.mxu0 0
      %317 = vmatprep.subr.bf16.mxu0 0
      %318 = vmatpush2.bf16.xpose.msra.mxu0 0
      %319 = vmatprep.subr.bf16.mxu0 0
      %320 = vmatpush2.bf16.xpose.msra.mxu0 0
      %321 = vmatprep.subr.bf16.mxu0 0
      %322 = vmatpush2.bf16.xpose.msra.mxu0 0
      %323 = vmatprep.subr.bf16.mxu0 0
      %324 = vmatpush2.bf16.xpose.msra.mxu0 0
      %325 = vmatprep.subr.bf16.mxu0 0
      %326 = vmatpush2.bf16.xpose.msra.mxu0 0
      %327 = vmatprep.subr.bf16.mxu0 0
      %328 = vmatpush2.bf16.xpose.msra.mxu0 0
      %329 = vmatprep.mubr.bf16.mxu0 0
      %330 = vmatmul.mubr.bf16.gmra.mxu0 %v292
      %v331 = vpop.f32.mrf.mxu0
      %v332 = vadd.f32 %v165, %v331
      %v333 = vpop.f32.mrf.mxu0
      %v334 = vpop.f32.mrf.mxu0
      %v335 = vpop.f32.mrf.mxu0
      %336 = vdwg.mxu0
      %v337 = vsel %vm219, %v332, -inf
      %338 = vmax.xlane.f32.xlu0 %v337
      %v339 = vpop.xlane.xlu0 %338
      %v340 = vsub.f32 %v332, %v339
      %v341 = vmul.f32 %v340, 1.442695
      %v342 = vpow.pop %v341
      %v343 = vsel %vm219, %v342, 0.0
      %344 = vadd.xlane.f32.xlu0 %v343
      %v345 = vpop.xlane.xlu0 %344
      %v346 = vrcp.pop %v345
      %v347 = vmul.f32 %v342, %v346
      %v348 = vpack.c.bf16 %v347, %v347
      %349 = vrot.lane.b32.xlu0 %v233, 96
      %v350 = vpop.permute.xlu0 %349
      %v352 = vsel %vm219, %v348, 0
      %v355 = vsel %vm237, %v350, 0
      %357 = vmatprep.subr.bf16.mxu0 0
      %358 = vmatpush1.bf16.msra.mxu0 0
      %359 = vmatprep.subr.bf16.mxu0 0
      %360 = vmatpush1.bf16.msra.mxu0 0
      %361 = vmatprep.subr.bf16.mxu0 0
      %362 = vmatpush1.bf16.msra.mxu0 0
      %363 = vmatprep.subr.bf16.mxu0 0
      %364 = vmatpush1.bf16.msra.mxu0 0
      %365 = vmatprep.subr.bf16.mxu0 0
      %366 = vmatpush1.bf16.msra.mxu0 0
      %367 = vmatprep.subr.bf16.mxu0 0
      %368 = vmatpush1.bf16.msra.mxu0 0
      %369 = vmatprep.subr.bf16.mxu0 0
      %370 = vmatpush1.bf16.msra.mxu0 0
      %371 = vmatprep.subr.bf16.mxu0 0
      %372 = vmatpush1.bf16.msra.mxu0 %v355
      %373 = vmatprep.subr.bf16.mxu0 0
      %374 = vmatpush2.bf16.msra.mxu0 0
      %375 = vmatprep.subr.bf16.mxu0 0
      %376 = vmatpush2.bf16.msra.mxu0 0
      %377 = vmatprep.subr.bf16.mxu0 0
      %378 = vmatpush2.bf16.msra.mxu0 0
      %379 = vmatprep.subr.bf16.mxu0 0
      %380 = vmatpush2.bf16.msra.mxu0 0
      %381 = vmatprep.subr.bf16.mxu0 0
      %382 = vmatpush2.bf16.msra.mxu0 0
      %383 = vmatprep.subr.bf16.mxu0 0
      %384 = vmatpush2.bf16.msra.mxu0 0
      %385 = vmatprep.subr.bf16.mxu0 0
      %386 = vmatpush2.bf16.msra.mxu0 0
      %387 = vmatprep.subr.bf16.mxu0 0
      %388 = vmatpush2.bf16.msra.mxu0 0
      %389 = vmatprep.mubr.bf16.mxu0 0
      %390 = vmatmul.mubr.bf16.gmra.mxu0 %v352
      %v391 = vpop.f32.mrf.mxu0
      %v392 = vadd.f32 0.0, %v391
      %v393 = vpop.f32.mrf.mxu0
      %v394 = vpop.f32.mrf.mxu0
      %v395 = vpop.f32.mrf.mxu0
      %396 = vdwg.mxu0
      %v397 = vpack.c.bf16 %v392, %v392
      %v399 = vunpack.c.l.b16 %v397
      %v400 = vpack.c.b16 %v399, %v399
      %401 = vrot.lane.b32.xlu0 %v400, 32
      %v402 = vpop.permute.xlu0 %401
      %vm404 = vcmask 519424
      %405 = vst.msk [vmem:[%s155] sm:$0xf] %vm404, %v402
      %p406 = scmp.lt.s32.totalorder %s13, 1
      %s407 = scalar_select %p406, %s13, 1
      %s408 = smul.addr %s407, 4
      %s409 = scalar_lea.vmem %s2, %s408
      // Predicated region
      $region29: #{bertdot_dual_fullfuse_forward.28} parent=27 // pred_check
        %p410 = pneg %p83
      $region30: #{bertdot_dual_fullfuse_forward.28} parent=27 // pred_check_branch
        %412 = sbr.rel (%p410) target = $region32
      $region31: #{bertdot_dual_fullfuse_forward.28} parent=27 // pred_region
        _
      $region32: #{bertdot_dual_fullfuse_forward.28} parent=27 // pred_fallthru
        _
    $region28: #{bertdot_dual_fullfuse_forward.28} parent=5 // pred_fallthru
      _
    %p413 = scmp.le.s32.totalorder 2, %s8
    // Predicated region
    $region33: #{bertdot_dual_fullfuse_forward.28} parent=5 // pred_check
      %p414 = pneg %p413
    $region34: #{bertdot_dual_fullfuse_forward.28} parent=5 // pred_check_branch
      %416 = sbr.rel (%p414) target = $region36
    $region35: #{bertdot_dual_fullfuse_forward.28} parent=5 // pred_region
      %s417 = ssub.s32 %s8, 2
      // Predicated region
      $region37: #{bertdot_dual_fullfuse_forward.28} parent=35 // pred_check
        %p418 = pneg %p89
      $region38: #{bertdot_dual_fullfuse_forward.28} parent=35 // pred_check_branch
        %420 = sbr.rel (%p418) target = $region40
      $region39: #{bertdot_dual_fullfuse_forward.28} parent=35 // pred_region
        %p421 = scmp.lt.s32.totalorder %s14, 1
        %s422 = scalar_select %p421, %s14, 1
        %s423 = smul.addr %s422, 4
        %s424 = scalar_lea.vmem %s2, %s423
      $region40: #{bertdot_dual_fullfuse_forward.28} parent=35 // pred_fallthru
        _
    $region36: #{bertdot_dual_fullfuse_forward.28} parent=5 // pred_fallthru
      _
  $region6: #{bertdot_dual_fullfuse_forward.28} parent=0 // loop_footer
    %s12 = sadd.s32 1, %s8
  $region7: #{bertdot_dual_fullfuse_forward.28} parent=0 // loop_footer_branch
    %7 = sbr.rel target = $region3
  $region8: #{bertdot_dual_fullfuse_forward.28} parent=0 // loop_exit
    _

// kernel: bertdot_dual_fullfuse_forward.19
$region0: #{bertdot_dual_fullfuse_forward.19}
  #allocation0 [shape = 'u32[]', space=smem, size = 0x4, offset = 0x4, fixed_abs, tag = 'smem constant byte address 0x4 - core index']
  #allocation1 [shape = 'u32[144,128]{1,0:T(1,128)}', space=vmem, size = 0x12000, scoped, tag = 'internal scratch']
  #allocation2 [shape = 'f32[16,64]{1,0:T(8,128)}', space=vmem, size = 0x2000, scoped, tag = 'scratch operand']
  %s0 = inlined_call_operand.vmem [shape: bf16[16,32], index: 0, kind: input, shape index: {}]
  %s1 = inlined_call_operand.vmem [shape: bf16[32,64], index: 1, kind: input, shape index: {}]
  %s2 = inlined_call_operand.vmem [shape: f32[1,64], index: 2, kind: input, shape index: {}]
  %s3 = inlined_call_operand.vmem [shape: bf16[16,64], index: 3, kind: output, shape index: {}]
  %s4 = sld [smem:[#allocation0]]
  $region30: #{bertdot_dual_fullfuse_forward.19} parent=0
    _
  %s6 = ssub.s32 1, %s4
  %s7 = scalar_select 0, %s6, %s4
  // Predicated region
  $region2: #{bertdot_dual_fullfuse_forward.19} parent=0 // pred_check
    _
  $region3: #{bertdot_dual_fullfuse_forward.19} parent=0 // pred_check_branch
    %9 = sbr.rel (0) target = $region5
  $region4: #{bertdot_dual_fullfuse_forward.19} parent=0 // pred_region
    _
  $region5: #{bertdot_dual_fullfuse_forward.19} parent=0 // pred_fallthru
    _
  // Predicated region
  $region6: #{bertdot_dual_fullfuse_forward.19} parent=0 // pred_check
    _
  $region7: #{bertdot_dual_fullfuse_forward.19} parent=0 // pred_check_branch
    %11 = sbr.rel (0) target = $region9
  $region8: #{bertdot_dual_fullfuse_forward.19} parent=0 // pred_region
    _
  $region9: #{bertdot_dual_fullfuse_forward.19} parent=0 // pred_fallthru
    _
  // Predicated region
  $region10: #{bertdot_dual_fullfuse_forward.19} parent=0 // pred_check
    _
  $region11: #{bertdot_dual_fullfuse_forward.19} parent=0 // pred_check_branch
    %13 = sbr.rel (0) target = $region13
  $region12: #{bertdot_dual_fullfuse_forward.19} parent=0 // pred_region
    _
  $region13: #{bertdot_dual_fullfuse_forward.19} parent=0 // pred_fallthru
    _
  %p15 = scmp.eq.s32.totalorder 0, 0
  // Predicated region
  $region14: #{bertdot_dual_fullfuse_forward.19} parent=0 // pred_check
    %p16 = pneg %p15
  $region15: #{bertdot_dual_fullfuse_forward.19} parent=0 // pred_check_branch
    %18 = sbr.rel (%p16) target = $region17
  $region16: #{bertdot_dual_fullfuse_forward.19} parent=0 // pred_region
    %vm19 = vcmask 523264
    %20 = vst.msk [vmem:[#allocation2] sm:$0xff] %vm19, 0.0
    %21 = vst.msk [vmem:[#allocation2 + $0x8] sm:$0xff] %vm19, 0.0
  $region17: #{bertdot_dual_fullfuse_forward.19} parent=0 // pred_fallthru
    _
  %v22 = vld [vmem:[#allocation2] sm:$0xff]
  %v23 = vld [vmem:[#allocation2 + $0x8] sm:$0xff]
  %v24 = vld [vmem:[%s0] sm:$0xf]
  %v25 = vld [vmem:[%s0 + $0x4] sm:$0xf]
  %v26 = vld [vmem:[%s1] sm:$0xf]
  %v27 = vld [vmem:[%s1 + $0x4] sm:$0xf]
  %v28 = vld [vmem:[%s1 + $0x8] sm:$0xf]
  %v29 = vld [vmem:[%s1 + $0xc] sm:$0xf]
  %v32 = vunpack.c.l.b16 %v24
  %v33 = vunpack.c.l.b16 %v25
  %v34 = vpack.c.b16 %v33, %v32
  %v39 = vunpack.c.l.b16 %v26
  %v40 = vunpack.c.l.b16 %v27
  %v41 = vunpack.c.l.b16 %v28
  %v42 = vunpack.c.l.b16 %v29
  %v43 = vpack.c.b16 %v40, %v39
  %v44 = vpack.c.b16 %v42, %v41
  %vm47 = vcmask 261120
  %v49 = vsel %vm47, %v34, 0
  %51 = vmatprep.subr.bf16.mxu0 0
  %52 = vmatpush1.bf16.msra.mxu0 0
  %53 = vmatprep.subr.bf16.mxu0 0
  %54 = vmatpush1.bf16.msra.mxu0 0
  %55 = vmatprep.subr.bf16.mxu0 0
  %56 = vmatpush1.bf16.msra.mxu0 0
  %57 = vmatprep.subr.bf16.mxu0 0
  %58 = vmatpush1.bf16.msra.mxu0 0
  %59 = vmatprep.subr.bf16.mxu0 0
  %60 = vmatpush1.bf16.msra.mxu0 0
  %61 = vmatprep.subr.bf16.mxu0 0
  %62 = vmatpush1.bf16.msra.mxu0 0
  %63 = vmatprep.subr.bf16.mxu0 0
  %64 = vmatpush1.bf16.msra.mxu0 %v44
  %65 = vmatprep.subr.bf16.mxu0 0
  %66 = vmatpush1.bf16.msra.mxu0 %v43
  %67 = vmatprep.subr.bf16.mxu0 0
  %68 = vmatpush2.bf16.msra.mxu0 0
  %69 = vmatprep.subr.bf16.mxu0 0
  %70 = vmatpush2.bf16.msra.mxu0 0
  %71 = vmatprep.subr.bf16.mxu0 0
  %72 = vmatpush2.bf16.msra.mxu0 0
  %73 = vmatprep.subr.bf16.mxu0 0
  %74 = vmatpush2.bf16.msra.mxu0 0
  %75 = vmatprep.subr.bf16.mxu0 0
  %76 = vmatpush2.bf16.msra.mxu0 0
  %77 = vmatprep.subr.bf16.mxu0 0
  %78 = vmatpush2.bf16.msra.mxu0 0
  %79 = vmatprep.subr.bf16.mxu0 0
  %80 = vmatpush2.bf16.msra.mxu0 0
  %81 = vmatprep.subr.bf16.mxu0 0
  %82 = vmatpush2.bf16.msra.mxu0 0
  %83 = vmatprep.mubr.bf16.mxu0 0
  %84 = vmatmul.mubr.bf16.gmra.mxu0 %v49
  %v85 = vpop.f32.mrf.mxu0
  %v86 = vadd.f32 0.0, %v85
  %v87 = vpop.f32.mrf.mxu0
  %v88 = vpop.f32.mrf.mxu0
  %v89 = vadd.f32 0.0, %v88
  %v90 = vpop.f32.mrf.mxu0
  %91 = vdwg.mxu0
  %v92 = vadd.f32 %v22, %v86
  %v93 = vadd.f32 %v23, %v89
  %vm94 = vcmask 523264
  %95 = vst.msk [vmem:[#allocation2] sm:$0xff] %vm94, %v92
  %96 = vst.msk [vmem:[#allocation2 + $0x8] sm:$0xff] %vm94, %v93
  // Predicated region
  $region18: #{bertdot_dual_fullfuse_forward.19} parent=0 // pred_check
    %p97 = pneg %p15
  $region19: #{bertdot_dual_fullfuse_forward.19} parent=0 // pred_check_branch
    %99 = sbr.rel (%p97) target = $region21
  $region20: #{bertdot_dual_fullfuse_forward.19} parent=0 // pred_region
    %v100 = vld [vmem:[#allocation2] sm:$0xff]
    %v101 = vld [vmem:[#allocation2 + $0x8] sm:$0xff]
    %v102 = vld [vmem:[%s2] sm:$0x1]
    %v104 = vlaneseq
    %v105 = vshrl.u32 %v104, 7
    %v106 = vsub.s32 0, %v105
    %v107 = vrot.slane %v102, %v106
    %v109 = vadd.f32 %v100, %v107
    %v110 = vadd.f32 %v101, %v107
    %v111 = vmul.f32 %v109, %v109
    %v112 = vmul.f32 %v110, %v110
    %v113 = vmul.f32 %v109, %v111
    %v114 = vmul.f32 %v110, %v112
    %v115 = vmul.f32 %v113, 0.044715
    %v116 = vmul.f32 %v114, 0.044715
    %v117 = vadd.f32 %v109, %v115
    %v118 = vadd.f32 %v110, %v116
    %v119 = vmul.f32 %v117, 0.7978846
    %v120 = vmul.f32 %v118, 0.7978846
    %v121 = vtanh.pop %v119
    %v122 = vtanh.pop %v120
    %v123 = vadd.f32 %v121, 1.0
    %v124 = vadd.f32 %v122, 1.0
    %v125 = vmul.f32 %v123, 0.5
    %v126 = vmul.f32 %v124, 0.5
    %v127 = vmul.f32 %v109, %v125
    %v128 = vmul.f32 %v110, %v126
    %v129 = vpack.c.bf16 %v128, %v127
    %v131 = vunpack.c.l.b16 %v129
    %v132 = vunpack.c.h.b16 %v129
    %v133 = vpack.c.b16 %v131, %v131
    %v134 = vpack.c.b16 %v132, %v132
    %vm137 = vcmask 519168
    %138 = vst.msk [vmem:[%s3] sm:$0xf] %vm137, %v133
    %139 = vst.msk [vmem:[%s3 + $0x4] sm:$0xf] %vm137, %v134
  $region21: #{bertdot_dual_fullfuse_forward.19} parent=0 // pred_fallthru
    _
  // Predicated region
  $region22: #{bertdot_dual_fullfuse_forward.19} parent=0 // pred_check
    _
  $region23: #{bertdot_dual_fullfuse_forward.19} parent=0 // pred_check_branch
    %141 = sbr.rel (0) target = $region25
  $region24: #{bertdot_dual_fullfuse_forward.19} parent=0 // pred_region
    _
  $region25: #{bertdot_dual_fullfuse_forward.19} parent=0 // pred_fallthru
    _
  // Predicated region
  $region26: #{bertdot_dual_fullfuse_forward.19} parent=0 // pred_check
    _
  $region27: #{bertdot_dual_fullfuse_forward.19} parent=0 // pred_check_branch
    %143 = sbr.rel (0) target = $region29
  $region28: #{bertdot_dual_fullfuse_forward.19} parent=0 // pred_region
    _
  $region29: #{bertdot_dual_fullfuse_forward.19} parent=0 // pred_fallthru
    _

// kernel: bertdot_dual_fullfuse_forward.29
$region0: #{bertdot_dual_fullfuse_forward.29}
  #allocation0 [shape = 'u32[]', space=smem, size = 0x4, offset = 0x4, fixed_abs, tag = 'smem constant byte address 0x4 - core index']
  #allocation1 [shape = 'u32[144,128]{1,0:T(1,128)}', space=vmem, size = 0x12000, scoped, tag = 'internal scratch']
  #allocation2 [shape = 'f32[16,64]{1,0:T(8,128)}', space=vmem, size = 0x2000, scoped, tag = 'scratch operand']
  %s0 = inlined_call_operand.vmem [shape: bf16[16,64], index: 0, kind: input, shape index: {}]
  %s1 = inlined_call_operand.vmem [shape: bf16[64,64], index: 1, kind: input, shape index: {}]
  %s2 = inlined_call_operand.vmem [shape: f32[1,64], index: 2, kind: input, shape index: {}]
  %s3 = inlined_call_operand.vmem [shape: bf16[16,64], index: 3, kind: output, shape index: {}]
  %s4 = sld [smem:[#allocation0]]
  $region30: #{bertdot_dual_fullfuse_forward.29} parent=0
    _
  %s6 = ssub.s32 1, %s4
  %s7 = scalar_select 0, %s6, %s4
  // Predicated region
  $region2: #{bertdot_dual_fullfuse_forward.29} parent=0 // pred_check
    _
  $region3: #{bertdot_dual_fullfuse_forward.29} parent=0 // pred_check_branch
    %9 = sbr.rel (0) target = $region5
  $region4: #{bertdot_dual_fullfuse_forward.29} parent=0 // pred_region
    _
  $region5: #{bertdot_dual_fullfuse_forward.29} parent=0 // pred_fallthru
    _
  // Predicated region
  $region6: #{bertdot_dual_fullfuse_forward.29} parent=0 // pred_check
    _
  $region7: #{bertdot_dual_fullfuse_forward.29} parent=0 // pred_check_branch
    %11 = sbr.rel (0) target = $region9
  $region8: #{bertdot_dual_fullfuse_forward.29} parent=0 // pred_region
    _
  $region9: #{bertdot_dual_fullfuse_forward.29} parent=0 // pred_fallthru
    _
  // Predicated region
  $region10: #{bertdot_dual_fullfuse_forward.29} parent=0 // pred_check
    _
  $region11: #{bertdot_dual_fullfuse_forward.29} parent=0 // pred_check_branch
    %13 = sbr.rel (0) target = $region13
  $region12: #{bertdot_dual_fullfuse_forward.29} parent=0 // pred_region
    _
  $region13: #{bertdot_dual_fullfuse_forward.29} parent=0 // pred_fallthru
    _
  %p15 = scmp.eq.s32.totalorder 0, 0
  // Predicated region
  $region14: #{bertdot_dual_fullfuse_forward.29} parent=0 // pred_check
    %p16 = pneg %p15
  $region15: #{bertdot_dual_fullfuse_forward.29} parent=0 // pred_check_branch
    %18 = sbr.rel (%p16) target = $region17
  $region16: #{bertdot_dual_fullfuse_forward.29} parent=0 // pred_region
    %vm19 = vcmask 523264
    %20 = vst.msk [vmem:[#allocation2] sm:$0xff] %vm19, 0.0
    %21 = vst.msk [vmem:[#allocation2 + $0x8] sm:$0xff] %vm19, 0.0
  $region17: #{bertdot_dual_fullfuse_forward.29} parent=0 // pred_fallthru
    _
  %v22 = vld [vmem:[#allocation2] sm:$0xff]
  %v23 = vld [vmem:[#allocation2 + $0x8] sm:$0xff]
  %v24 = vld [vmem:[%s0] sm:$0xf]
  %v25 = vld [vmem:[%s0 + $0x4] sm:$0xf]
  %v26 = vld [vmem:[%s1] sm:$0xf]
  %v27 = vld [vmem:[%s1 + $0x4] sm:$0xf]
  %v28 = vld [vmem:[%s1 + $0x8] sm:$0xf]
  %v29 = vld [vmem:[%s1 + $0xc] sm:$0xf]
  %v30 = vld [vmem:[%s1 + $0x10] sm:$0xf]
  %v31 = vld [vmem:[%s1 + $0x14] sm:$0xf]
  %v32 = vld [vmem:[%s1 + $0x18] sm:$0xf]
  %v33 = vld [vmem:[%s1 + $0x1c] sm:$0xf]
  %v36 = vunpack.c.l.b16 %v24
  %v37 = vunpack.c.l.b16 %v25
  %v38 = vpack.c.b16 %v37, %v36
  %v47 = vunpack.c.l.b16 %v26
  %v48 = vunpack.c.l.b16 %v27
  %v49 = vunpack.c.l.b16 %v28
  %v50 = vunpack.c.l.b16 %v29
  %v51 = vunpack.c.l.b16 %v30
  %v52 = vunpack.c.l.b16 %v31
  %v53 = vunpack.c.l.b16 %v32
  %v54 = vunpack.c.l.b16 %v33
  %v55 = vpack.c.b16 %v48, %v47
  %v56 = vpack.c.b16 %v50, %v49
  %v57 = vpack.c.b16 %v52, %v51
  %v58 = vpack.c.b16 %v54, %v53
  %vm63 = vcmask 523264
  %v65 = vsel %vm63, %v38, 0
  %67 = vmatprep.subr.bf16.mxu0 0
  %68 = vmatpush1.bf16.msra.mxu0 0
  %69 = vmatprep.subr.bf16.mxu0 0
  %70 = vmatpush1.bf16.msra.mxu0 0
  %71 = vmatprep.subr.bf16.mxu0 0
  %72 = vmatpush1.bf16.msra.mxu0 0
  %73 = vmatprep.subr.bf16.mxu0 0
  %74 = vmatpush1.bf16.msra.mxu0 0
  %75 = vmatprep.subr.bf16.mxu0 0
  %76 = vmatpush1.bf16.msra.mxu0 %v58
  %77 = vmatprep.subr.bf16.mxu0 0
  %78 = vmatpush1.bf16.msra.mxu0 %v57
  %79 = vmatprep.subr.bf16.mxu0 0
  %80 = vmatpush1.bf16.msra.mxu0 %v56
  %81 = vmatprep.subr.bf16.mxu0 0
  %82 = vmatpush1.bf16.msra.mxu0 %v55
  %83 = vmatprep.subr.bf16.mxu0 0
  %84 = vmatpush2.bf16.msra.mxu0 0
  %85 = vmatprep.subr.bf16.mxu0 0
  %86 = vmatpush2.bf16.msra.mxu0 0
  %87 = vmatprep.subr.bf16.mxu0 0
  %88 = vmatpush2.bf16.msra.mxu0 0
  %89 = vmatprep.subr.bf16.mxu0 0
  %90 = vmatpush2.bf16.msra.mxu0 0
  %91 = vmatprep.subr.bf16.mxu0 0
  %92 = vmatpush2.bf16.msra.mxu0 0
  %93 = vmatprep.subr.bf16.mxu0 0
  %94 = vmatpush2.bf16.msra.mxu0 0
  %95 = vmatprep.subr.bf16.mxu0 0
  %96 = vmatpush2.bf16.msra.mxu0 0
  %97 = vmatprep.subr.bf16.mxu0 0
  %98 = vmatpush2.bf16.msra.mxu0 0
  %99 = vmatprep.mubr.bf16.mxu0 0
  %100 = vmatmul.mubr.bf16.gmra.mxu0 %v65
  %v101 = vpop.f32.mrf.mxu0
  %v102 = vadd.f32 0.0, %v101
  %v103 = vpop.f32.mrf.mxu0
  %v104 = vpop.f32.mrf.mxu0
  %v105 = vadd.f32 0.0, %v104
  %v106 = vpop.f32.mrf.mxu0
  %107 = vdwg.mxu0
  %v108 = vadd.f32 %v22, %v102
  %v109 = vadd.f32 %v23, %v105
  %110 = vst.msk [vmem:[#allocation2] sm:$0xff] %vm63, %v108
  %111 = vst.msk [vmem:[#allocation2 + $0x8] sm:$0xff] %vm63, %v109
  // Predicated region
  $region18: #{bertdot_dual_fullfuse_forward.29} parent=0 // pred_check
    %p112 = pneg %p15
  $region19: #{bertdot_dual_fullfuse_forward.29} parent=0 // pred_check_branch
    %114 = sbr.rel (%p112) target = $region21
  $region20: #{bertdot_dual_fullfuse_forward.29} parent=0 // pred_region
    %v115 = vld [vmem:[#allocation2] sm:$0xff]
    %v116 = vld [vmem:[#allocation2 + $0x8] sm:$0xff]
    %v117 = vld [vmem:[%s2] sm:$0x1]
    %v119 = vlaneseq
    %v120 = vshrl.u32 %v119, 7
    %v121 = vsub.s32 0, %v120
    %v122 = vrot.slane %v117, %v121
    %v124 = vadd.f32 %v115, %v122
    %v125 = vadd.f32 %v116, %v122
    %v126 = vpack.c.bf16 %v125, %v124
    %v128 = vunpack.c.l.b16 %v126
    %v129 = vunpack.c.h.b16 %v126
    %v130 = vpack.c.b16 %v128, %v128
    %v131 = vpack.c.b16 %v129, %v129
    %vm134 = vcmask 519168
    %135 = vst.msk [vmem:[%s3] sm:$0xf] %vm134, %v130
    %136 = vst.msk [vmem:[%s3 + $0x4] sm:$0xf] %vm134, %v131
  $region21: #{bertdot_dual_fullfuse_forward.29} parent=0 // pred_fallthru
    _
  // Predicated region
  $region22: #{bertdot_dual_fullfuse_forward.29} parent=0 // pred_check
    _
  $region23: #{bertdot_dual_fullfuse_forward.29} parent=0 // pred_check_branch
    %138 = sbr.rel (0) target = $region25
  $region24: #{bertdot_dual_fullfuse_forward.29} parent=0 // pred_region
    _
  $region25: #{bertdot_dual_fullfuse_forward.29} parent=0 // pred_fallthru
    _
  // Predicated region
  $region26: #{bertdot_dual_fullfuse_forward.29} parent=0 // pred_check
    _
  $region27: #{bertdot_dual_fullfuse_forward.29} parent=0 // pred_check_branch
    %140 = sbr.rel (0) target = $region29
  $region28: #{bertdot_dual_fullfuse_forward.29} parent=0 // pred_region
    _
  $region29: #{bertdot_dual_fullfuse_forward.29} parent=0 // pred_fallthru
    _

</llo_original>
